<compile_context>
chip_gen: v6e
topology: v6e:2x2x1
jax: 0.10.0
libtpu: 0.0.40
codegen_flags: <defaults>
</compile_context>

<pallas_src>
import math

import jax
import jax.numpy as jnp
from jax.experimental import pallas as pl
from jax.experimental.pallas import tpu as pltpu

# ---------------- configuration (small, consistent with the module) -------------
STATE_DIM = 4
ACTION_DIM = 4
SEQ_LEN = 8                  # L (power of two -> mask trick uses shift/and)
EPISODE_LEN = 20
EMB_DIM = 32                 # D
NUM_LAYERS = 2
NUM_HEADS = 2
HEAD_DIM = EMB_DIM // NUM_HEADS
MAX_ACTION = 1.0
LN_EPS = 1e-5
S_TOK = 4 * SEQ_LEN          # transformer sequence length (4 tokens / timestep)
BATCH = 2
ROWS = BATCH * S_TOK         # flattened (batch * tokens) rows
BL = BATCH * SEQ_LEN         # flattened (batch * timesteps) rows
TABLE = EPISODE_LEN + SEQ_LEN

# indices into the packed (N_VECS, 1, D) vector stack
V_EMB_LN_W, V_EMB_LN_B = 0, 1
V_OUT_LN_W, V_OUT_LN_B = 2, 3
V_STATE_B, V_ACTION_B, V_RETURN_B, V_D_B = 4, 5, 6, 7
V_RETURN_W, V_D_W = 8, 9
N_VECS = 10


# ---------------- in-kernel helpers ---------------------------------------------
def _layernorm(x, w, b):
    # x: (T, D), w/b: (1, D) -- biased variance + eps inside rsqrt (torch.nn.LayerNorm)
    mu = jnp.mean(x, axis=-1, keepdims=True)
    var = jnp.mean(jnp.square(x - mu), axis=-1, keepdims=True)
    return (x - mu) * jax.lax.rsqrt(var + LN_EPS) * w + b


def _linear_t(x, w):
    # x @ w.T via dot_general (contract last dim of x with last dim of w)
    return jax.lax.dot_general(
        x, w, dimension_numbers=(((1,), (1,)), ((), ())),
        preferred_element_type=jnp.float32)


def _gelu_exact(x):
    # matches torch.nn.GELU() default (erf-based)
    return 0.5 * x * (1.0 + jax.lax.erf(x * 0.7071067811865475))


# ---------------- fully fused forward kernel ------------------------------------
def fused_kernel(st_ref, ac_ref, ret_ref, d_ref, ts_ref,     # (BL,S),(BL,A),(BL,1),(BL,1),(BL,1) i32
                 temb_ref,                                    # (TABLE, D) timestep-embedding table
                 state_w_ref, action_w_ref,                   # (D, S), (D, A)
                 vec_ref,                                     # (N_VECS, 1, D) packed vectors
                 ln1w_ref, ln1b_ref,                          # (NL, 1, D)
                 wq_ref, wk_ref, wv_ref,                      # (NL, D, D)
                 bq_ref, bk_ref, bv_ref,                      # (NL, 1, D)
                 outw_ref, outb_ref,                          # (NL, D, D), (NL, 1, D)
                 ln2w_ref, ln2b_ref,                          # (NL, 1, D)
                 w1_ref, b1_ref, w2_ref, b2_ref,              # (NL,4D,D),(NL,1,4D),(NL,D,4D),(NL,1,D)
                 headw_ref, headb_ref,                        # (A, D), (1, A)
                 o_ref,                                       # (BL, A)
                 buf):                                        # VMEM scratch (ROWS, D)
    L = SEQ_LEN

    # --- timestep-embedding gather as a one-hot matmul (MXU, no XLA gather) ------
    ts = ts_ref[...]                                                     # (BL, 1) int32
    col = jax.lax.broadcasted_iota(jnp.int32, (BL, TABLE), 1)
    onehot = jnp.where(col == ts, jnp.float32(1.0), jnp.float32(0.0))    # (BL, TABLE)
    time_emb = jnp.dot(onehot, temb_ref[...],
                       preferred_element_type=jnp.float32)               # (BL, D)

    # --- token-embedding projections (all batch*timestep rows at once) -----------
    ret_emb = ret_ref[...] * vec_ref[V_RETURN_W] + vec_ref[V_RETURN_B] + time_emb
    st_emb = _linear_t(st_ref[...], state_w_ref[...]) + vec_ref[V_STATE_B] + time_emb
    ac_emb = _linear_t(ac_ref[...], action_w_ref[...]) + vec_ref[V_ACTION_B] + time_emb
    d_emb = d_ref[...] * vec_ref[V_D_W] + vec_ref[V_D_B]   # NOTE: no time_emb (matches reference)

    # --- assemble token sequence in grouped layout: per batch [ret | state | act | d]
    # (attention is permutation-equivariant; the causal mask below is permuted to match)
    streams = (ret_emb, st_emb, ac_emb, d_emb)
    for b in range(BATCH):
        for k, s in enumerate(streams):
            buf[b * S_TOK + k * L:b * S_TOK + (k + 1) * L, :] = s[b * L:(b + 1) * L, :]
    x = buf[...]                                             # (ROWS, D)

    # --- emb_norm (embedding dropout is 0.0 -> identity)
    x = _layernorm(x, vec_ref[V_EMB_LN_W], vec_ref[V_EMB_LN_B])

    # --- causal mask in grouped layout, built ONCE per invocation ----------------
    # grouped row r = k*L + t maps to interleaved position p = 4*t + k
    shift = SEQ_LEN.bit_length() - 1                          # log2(L), L power of two
    r = jax.lax.broadcasted_iota(jnp.int32, (S_TOK, S_TOK), 0)
    c = jax.lax.broadcasted_iota(jnp.int32, (S_TOK, S_TOK), 1)
    kr = jax.lax.shift_right_logical(r, shift)
    tr = jax.lax.bitwise_and(r, SEQ_LEN - 1)
    kc = jax.lax.shift_right_logical(c, shift)
    tc = jax.lax.bitwise_and(c, SEQ_LEN - 1)
    pos_r = tr * 4 + kr
    pos_c = tc * 4 + kc
    mask = jnp.where(pos_c <= pos_r, jnp.float32(0.0), jnp.float32(-1e30))

    scale = 1.0 / math.sqrt(HEAD_DIM)

    # --- transformer blocks, statically unrolled ---------------------------------
    for i in range(NUM_LAYERS):
        # pre-norm multi-head self-attention
        h = _layernorm(x, ln1w_ref[i], ln1b_ref[i])
        q = _linear_t(h, wq_ref[i]) + bq_ref[i]               # (ROWS, D)
        kk = _linear_t(h, wk_ref[i]) + bk_ref[i]
        v = _linear_t(h, wv_ref[i]) + bv_ref[i]

        for b in range(BATCH):
            r0, r1 = b * S_TOK, (b + 1) * S_TOK
            for hh in range(NUM_HEADS):
                c0, c1 = hh * HEAD_DIM, (hh + 1) * HEAD_DIM
                qh = q[r0:r1, c0:c1]
                kh = kk[r0:r1, c0:c1]
                vh = v[r0:r1, c0:c1]
                s = _linear_t(qh, kh) * scale + mask          # (S_TOK, S_TOK)
                s = s - jnp.max(s, axis=-1, keepdims=True)
                p = jnp.exp(s)
                p = p * pl.reciprocal(jnp.sum(p, axis=-1, keepdims=True), approx=True)
                # write head output directly into the persistent scratch slice
                buf[r0:r1, c0:c1] = jnp.dot(p, vh, preferred_element_type=jnp.float32)

        attn = _linear_t(buf[...], outw_ref[i]) + outb_ref[i]  # flattened out-proj
        x = x + attn

        # pre-norm MLP (Linear -> GELU -> Linear), flattened over batch
        h2 = _layernorm(x, ln2w_ref[i], ln2b_ref[i])
        m = _linear_t(h2, w1_ref[i]) + b1_ref[i]               # (ROWS, 4D)
        m = _gelu_exact(m)
        m = _linear_t(m, w2_ref[i]) + b2_ref[i]                # (ROWS, D)
        x = x + m

    # --- out_norm + action head on the state tokens (grouped rows L..2L-1 / batch)
    st_rows = jnp.concatenate(
        [x[b * S_TOK + L:b * S_TOK + 2 * L, :] for b in range(BATCH)], axis=0)  # (BL, D)
    h_out = _layernorm(st_rows, vec_ref[V_OUT_LN_W], vec_ref[V_OUT_LN_B])
    a = _linear_t(h_out, headw_ref[...]) + headb_ref[...]      # (BL, A)
    o_ref[...] = jnp.tanh(a) * MAX_ACTION


def fused_transformer(st, ac, ret, d, ts, p):
    args = [st, ac, ret, d, ts,
            p['timestep_emb'], p['state_w'], p['action_w'], p['vecs'],
            p['ln1_w'], p['ln1_b'],
            p['wq'], p['wk'], p['wv'],
            p['bq'], p['bk'], p['bv'],
            p['out_w'], p['out_b'],
            p['ln2_w'], p['ln2_b'],
            p['w1'], p['b1'], p['w2'], p['b2'],
            p['head_w'], p['head_b']]
    return pl.pallas_call(
        fused_kernel,
        out_shape=jax.ShapeDtypeStruct((BL, ACTION_DIM), jnp.float32),
        scratch_shapes=[pltpu.VMEM((ROWS, EMB_DIM), jnp.float32)],
    )(*args)


# ---------------- parameter init (deterministic, matches module's _init_weights) -
def init_params(key):
    keys = iter(jax.random.split(key, 64))

    def normal(shape):
        return 0.02 * jax.random.normal(next(keys), shape, jnp.float32)

    D, NL = EMB_DIM, NUM_LAYERS
    ones = jnp.ones((1, D), jnp.float32)
    zeros = jnp.zeros((1, D), jnp.float32)

    # packed (N_VECS, 1, D) small-vector stack
    vecs = jnp.stack([
        ones, zeros,                     # emb_ln w / b
        ones, zeros,                     # out_ln w / b
        zeros, zeros, zeros, zeros,      # state_b, action_b, return_b, d_b
        normal((1, D)), normal((1, D)),  # return_emb weight row (W.T), d_emb weight row (W.T)
    ], axis=0)

    p = {
        'timestep_emb': normal((TABLE, D)),
        'state_w': normal((D, STATE_DIM)),
        'action_w': normal((D, ACTION_DIM)),
        'vecs': vecs,
        'head_w': normal((ACTION_DIM, D)), 'head_b': jnp.zeros((1, ACTION_DIM), jnp.float32),
        # per-layer weights stacked along a leading NUM_LAYERS axis.
        # in_proj (3D, D) of nn.MultiheadAttention is split into wq/wk/wv (identical math).
        'ln1_w': jnp.ones((NL, 1, D), jnp.float32), 'ln1_b': jnp.zeros((NL, 1, D), jnp.float32),
        'wq': normal((NL, D, D)), 'wk': normal((NL, D, D)), 'wv': normal((NL, D, D)),
        'bq': jnp.zeros((NL, 1, D), jnp.float32), 'bk': jnp.zeros((NL, 1, D), jnp.float32),
        'bv': jnp.zeros((NL, 1, D), jnp.float32),
        'out_w': normal((NL, D, D)), 'out_b': jnp.zeros((NL, 1, D), jnp.float32),
        'ln2_w': jnp.ones((NL, 1, D), jnp.float32), 'ln2_b': jnp.zeros((NL, 1, D), jnp.float32),
        'w1': normal((NL, 4 * D, D)), 'b1': jnp.zeros((NL, 1, 4 * D), jnp.float32),
        'w2': normal((NL, D, 4 * D)), 'b2': jnp.zeros((NL, 1, D), jnp.float32),
    }
    return p


# ---------------- full forward (trivial reshapes + one fused Pallas kernel) ------
@jax.jit
def forward(params, states, actions, rewards, d, returns_to_go, time_steps):
    del rewards  # unused in the reference forward
    B, L = states.shape[:2]
    out = fused_transformer(
        states.reshape(B * L, STATE_DIM),
        actions.reshape(B * L, ACTION_DIM),
        returns_to_go.reshape(B * L, 1),
        d.reshape(B * L, 1),
        time_steps.reshape(B * L, 1).astype(jnp.int32),
        params)
    return out.reshape(B, L, ACTION_DIM)


if __name__ == "__main__":
    key = jax.random.PRNGKey(0)
    k_param, k_s, k_a, k_r, k_d, k_g, k_t = jax.random.split(key, 7)

    params = init_params(k_param)

    states = jax.random.normal(k_s, (BATCH, SEQ_LEN, STATE_DIM), jnp.float32)
    actions = jax.random.normal(k_a, (BATCH, SEQ_LEN, ACTION_DIM), jnp.float32)
    rewards = jax.random.normal(k_r, (BATCH, SEQ_LEN, 1), jnp.float32)
    d = jax.random.uniform(k_d, (BATCH, SEQ_LEN, 1), jnp.float32)
    returns_to_go = jax.random.normal(k_g, (BATCH, SEQ_LEN, 1), jnp.float32)
    time_steps = jax.random.randint(k_t, (BATCH, SEQ_LEN), 0, EPISODE_LEN, jnp.int32)

    out = forward(params, states, actions, rewards, d, returns_to_go, time_steps)
    out = jax.block_until_ready(out)
    assert out.shape == (BATCH, SEQ_LEN, ACTION_DIM)
    assert bool(jnp.all(jnp.isfinite(out)))
    print("KERNEL_OK")
</pallas_src>

<mosaic_0001>
module attributes {stable_mosaic.version = 11 : i64} {
  func.func @fused_kernel(%arg0: memref<16x4xf32, #tpu.memory_space<vmem>>, %arg1: memref<16x4xf32, #tpu.memory_space<vmem>>, %arg2: memref<16x1xf32, #tpu.memory_space<vmem>>, %arg3: memref<16x1xf32, #tpu.memory_space<vmem>>, %arg4: memref<16x1xi32, #tpu.memory_space<vmem>>, %arg5: memref<28x32xf32, #tpu.memory_space<vmem>>, %arg6: memref<32x4xf32, #tpu.memory_space<vmem>>, %arg7: memref<32x4xf32, #tpu.memory_space<vmem>>, %arg8: memref<10x1x32xf32, #tpu.memory_space<vmem>>, %arg9: memref<2x1x32xf32, #tpu.memory_space<vmem>>, %arg10: memref<2x1x32xf32, #tpu.memory_space<vmem>>, %arg11: memref<2x32x32xf32, #tpu.memory_space<vmem>>, %arg12: memref<2x32x32xf32, #tpu.memory_space<vmem>>, %arg13: memref<2x32x32xf32, #tpu.memory_space<vmem>>, %arg14: memref<2x1x32xf32, #tpu.memory_space<vmem>>, %arg15: memref<2x1x32xf32, #tpu.memory_space<vmem>>, %arg16: memref<2x1x32xf32, #tpu.memory_space<vmem>>, %arg17: memref<2x32x32xf32, #tpu.memory_space<vmem>>, %arg18: memref<2x1x32xf32, #tpu.memory_space<vmem>>, %arg19: memref<2x1x32xf32, #tpu.memory_space<vmem>>, %arg20: memref<2x1x32xf32, #tpu.memory_space<vmem>>, %arg21: memref<2x128x32xf32, #tpu.memory_space<vmem>>, %arg22: memref<2x1x128xf32, #tpu.memory_space<vmem>>, %arg23: memref<2x32x128xf32, #tpu.memory_space<vmem>>, %arg24: memref<2x1x32xf32, #tpu.memory_space<vmem>>, %arg25: memref<4x32xf32, #tpu.memory_space<vmem>>, %arg26: memref<1x4xf32, #tpu.memory_space<vmem>>, %arg27: memref<16x4xf32, #tpu.memory_space<vmem>>, %arg28: memref<64x32xf32, #tpu.memory_space<vmem>>) attributes {dimension_semantics = [], scalar_prefetch = 0 : i64, scratch_operands = 1 : i64, tpu.core_type = #tpu.core_type<tc>} {
    %c0 = arith.constant 0 : index
    %c0_0 = arith.constant 0 : index
    %0 = vector.load %arg4[%c0, %c0_0] : memref<16x1xi32, #tpu.memory_space<vmem>>, vector<16x1xi32>
    %1 = tpu.iota {dimensions = array<i32: 1>} : vector<16x28xi32>
    %2 = vector.broadcast %0 : vector<16x1xi32> to vector<16x28xi32>
    %3 = arith.cmpi eq, %1, %2 : vector<16x28xi32>
    %cst = arith.constant 1.000000e+00 : f32
    %cst_1 = arith.constant 0.000000e+00 : f32
    %4 = vector.broadcast %cst : f32 to vector<16x28xf32>
    %5 = vector.broadcast %cst_1 : f32 to vector<16x28xf32>
    %6 = arith.select %3, %4, %5 : vector<16x28xi1>, vector<16x28xf32>
    %c0_2 = arith.constant 0 : index
    %c0_3 = arith.constant 0 : index
    %7 = vector.load %arg5[%c0_2, %c0_3] : memref<28x32xf32, #tpu.memory_space<vmem>>, vector<28x32xf32>
    %cst_4 = arith.constant dense<0.000000e+00> : vector<16x32xf32>
    %8 = tpu.matmul %6, %7, %cst_4 {dimension_numbers = #tpu.dot_dimension_numbers<[1], [0], [0], [1], [0, 0, 1, 1], [], []>} : vector<16x28xf32>, vector<28x32xf32>, vector<16x32xf32> -> vector<16x32xf32>
    %c0_5 = arith.constant 0 : index
    %c0_6 = arith.constant 0 : index
    %9 = vector.load %arg2[%c0_5, %c0_6] : memref<16x1xf32, #tpu.memory_space<vmem>>, vector<16x1xf32>
    %c8 = arith.constant 8 : index
    %c0_7 = arith.constant 0 : index
    %c0_8 = arith.constant 0 : index
    %10 = vector.load %arg8[%c8, %c0_7, %c0_8] : memref<10x1x32xf32, #tpu.memory_space<vmem>>, vector<1x1x32xf32>
    %11 = vector.shape_cast %10 : vector<1x1x32xf32> to vector<1x32xf32>
    %12 = vector.broadcast %9 : vector<16x1xf32> to vector<16x32xf32>
    %13 = vector.broadcast %11 : vector<1x32xf32> to vector<16x32xf32>
    %14 = arith.mulf %12, %13 : vector<16x32xf32>
    %c6 = arith.constant 6 : index
    %c0_9 = arith.constant 0 : index
    %c0_10 = arith.constant 0 : index
    %15 = vector.load %arg8[%c6, %c0_9, %c0_10] : memref<10x1x32xf32, #tpu.memory_space<vmem>>, vector<1x1x32xf32>
    %16 = vector.shape_cast %15 : vector<1x1x32xf32> to vector<1x32xf32>
    %17 = vector.broadcast %16 : vector<1x32xf32> to vector<16x32xf32>
    %18 = arith.addf %14, %17 : vector<16x32xf32>
    %19 = arith.addf %18, %8 : vector<16x32xf32>
    %c0_11 = arith.constant 0 : index
    %c0_12 = arith.constant 0 : index
    %20 = vector.load %arg0[%c0_11, %c0_12] : memref<16x4xf32, #tpu.memory_space<vmem>>, vector<16x4xf32>
    %c0_13 = arith.constant 0 : index
    %c0_14 = arith.constant 0 : index
    %21 = vector.load %arg6[%c0_13, %c0_14] : memref<32x4xf32, #tpu.memory_space<vmem>>, vector<32x4xf32>
    %cst_15 = arith.constant dense<0.000000e+00> : vector<16x32xf32>
    %22 = tpu.matmul %20, %21, %cst_15 {dimension_numbers = #tpu.dot_dimension_numbers<[1], [1], [0], [0], [0, 0, 1, 0], [], []>} : vector<16x4xf32>, vector<32x4xf32>, vector<16x32xf32> -> vector<16x32xf32>
    %c4 = arith.constant 4 : index
    %c0_16 = arith.constant 0 : index
    %c0_17 = arith.constant 0 : index
    %23 = vector.load %arg8[%c4, %c0_16, %c0_17] : memref<10x1x32xf32, #tpu.memory_space<vmem>>, vector<1x1x32xf32>
    %24 = vector.shape_cast %23 : vector<1x1x32xf32> to vector<1x32xf32>
    %25 = vector.broadcast %24 : vector<1x32xf32> to vector<16x32xf32>
    %26 = arith.addf %22, %25 : vector<16x32xf32>
    %27 = arith.addf %26, %8 : vector<16x32xf32>
    %c0_18 = arith.constant 0 : index
    %c0_19 = arith.constant 0 : index
    %28 = vector.load %arg1[%c0_18, %c0_19] : memref<16x4xf32, #tpu.memory_space<vmem>>, vector<16x4xf32>
    %c0_20 = arith.constant 0 : index
    %c0_21 = arith.constant 0 : index
    %29 = vector.load %arg7[%c0_20, %c0_21] : memref<32x4xf32, #tpu.memory_space<vmem>>, vector<32x4xf32>
    %cst_22 = arith.constant dense<0.000000e+00> : vector<16x32xf32>
    %30 = tpu.matmul %28, %29, %cst_22 {dimension_numbers = #tpu.dot_dimension_numbers<[1], [1], [0], [0], [0, 0, 1, 0], [], []>} : vector<16x4xf32>, vector<32x4xf32>, vector<16x32xf32> -> vector<16x32xf32>
    %c5 = arith.constant 5 : index
    %c0_23 = arith.constant 0 : index
    %c0_24 = arith.constant 0 : index
    %31 = vector.load %arg8[%c5, %c0_23, %c0_24] : memref<10x1x32xf32, #tpu.memory_space<vmem>>, vector<1x1x32xf32>
    %32 = vector.shape_cast %31 : vector<1x1x32xf32> to vector<1x32xf32>
    %33 = vector.broadcast %32 : vector<1x32xf32> to vector<16x32xf32>
    %34 = arith.addf %30, %33 : vector<16x32xf32>
    %35 = arith.addf %34, %8 : vector<16x32xf32>
    %c0_25 = arith.constant 0 : index
    %c0_26 = arith.constant 0 : index
    %36 = vector.load %arg3[%c0_25, %c0_26] : memref<16x1xf32, #tpu.memory_space<vmem>>, vector<16x1xf32>
    %c9 = arith.constant 9 : index
    %c0_27 = arith.constant 0 : index
    %c0_28 = arith.constant 0 : index
    %37 = vector.load %arg8[%c9, %c0_27, %c0_28] : memref<10x1x32xf32, #tpu.memory_space<vmem>>, vector<1x1x32xf32>
    %38 = vector.shape_cast %37 : vector<1x1x32xf32> to vector<1x32xf32>
    %39 = vector.broadcast %36 : vector<16x1xf32> to vector<16x32xf32>
    %40 = vector.broadcast %38 : vector<1x32xf32> to vector<16x32xf32>
    %41 = arith.mulf %39, %40 : vector<16x32xf32>
    %c7 = arith.constant 7 : index
    %c0_29 = arith.constant 0 : index
    %c0_30 = arith.constant 0 : index
    %42 = vector.load %arg8[%c7, %c0_29, %c0_30] : memref<10x1x32xf32, #tpu.memory_space<vmem>>, vector<1x1x32xf32>
    %43 = vector.shape_cast %42 : vector<1x1x32xf32> to vector<1x32xf32>
    %44 = vector.broadcast %43 : vector<1x32xf32> to vector<16x32xf32>
    %45 = arith.addf %41, %44 : vector<16x32xf32>
    %46 = vector.extract_strided_slice %19 {offsets = [0, 0], sizes = [8, 32], strides = [1, 1]} : vector<16x32xf32> to vector<8x32xf32>
    %c0_31 = arith.constant 0 : index
    %c0_32 = arith.constant 0 : index
    %47 = vector.load %arg28[%c0_31, %c0_32] : memref<64x32xf32, #tpu.memory_space<vmem>>, vector<8x32xf32>
    tpu.vector_store %arg28[%c0_31, %c0_32], %46 {strides = array<i32>} : memref<64x32xf32, #tpu.memory_space<vmem>>, vector<8x32xf32>,
    %48 = vector.extract_strided_slice %27 {offsets = [0, 0], sizes = [8, 32], strides = [1, 1]} : vector<16x32xf32> to vector<8x32xf32>
    %c8_33 = arith.constant 8 : index
    %c0_34 = arith.constant 0 : index
    %49 = vector.load %arg28[%c8_33, %c0_34] : memref<64x32xf32, #tpu.memory_space<vmem>>, vector<8x32xf32>
    tpu.vector_store %arg28[%c8_33, %c0_34], %48 {strides = array<i32>} : memref<64x32xf32, #tpu.memory_space<vmem>>, vector<8x32xf32>,
    %50 = vector.extract_strided_slice %35 {offsets = [0, 0], sizes = [8, 32], strides = [1, 1]} : vector<16x32xf32> to vector<8x32xf32>
    %c16 = arith.constant 16 : index
    %c0_35 = arith.constant 0 : index
    %51 = vector.load %arg28[%c16, %c0_35] : memref<64x32xf32, #tpu.memory_space<vmem>>, vector<8x32xf32>
    tpu.vector_store %arg28[%c16, %c0_35], %50 {strides = array<i32>} : memref<64x32xf32, #tpu.memory_space<vmem>>, vector<8x32xf32>,
    %52 = vector.extract_strided_slice %45 {offsets = [0, 0], sizes = [8, 32], strides = [1, 1]} : vector<16x32xf32> to vector<8x32xf32>
    %c24 = arith.constant 24 : index
    %c0_36 = arith.constant 0 : index
    %53 = vector.load %arg28[%c24, %c0_36] : memref<64x32xf32, #tpu.memory_space<vmem>>, vector<8x32xf32>
    tpu.vector_store %arg28[%c24, %c0_36], %52 {strides = array<i32>} : memref<64x32xf32, #tpu.memory_space<vmem>>, vector<8x32xf32>,
    %54 = vector.extract_strided_slice %19 {offsets = [8, 0], sizes = [8, 32], strides = [1, 1]} : vector<16x32xf32> to vector<8x32xf32>
    %c32 = arith.constant 32 : index
    %c0_37 = arith.constant 0 : index
    %55 = vector.load %arg28[%c32, %c0_37] : memref<64x32xf32, #tpu.memory_space<vmem>>, vector<8x32xf32>
    tpu.vector_store %arg28[%c32, %c0_37], %54 {strides = array<i32>} : memref<64x32xf32, #tpu.memory_space<vmem>>, vector<8x32xf32>,
    %56 = vector.extract_strided_slice %27 {offsets = [8, 0], sizes = [8, 32], strides = [1, 1]} : vector<16x32xf32> to vector<8x32xf32>
    %c40 = arith.constant 40 : index
    %c0_38 = arith.constant 0 : index
    %57 = vector.load %arg28[%c40, %c0_38] : memref<64x32xf32, #tpu.memory_space<vmem>>, vector<8x32xf32>
    tpu.vector_store %arg28[%c40, %c0_38], %56 {strides = array<i32>} : memref<64x32xf32, #tpu.memory_space<vmem>>, vector<8x32xf32>,
    %58 = vector.extract_strided_slice %35 {offsets = [8, 0], sizes = [8, 32], strides = [1, 1]} : vector<16x32xf32> to vector<8x32xf32>
    %c48 = arith.constant 48 : index
    %c0_39 = arith.constant 0 : index
    %59 = vector.load %arg28[%c48, %c0_39] : memref<64x32xf32, #tpu.memory_space<vmem>>, vector<8x32xf32>
    tpu.vector_store %arg28[%c48, %c0_39], %58 {strides = array<i32>} : memref<64x32xf32, #tpu.memory_space<vmem>>, vector<8x32xf32>,
    %60 = vector.extract_strided_slice %45 {offsets = [8, 0], sizes = [8, 32], strides = [1, 1]} : vector<16x32xf32> to vector<8x32xf32>
    %c56 = arith.constant 56 : index
    %c0_40 = arith.constant 0 : index
    %61 = vector.load %arg28[%c56, %c0_40] : memref<64x32xf32, #tpu.memory_space<vmem>>, vector<8x32xf32>
    tpu.vector_store %arg28[%c56, %c0_40], %60 {strides = array<i32>} : memref<64x32xf32, #tpu.memory_space<vmem>>, vector<8x32xf32>,
    %c0_41 = arith.constant 0 : index
    %c0_42 = arith.constant 0 : index
    %62 = vector.load %arg28[%c0_41, %c0_42] : memref<64x32xf32, #tpu.memory_space<vmem>>, vector<64x32xf32>
    %c0_43 = arith.constant 0 : index
    %c0_44 = arith.constant 0 : index
    %c0_45 = arith.constant 0 : index
    %63 = vector.load %arg8[%c0_43, %c0_44, %c0_45] : memref<10x1x32xf32, #tpu.memory_space<vmem>>, vector<1x1x32xf32>
    %64 = vector.shape_cast %63 : vector<1x1x32xf32> to vector<1x32xf32>
    %c1 = arith.constant 1 : index
    %c0_46 = arith.constant 0 : index
    %c0_47 = arith.constant 0 : index
    %65 = vector.load %arg8[%c1, %c0_46, %c0_47] : memref<10x1x32xf32, #tpu.memory_space<vmem>>, vector<1x1x32xf32>
    %66 = vector.shape_cast %65 : vector<1x1x32xf32> to vector<1x32xf32>
    %cst_48 = arith.constant dense<0.000000e+00> : vector<64xf32>
    %67 = vector.multi_reduction <add>, %62, %cst_48 [1] : vector<64x32xf32> to vector<64xf32>
    %68 = vector.shape_cast %67 : vector<64xf32> to vector<64x1xf32>
    %cst_49 = arith.constant 3.200000e+01 : f32
    %69 = vector.broadcast %cst_49 : f32 to vector<64x1xf32>
    %70 = arith.divf %68, %69 : vector<64x1xf32>
    %71 = vector.broadcast %70 : vector<64x1xf32> to vector<64x32xf32>
    %72 = arith.subf %62, %71 : vector<64x32xf32>
    %73 = arith.mulf %72, %72 : vector<64x32xf32>
    %cst_50 = arith.constant dense<0.000000e+00> : vector<64xf32>
    %74 = vector.multi_reduction <add>, %73, %cst_50 [1] : vector<64x32xf32> to vector<64xf32>
    %75 = vector.shape_cast %74 : vector<64xf32> to vector<64x1xf32>
    %cst_51 = arith.constant 3.200000e+01 : f32
    %76 = vector.broadcast %cst_51 : f32 to vector<64x1xf32>
    %77 = arith.divf %75, %76 : vector<64x1xf32>
    %78 = vector.broadcast %70 : vector<64x1xf32> to vector<64x32xf32>
    %79 = arith.subf %62, %78 : vector<64x32xf32>
    %cst_52 = arith.constant 9.99999974E-6 : f32
    %80 = vector.broadcast %cst_52 : f32 to vector<64x1xf32>
    %81 = arith.addf %77, %80 : vector<64x1xf32>
    %82 = math.rsqrt %81 : vector<64x1xf32>
    %83 = vector.broadcast %82 : vector<64x1xf32> to vector<64x32xf32>
    %84 = arith.mulf %79, %83 : vector<64x32xf32>
    %85 = vector.broadcast %64 : vector<1x32xf32> to vector<64x32xf32>
    %86 = arith.mulf %84, %85 : vector<64x32xf32>
    %87 = vector.broadcast %66 : vector<1x32xf32> to vector<64x32xf32>
    %88 = arith.addf %86, %87 : vector<64x32xf32>
    %89 = tpu.iota {dimensions = array<i32: 0>} : vector<32x32xi32>
    %90 = tpu.iota {dimensions = array<i32: 1>} : vector<32x32xi32>
    %c3_i32 = arith.constant 3 : i32
    %91 = vector.broadcast %c3_i32 : i32 to vector<32x32xi32>
    %92 = arith.shrui %89, %91 : vector<32x32xi32>
    %c7_i32 = arith.constant 7 : i32
    %93 = vector.broadcast %c7_i32 : i32 to vector<32x32xi32>
    %94 = arith.andi %89, %93 : vector<32x32xi32>
    %c3_i32_53 = arith.constant 3 : i32
    %95 = vector.broadcast %c3_i32_53 : i32 to vector<32x32xi32>
    %96 = arith.shrui %90, %95 : vector<32x32xi32>
    %c7_i32_54 = arith.constant 7 : i32
    %97 = vector.broadcast %c7_i32_54 : i32 to vector<32x32xi32>
    %98 = arith.andi %90, %97 : vector<32x32xi32>
    %c4_i32 = arith.constant 4 : i32
    %99 = vector.broadcast %c4_i32 : i32 to vector<32x32xi32>
    %100 = arith.muli %94, %99 : vector<32x32xi32>
    %101 = arith.addi %100, %92 : vector<32x32xi32>
    %c4_i32_55 = arith.constant 4 : i32
    %102 = vector.broadcast %c4_i32_55 : i32 to vector<32x32xi32>
    %103 = arith.muli %98, %102 : vector<32x32xi32>
    %104 = arith.addi %103, %96 : vector<32x32xi32>
    %105 = arith.cmpi sle, %104, %101 : vector<32x32xi32>
    %cst_56 = arith.constant 0.000000e+00 : f32
    %cst_57 = arith.constant -1.000000e+30 : f32
    %106 = vector.broadcast %cst_56 : f32 to vector<32x32xf32>
    %107 = vector.broadcast %cst_57 : f32 to vector<32x32xf32>
    %108 = arith.select %105, %106, %107 : vector<32x32xi1>, vector<32x32xf32>
    %c0_58 = arith.constant 0 : index
    %c0_59 = arith.constant 0 : index
    %c0_60 = arith.constant 0 : index
    %109 = vector.load %arg9[%c0_58, %c0_59, %c0_60] : memref<2x1x32xf32, #tpu.memory_space<vmem>>, vector<1x1x32xf32>
    %110 = vector.shape_cast %109 : vector<1x1x32xf32> to vector<1x32xf32>
    %c0_61 = arith.constant 0 : index
    %c0_62 = arith.constant 0 : index
    %c0_63 = arith.constant 0 : index
    %111 = vector.load %arg10[%c0_61, %c0_62, %c0_63] : memref<2x1x32xf32, #tpu.memory_space<vmem>>, vector<1x1x32xf32>
    %112 = vector.shape_cast %111 : vector<1x1x32xf32> to vector<1x32xf32>
    %cst_64 = arith.constant dense<0.000000e+00> : vector<64xf32>
    %113 = vector.multi_reduction <add>, %88, %cst_64 [1] : vector<64x32xf32> to vector<64xf32>
    %114 = vector.shape_cast %113 : vector<64xf32> to vector<64x1xf32>
    %cst_65 = arith.constant 3.200000e+01 : f32
    %115 = vector.broadcast %cst_65 : f32 to vector<64x1xf32>
    %116 = arith.divf %114, %115 : vector<64x1xf32>
    %117 = vector.broadcast %116 : vector<64x1xf32> to vector<64x32xf32>
    %118 = arith.subf %88, %117 : vector<64x32xf32>
    %119 = arith.mulf %118, %118 : vector<64x32xf32>
    %cst_66 = arith.constant dense<0.000000e+00> : vector<64xf32>
    %120 = vector.multi_reduction <add>, %119, %cst_66 [1] : vector<64x32xf32> to vector<64xf32>
    %121 = vector.shape_cast %120 : vector<64xf32> to vector<64x1xf32>
    %cst_67 = arith.constant 3.200000e+01 : f32
    %122 = vector.broadcast %cst_67 : f32 to vector<64x1xf32>
    %123 = arith.divf %121, %122 : vector<64x1xf32>
    %124 = vector.broadcast %116 : vector<64x1xf32> to vector<64x32xf32>
    %125 = arith.subf %88, %124 : vector<64x32xf32>
    %cst_68 = arith.constant 9.99999974E-6 : f32
    %126 = vector.broadcast %cst_68 : f32 to vector<64x1xf32>
    %127 = arith.addf %123, %126 : vector<64x1xf32>
    %128 = math.rsqrt %127 : vector<64x1xf32>
    %129 = vector.broadcast %128 : vector<64x1xf32> to vector<64x32xf32>
    %130 = arith.mulf %125, %129 : vector<64x32xf32>
    %131 = vector.broadcast %110 : vector<1x32xf32> to vector<64x32xf32>
    %132 = arith.mulf %130, %131 : vector<64x32xf32>
    %133 = vector.broadcast %112 : vector<1x32xf32> to vector<64x32xf32>
    %134 = arith.addf %132, %133 : vector<64x32xf32>
    %c0_69 = arith.constant 0 : index
    %c0_70 = arith.constant 0 : index
    %c0_71 = arith.constant 0 : index
    %135 = vector.load %arg11[%c0_69, %c0_70, %c0_71] : memref<2x32x32xf32, #tpu.memory_space<vmem>>, vector<1x32x32xf32>
    %136 = vector.shape_cast %135 : vector<1x32x32xf32> to vector<32x32xf32>
    %cst_72 = arith.constant dense<0.000000e+00> : vector<64x32xf32>
    %137 = tpu.matmul %134, %136, %cst_72 {dimension_numbers = #tpu.dot_dimension_numbers<[1], [1], [0], [0], [0, 0, 1, 0], [], []>} : vector<64x32xf32>, vector<32x32xf32>, vector<64x32xf32> -> vector<64x32xf32>
    %c0_73 = arith.constant 0 : index
    %c0_74 = arith.constant 0 : index
    %c0_75 = arith.constant 0 : index
    %138 = vector.load %arg14[%c0_73, %c0_74, %c0_75] : memref<2x1x32xf32, #tpu.memory_space<vmem>>, vector<1x1x32xf32>
    %139 = vector.shape_cast %138 : vector<1x1x32xf32> to vector<1x32xf32>
    %140 = vector.broadcast %139 : vector<1x32xf32> to vector<64x32xf32>
    %141 = arith.addf %137, %140 : vector<64x32xf32>
    %c0_76 = arith.constant 0 : index
    %c0_77 = arith.constant 0 : index
    %c0_78 = arith.constant 0 : index
    %142 = vector.load %arg12[%c0_76, %c0_77, %c0_78] : memref<2x32x32xf32, #tpu.memory_space<vmem>>, vector<1x32x32xf32>
    %143 = vector.shape_cast %142 : vector<1x32x32xf32> to vector<32x32xf32>
    %cst_79 = arith.constant dense<0.000000e+00> : vector<64x32xf32>
    %144 = tpu.matmul %134, %143, %cst_79 {dimension_numbers = #tpu.dot_dimension_numbers<[1], [1], [0], [0], [0, 0, 1, 0], [], []>} : vector<64x32xf32>, vector<32x32xf32>, vector<64x32xf32> -> vector<64x32xf32>
    %c0_80 = arith.constant 0 : index
    %c0_81 = arith.constant 0 : index
    %c0_82 = arith.constant 0 : index
    %145 = vector.load %arg15[%c0_80, %c0_81, %c0_82] : memref<2x1x32xf32, #tpu.memory_space<vmem>>, vector<1x1x32xf32>
    %146 = vector.shape_cast %145 : vector<1x1x32xf32> to vector<1x32xf32>
    %147 = vector.broadcast %146 : vector<1x32xf32> to vector<64x32xf32>
    %148 = arith.addf %144, %147 : vector<64x32xf32>
    %c0_83 = arith.constant 0 : index
    %c0_84 = arith.constant 0 : index
    %c0_85 = arith.constant 0 : index
    %149 = vector.load %arg13[%c0_83, %c0_84, %c0_85] : memref<2x32x32xf32, #tpu.memory_space<vmem>>, vector<1x32x32xf32>
    %150 = vector.shape_cast %149 : vector<1x32x32xf32> to vector<32x32xf32>
    %cst_86 = arith.constant dense<0.000000e+00> : vector<64x32xf32>
    %151 = tpu.matmul %134, %150, %cst_86 {dimension_numbers = #tpu.dot_dimension_numbers<[1], [1], [0], [0], [0, 0, 1, 0], [], []>} : vector<64x32xf32>, vector<32x32xf32>, vector<64x32xf32> -> vector<64x32xf32>
    %c0_87 = arith.constant 0 : index
    %c0_88 = arith.constant 0 : index
    %c0_89 = arith.constant 0 : index
    %152 = vector.load %arg16[%c0_87, %c0_88, %c0_89] : memref<2x1x32xf32, #tpu.memory_space<vmem>>, vector<1x1x32xf32>
    %153 = vector.shape_cast %152 : vector<1x1x32xf32> to vector<1x32xf32>
    %154 = vector.broadcast %153 : vector<1x32xf32> to vector<64x32xf32>
    %155 = arith.addf %151, %154 : vector<64x32xf32>
    %156 = vector.extract_strided_slice %141 {offsets = [0, 0], sizes = [32, 16], strides = [1, 1]} : vector<64x32xf32> to vector<32x16xf32>
    %157 = vector.extract_strided_slice %148 {offsets = [0, 0], sizes = [32, 16], strides = [1, 1]} : vector<64x32xf32> to vector<32x16xf32>
    %158 = vector.extract_strided_slice %155 {offsets = [0, 0], sizes = [32, 16], strides = [1, 1]} : vector<64x32xf32> to vector<32x16xf32>
    %cst_90 = arith.constant dense<0.000000e+00> : vector<32x32xf32>
    %159 = tpu.matmul %156, %157, %cst_90 {dimension_numbers = #tpu.dot_dimension_numbers<[1], [1], [0], [0], [0, 0, 1, 0], [], []>} : vector<32x16xf32>, vector<32x16xf32>, vector<32x32xf32> -> vector<32x32xf32>
    %cst_91 = arith.constant 2.500000e-01 : f32
    %160 = vector.broadcast %cst_91 : f32 to vector<32x32xf32>
    %161 = arith.mulf %159, %160 : vector<32x32xf32>
    %162 = arith.addf %161, %108 : vector<32x32xf32>
    %cst_92 = arith.constant dense<0xFF800000> : vector<32xf32>
    %163 = vector.multi_reduction <maximumf>, %162, %cst_92 [1] : vector<32x32xf32> to vector<32xf32>
    %164 = vector.shape_cast %163 : vector<32xf32> to vector<32x1xf32>
    %165 = vector.broadcast %164 : vector<32x1xf32> to vector<32x32xf32>
    %166 = arith.subf %162, %165 : vector<32x32xf32>
    %167 = math.exp %166 : vector<32x32xf32>
    %cst_93 = arith.constant dense<0.000000e+00> : vector<32xf32>
    %168 = vector.multi_reduction <add>, %167, %cst_93 [1] : vector<32x32xf32> to vector<32xf32>
    %169 = vector.shape_cast %168 : vector<32xf32> to vector<32x1xf32>
    %170 = tpu.reciprocal %169 {approx = true} : vector<32x1xf32> -> vector<32x1xf32>
    %171 = vector.broadcast %170 : vector<32x1xf32> to vector<32x32xf32>
    %172 = arith.mulf %167, %171 : vector<32x32xf32>
    %cst_94 = arith.constant dense<0.000000e+00> : vector<32x16xf32>
    %173 = tpu.matmul %172, %158, %cst_94 {dimension_numbers = #tpu.dot_dimension_numbers<[1], [0], [0], [1], [0, 0, 1, 1], [], []>} : vector<32x32xf32>, vector<32x16xf32>, vector<32x16xf32> -> vector<32x16xf32>
    %c0_95 = arith.constant 0 : index
    %c0_96 = arith.constant 0 : index
    %174 = vector.load %arg28[%c0_95, %c0_96] : memref<64x32xf32, #tpu.memory_space<vmem>>, vector<32x16xf32>
    tpu.vector_store %arg28[%c0_95, %c0_96], %173 {strides = array<i32>} : memref<64x32xf32, #tpu.memory_space<vmem>>, vector<32x16xf32>,
    %175 = vector.extract_strided_slice %141 {offsets = [0, 16], sizes = [32, 16], strides = [1, 1]} : vector<64x32xf32> to vector<32x16xf32>
    %176 = vector.extract_strided_slice %148 {offsets = [0, 16], sizes = [32, 16], strides = [1, 1]} : vector<64x32xf32> to vector<32x16xf32>
    %177 = vector.extract_strided_slice %155 {offsets = [0, 16], sizes = [32, 16], strides = [1, 1]} : vector<64x32xf32> to vector<32x16xf32>
    %cst_97 = arith.constant dense<0.000000e+00> : vector<32x32xf32>
    %178 = tpu.matmul %175, %176, %cst_97 {dimension_numbers = #tpu.dot_dimension_numbers<[1], [1], [0], [0], [0, 0, 1, 0], [], []>} : vector<32x16xf32>, vector<32x16xf32>, vector<32x32xf32> -> vector<32x32xf32>
    %cst_98 = arith.constant 2.500000e-01 : f32
    %179 = vector.broadcast %cst_98 : f32 to vector<32x32xf32>
    %180 = arith.mulf %178, %179 : vector<32x32xf32>
    %181 = arith.addf %180, %108 : vector<32x32xf32>
    %cst_99 = arith.constant dense<0xFF800000> : vector<32xf32>
    %182 = vector.multi_reduction <maximumf>, %181, %cst_99 [1] : vector<32x32xf32> to vector<32xf32>
    %183 = vector.shape_cast %182 : vector<32xf32> to vector<32x1xf32>
    %184 = vector.broadcast %183 : vector<32x1xf32> to vector<32x32xf32>
    %185 = arith.subf %181, %184 : vector<32x32xf32>
    %186 = math.exp %185 : vector<32x32xf32>
    %cst_100 = arith.constant dense<0.000000e+00> : vector<32xf32>
    %187 = vector.multi_reduction <add>, %186, %cst_100 [1] : vector<32x32xf32> to vector<32xf32>
    %188 = vector.shape_cast %187 : vector<32xf32> to vector<32x1xf32>
    %189 = tpu.reciprocal %188 {approx = true} : vector<32x1xf32> -> vector<32x1xf32>
    %190 = vector.broadcast %189 : vector<32x1xf32> to vector<32x32xf32>
    %191 = arith.mulf %186, %190 : vector<32x32xf32>
    %cst_101 = arith.constant dense<0.000000e+00> : vector<32x16xf32>
    %192 = tpu.matmul %191, %177, %cst_101 {dimension_numbers = #tpu.dot_dimension_numbers<[1], [0], [0], [1], [0, 0, 1, 1], [], []>} : vector<32x32xf32>, vector<32x16xf32>, vector<32x16xf32> -> vector<32x16xf32>
    %c0_102 = arith.constant 0 : index
    %c16_103 = arith.constant 16 : index
    %193 = vector.load %arg28[%c0_102, %c16_103] : memref<64x32xf32, #tpu.memory_space<vmem>>, vector<32x16xf32>
    tpu.vector_store %arg28[%c0_102, %c16_103], %192 {strides = array<i32>} : memref<64x32xf32, #tpu.memory_space<vmem>>, vector<32x16xf32>,
    %194 = vector.extract_strided_slice %141 {offsets = [32, 0], sizes = [32, 16], strides = [1, 1]} : vector<64x32xf32> to vector<32x16xf32>
    %195 = vector.extract_strided_slice %148 {offsets = [32, 0], sizes = [32, 16], strides = [1, 1]} : vector<64x32xf32> to vector<32x16xf32>
    %196 = vector.extract_strided_slice %155 {offsets = [32, 0], sizes = [32, 16], strides = [1, 1]} : vector<64x32xf32> to vector<32x16xf32>
    %cst_104 = arith.constant dense<0.000000e+00> : vector<32x32xf32>
    %197 = tpu.matmul %194, %195, %cst_104 {dimension_numbers = #tpu.dot_dimension_numbers<[1], [1], [0], [0], [0, 0, 1, 0], [], []>} : vector<32x16xf32>, vector<32x16xf32>, vector<32x32xf32> -> vector<32x32xf32>
    %cst_105 = arith.constant 2.500000e-01 : f32
    %198 = vector.broadcast %cst_105 : f32 to vector<32x32xf32>
    %199 = arith.mulf %197, %198 : vector<32x32xf32>
    %200 = arith.addf %199, %108 : vector<32x32xf32>
    %cst_106 = arith.constant dense<0xFF800000> : vector<32xf32>
    %201 = vector.multi_reduction <maximumf>, %200, %cst_106 [1] : vector<32x32xf32> to vector<32xf32>
    %202 = vector.shape_cast %201 : vector<32xf32> to vector<32x1xf32>
    %203 = vector.broadcast %202 : vector<32x1xf32> to vector<32x32xf32>
    %204 = arith.subf %200, %203 : vector<32x32xf32>
    %205 = math.exp %204 : vector<32x32xf32>
    %cst_107 = arith.constant dense<0.000000e+00> : vector<32xf32>
    %206 = vector.multi_reduction <add>, %205, %cst_107 [1] : vector<32x32xf32> to vector<32xf32>
    %207 = vector.shape_cast %206 : vector<32xf32> to vector<32x1xf32>
    %208 = tpu.reciprocal %207 {approx = true} : vector<32x1xf32> -> vector<32x1xf32>
    %209 = vector.broadcast %208 : vector<32x1xf32> to vector<32x32xf32>
    %210 = arith.mulf %205, %209 : vector<32x32xf32>
    %cst_108 = arith.constant dense<0.000000e+00> : vector<32x16xf32>
    %211 = tpu.matmul %210, %196, %cst_108 {dimension_numbers = #tpu.dot_dimension_numbers<[1], [0], [0], [1], [0, 0, 1, 1], [], []>} : vector<32x32xf32>, vector<32x16xf32>, vector<32x16xf32> -> vector<32x16xf32>
    %c32_109 = arith.constant 32 : index
    %c0_110 = arith.constant 0 : index
    %212 = vector.load %arg28[%c32_109, %c0_110] : memref<64x32xf32, #tpu.memory_space<vmem>>, vector<32x16xf32>
    tpu.vector_store %arg28[%c32_109, %c0_110], %211 {strides = array<i32>} : memref<64x32xf32, #tpu.memory_space<vmem>>, vector<32x16xf32>,
    %213 = vector.extract_strided_slice %141 {offsets = [32, 16], sizes = [32, 16], strides = [1, 1]} : vector<64x32xf32> to vector<32x16xf32>
    %214 = vector.extract_strided_slice %148 {offsets = [32, 16], sizes = [32, 16], strides = [1, 1]} : vector<64x32xf32> to vector<32x16xf32>
    %215 = vector.extract_strided_slice %155 {offsets = [32, 16], sizes = [32, 16], strides = [1, 1]} : vector<64x32xf32> to vector<32x16xf32>
    %cst_111 = arith.constant dense<0.000000e+00> : vector<32x32xf32>
    %216 = tpu.matmul %213, %214, %cst_111 {dimension_numbers = #tpu.dot_dimension_numbers<[1], [1], [0], [0], [0, 0, 1, 0], [], []>} : vector<32x16xf32>, vector<32x16xf32>, vector<32x32xf32> -> vector<32x32xf32>
    %cst_112 = arith.constant 2.500000e-01 : f32
    %217 = vector.broadcast %cst_112 : f32 to vector<32x32xf32>
    %218 = arith.mulf %216, %217 : vector<32x32xf32>
    %219 = arith.addf %218, %108 : vector<32x32xf32>
    %cst_113 = arith.constant dense<0xFF800000> : vector<32xf32>
    %220 = vector.multi_reduction <maximumf>, %219, %cst_113 [1] : vector<32x32xf32> to vector<32xf32>
    %221 = vector.shape_cast %220 : vector<32xf32> to vector<32x1xf32>
    %222 = vector.broadcast %221 : vector<32x1xf32> to vector<32x32xf32>
    %223 = arith.subf %219, %222 : vector<32x32xf32>
    %224 = math.exp %223 : vector<32x32xf32>
    %cst_114 = arith.constant dense<0.000000e+00> : vector<32xf32>
    %225 = vector.multi_reduction <add>, %224, %cst_114 [1] : vector<32x32xf32> to vector<32xf32>
    %226 = vector.shape_cast %225 : vector<32xf32> to vector<32x1xf32>
    %227 = tpu.reciprocal %226 {approx = true} : vector<32x1xf32> -> vector<32x1xf32>
    %228 = vector.broadcast %227 : vector<32x1xf32> to vector<32x32xf32>
    %229 = arith.mulf %224, %228 : vector<32x32xf32>
    %cst_115 = arith.constant dense<0.000000e+00> : vector<32x16xf32>
    %230 = tpu.matmul %229, %215, %cst_115 {dimension_numbers = #tpu.dot_dimension_numbers<[1], [0], [0], [1], [0, 0, 1, 1], [], []>} : vector<32x32xf32>, vector<32x16xf32>, vector<32x16xf32> -> vector<32x16xf32>
    %c32_116 = arith.constant 32 : index
    %c16_117 = arith.constant 16 : index
    %231 = vector.load %arg28[%c32_116, %c16_117] : memref<64x32xf32, #tpu.memory_space<vmem>>, vector<32x16xf32>
    tpu.vector_store %arg28[%c32_116, %c16_117], %230 {strides = array<i32>} : memref<64x32xf32, #tpu.memory_space<vmem>>, vector<32x16xf32>,
    %c0_118 = arith.constant 0 : index
    %c0_119 = arith.constant 0 : index
    %232 = vector.load %arg28[%c0_118, %c0_119] : memref<64x32xf32, #tpu.memory_space<vmem>>, vector<64x32xf32>
    %c0_120 = arith.constant 0 : index
    %c0_121 = arith.constant 0 : index
    %c0_122 = arith.constant 0 : index
    %233 = vector.load %arg17[%c0_120, %c0_121, %c0_122] : memref<2x32x32xf32, #tpu.memory_space<vmem>>, vector<1x32x32xf32>
    %234 = vector.shape_cast %233 : vector<1x32x32xf32> to vector<32x32xf32>
    %cst_123 = arith.constant dense<0.000000e+00> : vector<64x32xf32>
    %235 = tpu.matmul %232, %234, %cst_123 {dimension_numbers = #tpu.dot_dimension_numbers<[1], [1], [0], [0], [0, 0, 1, 0], [], []>} : vector<64x32xf32>, vector<32x32xf32>, vector<64x32xf32> -> vector<64x32xf32>
    %c0_124 = arith.constant 0 : index
    %c0_125 = arith.constant 0 : index
    %c0_126 = arith.constant 0 : index
    %236 = vector.load %arg18[%c0_124, %c0_125, %c0_126] : memref<2x1x32xf32, #tpu.memory_space<vmem>>, vector<1x1x32xf32>
    %237 = vector.shape_cast %236 : vector<1x1x32xf32> to vector<1x32xf32>
    %238 = vector.broadcast %237 : vector<1x32xf32> to vector<64x32xf32>
    %239 = arith.addf %235, %238 : vector<64x32xf32>
    %240 = arith.addf %88, %239 : vector<64x32xf32>
    %c0_127 = arith.constant 0 : index
    %c0_128 = arith.constant 0 : index
    %c0_129 = arith.constant 0 : index
    %241 = vector.load %arg19[%c0_127, %c0_128, %c0_129] : memref<2x1x32xf32, #tpu.memory_space<vmem>>, vector<1x1x32xf32>
    %242 = vector.shape_cast %241 : vector<1x1x32xf32> to vector<1x32xf32>
    %c0_130 = arith.constant 0 : index
    %c0_131 = arith.constant 0 : index
    %c0_132 = arith.constant 0 : index
    %243 = vector.load %arg20[%c0_130, %c0_131, %c0_132] : memref<2x1x32xf32, #tpu.memory_space<vmem>>, vector<1x1x32xf32>
    %244 = vector.shape_cast %243 : vector<1x1x32xf32> to vector<1x32xf32>
    %cst_133 = arith.constant dense<0.000000e+00> : vector<64xf32>
    %245 = vector.multi_reduction <add>, %240, %cst_133 [1] : vector<64x32xf32> to vector<64xf32>
    %246 = vector.shape_cast %245 : vector<64xf32> to vector<64x1xf32>
    %cst_134 = arith.constant 3.200000e+01 : f32
    %247 = vector.broadcast %cst_134 : f32 to vector<64x1xf32>
    %248 = arith.divf %246, %247 : vector<64x1xf32>
    %249 = vector.broadcast %248 : vector<64x1xf32> to vector<64x32xf32>
    %250 = arith.subf %240, %249 : vector<64x32xf32>
    %251 = arith.mulf %250, %250 : vector<64x32xf32>
    %cst_135 = arith.constant dense<0.000000e+00> : vector<64xf32>
    %252 = vector.multi_reduction <add>, %251, %cst_135 [1] : vector<64x32xf32> to vector<64xf32>
    %253 = vector.shape_cast %252 : vector<64xf32> to vector<64x1xf32>
    %cst_136 = arith.constant 3.200000e+01 : f32
    %254 = vector.broadcast %cst_136 : f32 to vector<64x1xf32>
    %255 = arith.divf %253, %254 : vector<64x1xf32>
    %256 = vector.broadcast %248 : vector<64x1xf32> to vector<64x32xf32>
    %257 = arith.subf %240, %256 : vector<64x32xf32>
    %cst_137 = arith.constant 9.99999974E-6 : f32
    %258 = vector.broadcast %cst_137 : f32 to vector<64x1xf32>
    %259 = arith.addf %255, %258 : vector<64x1xf32>
    %260 = math.rsqrt %259 : vector<64x1xf32>
    %261 = vector.broadcast %260 : vector<64x1xf32> to vector<64x32xf32>
    %262 = arith.mulf %257, %261 : vector<64x32xf32>
    %263 = vector.broadcast %242 : vector<1x32xf32> to vector<64x32xf32>
    %264 = arith.mulf %262, %263 : vector<64x32xf32>
    %265 = vector.broadcast %244 : vector<1x32xf32> to vector<64x32xf32>
    %266 = arith.addf %264, %265 : vector<64x32xf32>
    %c0_138 = arith.constant 0 : index
    %c0_139 = arith.constant 0 : index
    %c0_140 = arith.constant 0 : index
    %267 = vector.load %arg21[%c0_138, %c0_139, %c0_140] : memref<2x128x32xf32, #tpu.memory_space<vmem>>, vector<1x128x32xf32>
    %268 = vector.shape_cast %267 : vector<1x128x32xf32> to vector<128x32xf32>
    %cst_141 = arith.constant dense<0.000000e+00> : vector<64x128xf32>
    %269 = tpu.matmul %266, %268, %cst_141 {dimension_numbers = #tpu.dot_dimension_numbers<[1], [1], [0], [0], [0, 0, 1, 0], [], []>} : vector<64x32xf32>, vector<128x32xf32>, vector<64x128xf32> -> vector<64x128xf32>
    %c0_142 = arith.constant 0 : index
    %c0_143 = arith.constant 0 : index
    %c0_144 = arith.constant 0 : index
    %270 = vector.load %arg22[%c0_142, %c0_143, %c0_144] : memref<2x1x128xf32, #tpu.memory_space<vmem>>, vector<1x1x128xf32>
    %271 = vector.shape_cast %270 : vector<1x1x128xf32> to vector<1x128xf32>
    %272 = vector.broadcast %271 : vector<1x128xf32> to vector<64x128xf32>
    %273 = arith.addf %269, %272 : vector<64x128xf32>
    %cst_145 = arith.constant 5.000000e-01 : f32
    %274 = vector.broadcast %cst_145 : f32 to vector<64x128xf32>
    %275 = arith.mulf %274, %273 : vector<64x128xf32>
    %cst_146 = arith.constant 0.707106769 : f32
    %276 = vector.broadcast %cst_146 : f32 to vector<64x128xf32>
    %277 = arith.mulf %273, %276 : vector<64x128xf32>
    %278 = math.erf %277 : vector<64x128xf32>
    %cst_147 = arith.constant 1.000000e+00 : f32
    %279 = vector.broadcast %cst_147 : f32 to vector<64x128xf32>
    %280 = arith.addf %279, %278 : vector<64x128xf32>
    %281 = arith.mulf %275, %280 : vector<64x128xf32>
    %c0_148 = arith.constant 0 : index
    %c0_149 = arith.constant 0 : index
    %c0_150 = arith.constant 0 : index
    %282 = vector.load %arg23[%c0_148, %c0_149, %c0_150] : memref<2x32x128xf32, #tpu.memory_space<vmem>>, vector<1x32x128xf32>
    %283 = vector.shape_cast %282 : vector<1x32x128xf32> to vector<32x128xf32>
    %cst_151 = arith.constant dense<0.000000e+00> : vector<64x32xf32>
    %284 = tpu.matmul %281, %283, %cst_151 {dimension_numbers = #tpu.dot_dimension_numbers<[1], [1], [0], [0], [0, 0, 1, 0], [], []>} : vector<64x128xf32>, vector<32x128xf32>, vector<64x32xf32> -> vector<64x32xf32>
    %c0_152 = arith.constant 0 : index
    %c0_153 = arith.constant 0 : index
    %c0_154 = arith.constant 0 : index
    %285 = vector.load %arg24[%c0_152, %c0_153, %c0_154] : memref<2x1x32xf32, #tpu.memory_space<vmem>>, vector<1x1x32xf32>
    %286 = vector.shape_cast %285 : vector<1x1x32xf32> to vector<1x32xf32>
    %287 = vector.broadcast %286 : vector<1x32xf32> to vector<64x32xf32>
    %288 = arith.addf %284, %287 : vector<64x32xf32>
    %289 = arith.addf %240, %288 : vector<64x32xf32>
    %c1_155 = arith.constant 1 : index
    %c0_156 = arith.constant 0 : index
    %c0_157 = arith.constant 0 : index
    %290 = vector.load %arg9[%c1_155, %c0_156, %c0_157] : memref<2x1x32xf32, #tpu.memory_space<vmem>>, vector<1x1x32xf32>
    %291 = vector.shape_cast %290 : vector<1x1x32xf32> to vector<1x32xf32>
    %c1_158 = arith.constant 1 : index
    %c0_159 = arith.constant 0 : index
    %c0_160 = arith.constant 0 : index
    %292 = vector.load %arg10[%c1_158, %c0_159, %c0_160] : memref<2x1x32xf32, #tpu.memory_space<vmem>>, vector<1x1x32xf32>
    %293 = vector.shape_cast %292 : vector<1x1x32xf32> to vector<1x32xf32>
    %cst_161 = arith.constant dense<0.000000e+00> : vector<64xf32>
    %294 = vector.multi_reduction <add>, %289, %cst_161 [1] : vector<64x32xf32> to vector<64xf32>
    %295 = vector.shape_cast %294 : vector<64xf32> to vector<64x1xf32>
    %cst_162 = arith.constant 3.200000e+01 : f32
    %296 = vector.broadcast %cst_162 : f32 to vector<64x1xf32>
    %297 = arith.divf %295, %296 : vector<64x1xf32>
    %298 = vector.broadcast %297 : vector<64x1xf32> to vector<64x32xf32>
    %299 = arith.subf %289, %298 : vector<64x32xf32>
    %300 = arith.mulf %299, %299 : vector<64x32xf32>
    %cst_163 = arith.constant dense<0.000000e+00> : vector<64xf32>
    %301 = vector.multi_reduction <add>, %300, %cst_163 [1] : vector<64x32xf32> to vector<64xf32>
    %302 = vector.shape_cast %301 : vector<64xf32> to vector<64x1xf32>
    %cst_164 = arith.constant 3.200000e+01 : f32
    %303 = vector.broadcast %cst_164 : f32 to vector<64x1xf32>
    %304 = arith.divf %302, %303 : vector<64x1xf32>
    %305 = vector.broadcast %297 : vector<64x1xf32> to vector<64x32xf32>
    %306 = arith.subf %289, %305 : vector<64x32xf32>
    %cst_165 = arith.constant 9.99999974E-6 : f32
    %307 = vector.broadcast %cst_165 : f32 to vector<64x1xf32>
    %308 = arith.addf %304, %307 : vector<64x1xf32>
    %309 = math.rsqrt %308 : vector<64x1xf32>
    %310 = vector.broadcast %309 : vector<64x1xf32> to vector<64x32xf32>
    %311 = arith.mulf %306, %310 : vector<64x32xf32>
    %312 = vector.broadcast %291 : vector<1x32xf32> to vector<64x32xf32>
    %313 = arith.mulf %311, %312 : vector<64x32xf32>
    %314 = vector.broadcast %293 : vector<1x32xf32> to vector<64x32xf32>
    %315 = arith.addf %313, %314 : vector<64x32xf32>
    %c1_166 = arith.constant 1 : index
    %c0_167 = arith.constant 0 : index
    %c0_168 = arith.constant 0 : index
    %316 = vector.load %arg11[%c1_166, %c0_167, %c0_168] : memref<2x32x32xf32, #tpu.memory_space<vmem>>, vector<1x32x32xf32>
    %317 = vector.shape_cast %316 : vector<1x32x32xf32> to vector<32x32xf32>
    %cst_169 = arith.constant dense<0.000000e+00> : vector<64x32xf32>
    %318 = tpu.matmul %315, %317, %cst_169 {dimension_numbers = #tpu.dot_dimension_numbers<[1], [1], [0], [0], [0, 0, 1, 0], [], []>} : vector<64x32xf32>, vector<32x32xf32>, vector<64x32xf32> -> vector<64x32xf32>
    %c1_170 = arith.constant 1 : index
    %c0_171 = arith.constant 0 : index
    %c0_172 = arith.constant 0 : index
    %319 = vector.load %arg14[%c1_170, %c0_171, %c0_172] : memref<2x1x32xf32, #tpu.memory_space<vmem>>, vector<1x1x32xf32>
    %320 = vector.shape_cast %319 : vector<1x1x32xf32> to vector<1x32xf32>
    %321 = vector.broadcast %320 : vector<1x32xf32> to vector<64x32xf32>
    %322 = arith.addf %318, %321 : vector<64x32xf32>
    %c1_173 = arith.constant 1 : index
    %c0_174 = arith.constant 0 : index
    %c0_175 = arith.constant 0 : index
    %323 = vector.load %arg12[%c1_173, %c0_174, %c0_175] : memref<2x32x32xf32, #tpu.memory_space<vmem>>, vector<1x32x32xf32>
    %324 = vector.shape_cast %323 : vector<1x32x32xf32> to vector<32x32xf32>
    %cst_176 = arith.constant dense<0.000000e+00> : vector<64x32xf32>
    %325 = tpu.matmul %315, %324, %cst_176 {dimension_numbers = #tpu.dot_dimension_numbers<[1], [1], [0], [0], [0, 0, 1, 0], [], []>} : vector<64x32xf32>, vector<32x32xf32>, vector<64x32xf32> -> vector<64x32xf32>
    %c1_177 = arith.constant 1 : index
    %c0_178 = arith.constant 0 : index
    %c0_179 = arith.constant 0 : index
    %326 = vector.load %arg15[%c1_177, %c0_178, %c0_179] : memref<2x1x32xf32, #tpu.memory_space<vmem>>, vector<1x1x32xf32>
    %327 = vector.shape_cast %326 : vector<1x1x32xf32> to vector<1x32xf32>
    %328 = vector.broadcast %327 : vector<1x32xf32> to vector<64x32xf32>
    %329 = arith.addf %325, %328 : vector<64x32xf32>
    %c1_180 = arith.constant 1 : index
    %c0_181 = arith.constant 0 : index
    %c0_182 = arith.constant 0 : index
    %330 = vector.load %arg13[%c1_180, %c0_181, %c0_182] : memref<2x32x32xf32, #tpu.memory_space<vmem>>, vector<1x32x32xf32>
    %331 = vector.shape_cast %330 : vector<1x32x32xf32> to vector<32x32xf32>
    %cst_183 = arith.constant dense<0.000000e+00> : vector<64x32xf32>
    %332 = tpu.matmul %315, %331, %cst_183 {dimension_numbers = #tpu.dot_dimension_numbers<[1], [1], [0], [0], [0, 0, 1, 0], [], []>} : vector<64x32xf32>, vector<32x32xf32>, vector<64x32xf32> -> vector<64x32xf32>
    %c1_184 = arith.constant 1 : index
    %c0_185 = arith.constant 0 : index
    %c0_186 = arith.constant 0 : index
    %333 = vector.load %arg16[%c1_184, %c0_185, %c0_186] : memref<2x1x32xf32, #tpu.memory_space<vmem>>, vector<1x1x32xf32>
    %334 = vector.shape_cast %333 : vector<1x1x32xf32> to vector<1x32xf32>
    %335 = vector.broadcast %334 : vector<1x32xf32> to vector<64x32xf32>
    %336 = arith.addf %332, %335 : vector<64x32xf32>
    %337 = vector.extract_strided_slice %322 {offsets = [0, 0], sizes = [32, 16], strides = [1, 1]} : vector<64x32xf32> to vector<32x16xf32>
    %338 = vector.extract_strided_slice %329 {offsets = [0, 0], sizes = [32, 16], strides = [1, 1]} : vector<64x32xf32> to vector<32x16xf32>
    %339 = vector.extract_strided_slice %336 {offsets = [0, 0], sizes = [32, 16], strides = [1, 1]} : vector<64x32xf32> to vector<32x16xf32>
    %cst_187 = arith.constant dense<0.000000e+00> : vector<32x32xf32>
    %340 = tpu.matmul %337, %338, %cst_187 {dimension_numbers = #tpu.dot_dimension_numbers<[1], [1], [0], [0], [0, 0, 1, 0], [], []>} : vector<32x16xf32>, vector<32x16xf32>, vector<32x32xf32> -> vector<32x32xf32>
    %cst_188 = arith.constant 2.500000e-01 : f32
    %341 = vector.broadcast %cst_188 : f32 to vector<32x32xf32>
    %342 = arith.mulf %340, %341 : vector<32x32xf32>
    %343 = arith.addf %342, %108 : vector<32x32xf32>
    %cst_189 = arith.constant dense<0xFF800000> : vector<32xf32>
    %344 = vector.multi_reduction <maximumf>, %343, %cst_189 [1] : vector<32x32xf32> to vector<32xf32>
    %345 = vector.shape_cast %344 : vector<32xf32> to vector<32x1xf32>
    %346 = vector.broadcast %345 : vector<32x1xf32> to vector<32x32xf32>
    %347 = arith.subf %343, %346 : vector<32x32xf32>
    %348 = math.exp %347 : vector<32x32xf32>
    %cst_190 = arith.constant dense<0.000000e+00> : vector<32xf32>
    %349 = vector.multi_reduction <add>, %348, %cst_190 [1] : vector<32x32xf32> to vector<32xf32>
    %350 = vector.shape_cast %349 : vector<32xf32> to vector<32x1xf32>
    %351 = tpu.reciprocal %350 {approx = true} : vector<32x1xf32> -> vector<32x1xf32>
    %352 = vector.broadcast %351 : vector<32x1xf32> to vector<32x32xf32>
    %353 = arith.mulf %348, %352 : vector<32x32xf32>
    %cst_191 = arith.constant dense<0.000000e+00> : vector<32x16xf32>
    %354 = tpu.matmul %353, %339, %cst_191 {dimension_numbers = #tpu.dot_dimension_numbers<[1], [0], [0], [1], [0, 0, 1, 1], [], []>} : vector<32x32xf32>, vector<32x16xf32>, vector<32x16xf32> -> vector<32x16xf32>
    %c0_192 = arith.constant 0 : index
    %c0_193 = arith.constant 0 : index
    %355 = vector.load %arg28[%c0_192, %c0_193] : memref<64x32xf32, #tpu.memory_space<vmem>>, vector<32x16xf32>
    tpu.vector_store %arg28[%c0_192, %c0_193], %354 {strides = array<i32>} : memref<64x32xf32, #tpu.memory_space<vmem>>, vector<32x16xf32>,
    %356 = vector.extract_strided_slice %322 {offsets = [0, 16], sizes = [32, 16], strides = [1, 1]} : vector<64x32xf32> to vector<32x16xf32>
    %357 = vector.extract_strided_slice %329 {offsets = [0, 16], sizes = [32, 16], strides = [1, 1]} : vector<64x32xf32> to vector<32x16xf32>
    %358 = vector.extract_strided_slice %336 {offsets = [0, 16], sizes = [32, 16], strides = [1, 1]} : vector<64x32xf32> to vector<32x16xf32>
    %cst_194 = arith.constant dense<0.000000e+00> : vector<32x32xf32>
    %359 = tpu.matmul %356, %357, %cst_194 {dimension_numbers = #tpu.dot_dimension_numbers<[1], [1], [0], [0], [0, 0, 1, 0], [], []>} : vector<32x16xf32>, vector<32x16xf32>, vector<32x32xf32> -> vector<32x32xf32>
    %cst_195 = arith.constant 2.500000e-01 : f32
    %360 = vector.broadcast %cst_195 : f32 to vector<32x32xf32>
    %361 = arith.mulf %359, %360 : vector<32x32xf32>
    %362 = arith.addf %361, %108 : vector<32x32xf32>
    %cst_196 = arith.constant dense<0xFF800000> : vector<32xf32>
    %363 = vector.multi_reduction <maximumf>, %362, %cst_196 [1] : vector<32x32xf32> to vector<32xf32>
    %364 = vector.shape_cast %363 : vector<32xf32> to vector<32x1xf32>
    %365 = vector.broadcast %364 : vector<32x1xf32> to vector<32x32xf32>
    %366 = arith.subf %362, %365 : vector<32x32xf32>
    %367 = math.exp %366 : vector<32x32xf32>
    %cst_197 = arith.constant dense<0.000000e+00> : vector<32xf32>
    %368 = vector.multi_reduction <add>, %367, %cst_197 [1] : vector<32x32xf32> to vector<32xf32>
    %369 = vector.shape_cast %368 : vector<32xf32> to vector<32x1xf32>
    %370 = tpu.reciprocal %369 {approx = true} : vector<32x1xf32> -> vector<32x1xf32>
    %371 = vector.broadcast %370 : vector<32x1xf32> to vector<32x32xf32>
    %372 = arith.mulf %367, %371 : vector<32x32xf32>
    %cst_198 = arith.constant dense<0.000000e+00> : vector<32x16xf32>
    %373 = tpu.matmul %372, %358, %cst_198 {dimension_numbers = #tpu.dot_dimension_numbers<[1], [0], [0], [1], [0, 0, 1, 1], [], []>} : vector<32x32xf32>, vector<32x16xf32>, vector<32x16xf32> -> vector<32x16xf32>
    %c0_199 = arith.constant 0 : index
    %c16_200 = arith.constant 16 : index
    %374 = vector.load %arg28[%c0_199, %c16_200] : memref<64x32xf32, #tpu.memory_space<vmem>>, vector<32x16xf32>
    tpu.vector_store %arg28[%c0_199, %c16_200], %373 {strides = array<i32>} : memref<64x32xf32, #tpu.memory_space<vmem>>, vector<32x16xf32>,
    %375 = vector.extract_strided_slice %322 {offsets = [32, 0], sizes = [32, 16], strides = [1, 1]} : vector<64x32xf32> to vector<32x16xf32>
    %376 = vector.extract_strided_slice %329 {offsets = [32, 0], sizes = [32, 16], strides = [1, 1]} : vector<64x32xf32> to vector<32x16xf32>
    %377 = vector.extract_strided_slice %336 {offsets = [32, 0], sizes = [32, 16], strides = [1, 1]} : vector<64x32xf32> to vector<32x16xf32>
    %cst_201 = arith.constant dense<0.000000e+00> : vector<32x32xf32>
    %378 = tpu.matmul %375, %376, %cst_201 {dimension_numbers = #tpu.dot_dimension_numbers<[1], [1], [0], [0], [0, 0, 1, 0], [], []>} : vector<32x16xf32>, vector<32x16xf32>, vector<32x32xf32> -> vector<32x32xf32>
    %cst_202 = arith.constant 2.500000e-01 : f32
    %379 = vector.broadcast %cst_202 : f32 to vector<32x32xf32>
    %380 = arith.mulf %378, %379 : vector<32x32xf32>
    %381 = arith.addf %380, %108 : vector<32x32xf32>
    %cst_203 = arith.constant dense<0xFF800000> : vector<32xf32>
    %382 = vector.multi_reduction <maximumf>, %381, %cst_203 [1] : vector<32x32xf32> to vector<32xf32>
    %383 = vector.shape_cast %382 : vector<32xf32> to vector<32x1xf32>
    %384 = vector.broadcast %383 : vector<32x1xf32> to vector<32x32xf32>
    %385 = arith.subf %381, %384 : vector<32x32xf32>
    %386 = math.exp %385 : vector<32x32xf32>
    %cst_204 = arith.constant dense<0.000000e+00> : vector<32xf32>
    %387 = vector.multi_reduction <add>, %386, %cst_204 [1] : vector<32x32xf32> to vector<32xf32>
    %388 = vector.shape_cast %387 : vector<32xf32> to vector<32x1xf32>
    %389 = tpu.reciprocal %388 {approx = true} : vector<32x1xf32> -> vector<32x1xf32>
    %390 = vector.broadcast %389 : vector<32x1xf32> to vector<32x32xf32>
    %391 = arith.mulf %386, %390 : vector<32x32xf32>
    %cst_205 = arith.constant dense<0.000000e+00> : vector<32x16xf32>
    %392 = tpu.matmul %391, %377, %cst_205 {dimension_numbers = #tpu.dot_dimension_numbers<[1], [0], [0], [1], [0, 0, 1, 1], [], []>} : vector<32x32xf32>, vector<32x16xf32>, vector<32x16xf32> -> vector<32x16xf32>
    %c32_206 = arith.constant 32 : index
    %c0_207 = arith.constant 0 : index
    %393 = vector.load %arg28[%c32_206, %c0_207] : memref<64x32xf32, #tpu.memory_space<vmem>>, vector<32x16xf32>
    tpu.vector_store %arg28[%c32_206, %c0_207], %392 {strides = array<i32>} : memref<64x32xf32, #tpu.memory_space<vmem>>, vector<32x16xf32>,
    %394 = vector.extract_strided_slice %322 {offsets = [32, 16], sizes = [32, 16], strides = [1, 1]} : vector<64x32xf32> to vector<32x16xf32>
    %395 = vector.extract_strided_slice %329 {offsets = [32, 16], sizes = [32, 16], strides = [1, 1]} : vector<64x32xf32> to vector<32x16xf32>
    %396 = vector.extract_strided_slice %336 {offsets = [32, 16], sizes = [32, 16], strides = [1, 1]} : vector<64x32xf32> to vector<32x16xf32>
    %cst_208 = arith.constant dense<0.000000e+00> : vector<32x32xf32>
    %397 = tpu.matmul %394, %395, %cst_208 {dimension_numbers = #tpu.dot_dimension_numbers<[1], [1], [0], [0], [0, 0, 1, 0], [], []>} : vector<32x16xf32>, vector<32x16xf32>, vector<32x32xf32> -> vector<32x32xf32>
    %cst_209 = arith.constant 2.500000e-01 : f32
    %398 = vector.broadcast %cst_209 : f32 to vector<32x32xf32>
    %399 = arith.mulf %397, %398 : vector<32x32xf32>
    %400 = arith.addf %399, %108 : vector<32x32xf32>
    %cst_210 = arith.constant dense<0xFF800000> : vector<32xf32>
    %401 = vector.multi_reduction <maximumf>, %400, %cst_210 [1] : vector<32x32xf32> to vector<32xf32>
    %402 = vector.shape_cast %401 : vector<32xf32> to vector<32x1xf32>
    %403 = vector.broadcast %402 : vector<32x1xf32> to vector<32x32xf32>
    %404 = arith.subf %400, %403 : vector<32x32xf32>
    %405 = math.exp %404 : vector<32x32xf32>
    %cst_211 = arith.constant dense<0.000000e+00> : vector<32xf32>
    %406 = vector.multi_reduction <add>, %405, %cst_211 [1] : vector<32x32xf32> to vector<32xf32>
    %407 = vector.shape_cast %406 : vector<32xf32> to vector<32x1xf32>
    %408 = tpu.reciprocal %407 {approx = true} : vector<32x1xf32> -> vector<32x1xf32>
    %409 = vector.broadcast %408 : vector<32x1xf32> to vector<32x32xf32>
    %410 = arith.mulf %405, %409 : vector<32x32xf32>
    %cst_212 = arith.constant dense<0.000000e+00> : vector<32x16xf32>
    %411 = tpu.matmul %410, %396, %cst_212 {dimension_numbers = #tpu.dot_dimension_numbers<[1], [0], [0], [1], [0, 0, 1, 1], [], []>} : vector<32x32xf32>, vector<32x16xf32>, vector<32x16xf32> -> vector<32x16xf32>
    %c32_213 = arith.constant 32 : index
    %c16_214 = arith.constant 16 : index
    %412 = vector.load %arg28[%c32_213, %c16_214] : memref<64x32xf32, #tpu.memory_space<vmem>>, vector<32x16xf32>
    tpu.vector_store %arg28[%c32_213, %c16_214], %411 {strides = array<i32>} : memref<64x32xf32, #tpu.memory_space<vmem>>, vector<32x16xf32>,
    %c0_215 = arith.constant 0 : index
    %c0_216 = arith.constant 0 : index
    %413 = vector.load %arg28[%c0_215, %c0_216] : memref<64x32xf32, #tpu.memory_space<vmem>>, vector<64x32xf32>
    %c1_217 = arith.constant 1 : index
    %c0_218 = arith.constant 0 : index
    %c0_219 = arith.constant 0 : index
    %414 = vector.load %arg17[%c1_217, %c0_218, %c0_219] : memref<2x32x32xf32, #tpu.memory_space<vmem>>, vector<1x32x32xf32>
    %415 = vector.shape_cast %414 : vector<1x32x32xf32> to vector<32x32xf32>
    %cst_220 = arith.constant dense<0.000000e+00> : vector<64x32xf32>
    %416 = tpu.matmul %413, %415, %cst_220 {dimension_numbers = #tpu.dot_dimension_numbers<[1], [1], [0], [0], [0, 0, 1, 0], [], []>} : vector<64x32xf32>, vector<32x32xf32>, vector<64x32xf32> -> vector<64x32xf32>
    %c1_221 = arith.constant 1 : index
    %c0_222 = arith.constant 0 : index
    %c0_223 = arith.constant 0 : index
    %417 = vector.load %arg18[%c1_221, %c0_222, %c0_223] : memref<2x1x32xf32, #tpu.memory_space<vmem>>, vector<1x1x32xf32>
    %418 = vector.shape_cast %417 : vector<1x1x32xf32> to vector<1x32xf32>
    %419 = vector.broadcast %418 : vector<1x32xf32> to vector<64x32xf32>
    %420 = arith.addf %416, %419 : vector<64x32xf32>
    %421 = arith.addf %289, %420 : vector<64x32xf32>
    %c1_224 = arith.constant 1 : index
    %c0_225 = arith.constant 0 : index
    %c0_226 = arith.constant 0 : index
    %422 = vector.load %arg19[%c1_224, %c0_225, %c0_226] : memref<2x1x32xf32, #tpu.memory_space<vmem>>, vector<1x1x32xf32>
    %423 = vector.shape_cast %422 : vector<1x1x32xf32> to vector<1x32xf32>
    %c1_227 = arith.constant 1 : index
    %c0_228 = arith.constant 0 : index
    %c0_229 = arith.constant 0 : index
    %424 = vector.load %arg20[%c1_227, %c0_228, %c0_229] : memref<2x1x32xf32, #tpu.memory_space<vmem>>, vector<1x1x32xf32>
    %425 = vector.shape_cast %424 : vector<1x1x32xf32> to vector<1x32xf32>
    %cst_230 = arith.constant dense<0.000000e+00> : vector<64xf32>
    %426 = vector.multi_reduction <add>, %421, %cst_230 [1] : vector<64x32xf32> to vector<64xf32>
    %427 = vector.shape_cast %426 : vector<64xf32> to vector<64x1xf32>
    %cst_231 = arith.constant 3.200000e+01 : f32
    %428 = vector.broadcast %cst_231 : f32 to vector<64x1xf32>
    %429 = arith.divf %427, %428 : vector<64x1xf32>
    %430 = vector.broadcast %429 : vector<64x1xf32> to vector<64x32xf32>
    %431 = arith.subf %421, %430 : vector<64x32xf32>
    %432 = arith.mulf %431, %431 : vector<64x32xf32>
    %cst_232 = arith.constant dense<0.000000e+00> : vector<64xf32>
    %433 = vector.multi_reduction <add>, %432, %cst_232 [1] : vector<64x32xf32> to vector<64xf32>
    %434 = vector.shape_cast %433 : vector<64xf32> to vector<64x1xf32>
    %cst_233 = arith.constant 3.200000e+01 : f32
    %435 = vector.broadcast %cst_233 : f32 to vector<64x1xf32>
    %436 = arith.divf %434, %435 : vector<64x1xf32>
    %437 = vector.broadcast %429 : vector<64x1xf32> to vector<64x32xf32>
    %438 = arith.subf %421, %437 : vector<64x32xf32>
    %cst_234 = arith.constant 9.99999974E-6 : f32
    %439 = vector.broadcast %cst_234 : f32 to vector<64x1xf32>
    %440 = arith.addf %436, %439 : vector<64x1xf32>
    %441 = math.rsqrt %440 : vector<64x1xf32>
    %442 = vector.broadcast %441 : vector<64x1xf32> to vector<64x32xf32>
    %443 = arith.mulf %438, %442 : vector<64x32xf32>
    %444 = vector.broadcast %423 : vector<1x32xf32> to vector<64x32xf32>
    %445 = arith.mulf %443, %444 : vector<64x32xf32>
    %446 = vector.broadcast %425 : vector<1x32xf32> to vector<64x32xf32>
    %447 = arith.addf %445, %446 : vector<64x32xf32>
    %c1_235 = arith.constant 1 : index
    %c0_236 = arith.constant 0 : index
    %c0_237 = arith.constant 0 : index
    %448 = vector.load %arg21[%c1_235, %c0_236, %c0_237] : memref<2x128x32xf32, #tpu.memory_space<vmem>>, vector<1x128x32xf32>
    %449 = vector.shape_cast %448 : vector<1x128x32xf32> to vector<128x32xf32>
    %cst_238 = arith.constant dense<0.000000e+00> : vector<64x128xf32>
    %450 = tpu.matmul %447, %449, %cst_238 {dimension_numbers = #tpu.dot_dimension_numbers<[1], [1], [0], [0], [0, 0, 1, 0], [], []>} : vector<64x32xf32>, vector<128x32xf32>, vector<64x128xf32> -> vector<64x128xf32>
    %c1_239 = arith.constant 1 : index
    %c0_240 = arith.constant 0 : index
    %c0_241 = arith.constant 0 : index
    %451 = vector.load %arg22[%c1_239, %c0_240, %c0_241] : memref<2x1x128xf32, #tpu.memory_space<vmem>>, vector<1x1x128xf32>
    %452 = vector.shape_cast %451 : vector<1x1x128xf32> to vector<1x128xf32>
    %453 = vector.broadcast %452 : vector<1x128xf32> to vector<64x128xf32>
    %454 = arith.addf %450, %453 : vector<64x128xf32>
    %cst_242 = arith.constant 5.000000e-01 : f32
    %455 = vector.broadcast %cst_242 : f32 to vector<64x128xf32>
    %456 = arith.mulf %455, %454 : vector<64x128xf32>
    %cst_243 = arith.constant 0.707106769 : f32
    %457 = vector.broadcast %cst_243 : f32 to vector<64x128xf32>
    %458 = arith.mulf %454, %457 : vector<64x128xf32>
    %459 = math.erf %458 : vector<64x128xf32>
    %cst_244 = arith.constant 1.000000e+00 : f32
    %460 = vector.broadcast %cst_244 : f32 to vector<64x128xf32>
    %461 = arith.addf %460, %459 : vector<64x128xf32>
    %462 = arith.mulf %456, %461 : vector<64x128xf32>
    %c1_245 = arith.constant 1 : index
    %c0_246 = arith.constant 0 : index
    %c0_247 = arith.constant 0 : index
    %463 = vector.load %arg23[%c1_245, %c0_246, %c0_247] : memref<2x32x128xf32, #tpu.memory_space<vmem>>, vector<1x32x128xf32>
    %464 = vector.shape_cast %463 : vector<1x32x128xf32> to vector<32x128xf32>
    %cst_248 = arith.constant dense<0.000000e+00> : vector<64x32xf32>
    %465 = tpu.matmul %462, %464, %cst_248 {dimension_numbers = #tpu.dot_dimension_numbers<[1], [1], [0], [0], [0, 0, 1, 0], [], []>} : vector<64x128xf32>, vector<32x128xf32>, vector<64x32xf32> -> vector<64x32xf32>
    %c1_249 = arith.constant 1 : index
    %c0_250 = arith.constant 0 : index
    %c0_251 = arith.constant 0 : index
    %466 = vector.load %arg24[%c1_249, %c0_250, %c0_251] : memref<2x1x32xf32, #tpu.memory_space<vmem>>, vector<1x1x32xf32>
    %467 = vector.shape_cast %466 : vector<1x1x32xf32> to vector<1x32xf32>
    %468 = vector.broadcast %467 : vector<1x32xf32> to vector<64x32xf32>
    %469 = arith.addf %465, %468 : vector<64x32xf32>
    %470 = arith.addf %421, %469 : vector<64x32xf32>
    %471 = vector.extract_strided_slice %470 {offsets = [8, 0], sizes = [8, 32], strides = [1, 1]} : vector<64x32xf32> to vector<8x32xf32>
    %472 = vector.extract_strided_slice %470 {offsets = [40, 0], sizes = [8, 32], strides = [1, 1]} : vector<64x32xf32> to vector<8x32xf32>
    %473 = tpu.concatenate %471, %472 in 0 : vector<8x32xf32>, vector<8x32xf32> -> vector<16x32xf32>
    %c2 = arith.constant 2 : index
    %c0_252 = arith.constant 0 : index
    %c0_253 = arith.constant 0 : index
    %474 = vector.load %arg8[%c2, %c0_252, %c0_253] : memref<10x1x32xf32, #tpu.memory_space<vmem>>, vector<1x1x32xf32>
    %475 = vector.shape_cast %474 : vector<1x1x32xf32> to vector<1x32xf32>
    %c3 = arith.constant 3 : index
    %c0_254 = arith.constant 0 : index
    %c0_255 = arith.constant 0 : index
    %476 = vector.load %arg8[%c3, %c0_254, %c0_255] : memref<10x1x32xf32, #tpu.memory_space<vmem>>, vector<1x1x32xf32>
    %477 = vector.shape_cast %476 : vector<1x1x32xf32> to vector<1x32xf32>
    %cst_256 = arith.constant dense<0.000000e+00> : vector<16xf32>
    %478 = vector.multi_reduction <add>, %473, %cst_256 [1] : vector<16x32xf32> to vector<16xf32>
    %479 = vector.shape_cast %478 : vector<16xf32> to vector<16x1xf32>
    %cst_257 = arith.constant 3.200000e+01 : f32
    %480 = vector.broadcast %cst_257 : f32 to vector<16x1xf32>
    %481 = arith.divf %479, %480 : vector<16x1xf32>
    %482 = vector.broadcast %481 : vector<16x1xf32> to vector<16x32xf32>
    %483 = arith.subf %473, %482 : vector<16x32xf32>
    %484 = arith.mulf %483, %483 : vector<16x32xf32>
    %cst_258 = arith.constant dense<0.000000e+00> : vector<16xf32>
    %485 = vector.multi_reduction <add>, %484, %cst_258 [1] : vector<16x32xf32> to vector<16xf32>
    %486 = vector.shape_cast %485 : vector<16xf32> to vector<16x1xf32>
    %cst_259 = arith.constant 3.200000e+01 : f32
    %487 = vector.broadcast %cst_259 : f32 to vector<16x1xf32>
    %488 = arith.divf %486, %487 : vector<16x1xf32>
    %489 = vector.broadcast %481 : vector<16x1xf32> to vector<16x32xf32>
    %490 = arith.subf %473, %489 : vector<16x32xf32>
    %cst_260 = arith.constant 9.99999974E-6 : f32
    %491 = vector.broadcast %cst_260 : f32 to vector<16x1xf32>
    %492 = arith.addf %488, %491 : vector<16x1xf32>
    %493 = math.rsqrt %492 : vector<16x1xf32>
    %494 = vector.broadcast %493 : vector<16x1xf32> to vector<16x32xf32>
    %495 = arith.mulf %490, %494 : vector<16x32xf32>
    %496 = vector.broadcast %475 : vector<1x32xf32> to vector<16x32xf32>
    %497 = arith.mulf %495, %496 : vector<16x32xf32>
    %498 = vector.broadcast %477 : vector<1x32xf32> to vector<16x32xf32>
    %499 = arith.addf %497, %498 : vector<16x32xf32>
    %c0_261 = arith.constant 0 : index
    %c0_262 = arith.constant 0 : index
    %500 = vector.load %arg25[%c0_261, %c0_262] : memref<4x32xf32, #tpu.memory_space<vmem>>, vector<4x32xf32>
    %cst_263 = arith.constant dense<0.000000e+00> : vector<16x4xf32>
    %501 = tpu.matmul %499, %500, %cst_263 {dimension_numbers = #tpu.dot_dimension_numbers<[1], [1], [0], [0], [0, 0, 1, 0], [], []>} : vector<16x32xf32>, vector<4x32xf32>, vector<16x4xf32> -> vector<16x4xf32>
    %c0_264 = arith.constant 0 : index
    %c0_265 = arith.constant 0 : index
    %502 = vector.load %arg26[%c0_264, %c0_265] : memref<1x4xf32, #tpu.memory_space<vmem>>, vector<1x4xf32>
    %503 = vector.broadcast %502 : vector<1x4xf32> to vector<16x4xf32>
    %504 = arith.addf %501, %503 : vector<16x4xf32>
    %505 = math.tanh %504 : vector<16x4xf32>
    %cst_266 = arith.constant 1.000000e+00 : f32
    %506 = vector.broadcast %cst_266 : f32 to vector<16x4xf32>
    %507 = arith.mulf %505, %506 : vector<16x4xf32>
    %c0_267 = arith.constant 0 : index
    %c0_268 = arith.constant 0 : index
    %508 = vector.load %arg27[%c0_267, %c0_268] : memref<16x4xf32, #tpu.memory_space<vmem>>, vector<16x4xf32>
    tpu.vector_store %arg27[%c0_267, %c0_268], %507 {strides = array<i32>} : memref<16x4xf32, #tpu.memory_space<vmem>>, vector<16x4xf32>,
    return
  }
}

</mosaic_0001>

<llo_original>
// kernel: forward.1
$region0: #{forward.1}
  #allocation0 [shape = 'u32[]', space=smem, size = 0x4, offset = 0x4, fixed_abs, tag = 'smem constant byte address 0x4 - core index']
  #allocation1 [shape = 'u32[144,128]{1,0:T(1,128)}', space=vmem, size = 0x12000, scoped, tag = 'internal scratch']
  #allocation2 [shape = 'f32[64,32]{1,0:T(8,128)}', space=vmem, size = 0x8000, scoped, tag = 'scratch operand']
  %s0 = inlined_call_operand.vmem [shape: f32[16,4], index: 0, kind: input, shape index: {}]
  %s1 = inlined_call_operand.vmem [shape: f32[16,4], index: 1, kind: input, shape index: {}]
  %s2 = inlined_call_operand.vmem [shape: f32[16,1], index: 2, kind: input, shape index: {}]
  %s3 = inlined_call_operand.vmem [shape: f32[16,1], index: 3, kind: input, shape index: {}]
  %s4 = inlined_call_operand.vmem [shape: s32[16,1], index: 4, kind: input, shape index: {}]
  %s5 = inlined_call_operand.vmem [shape: f32[28,32], index: 5, kind: input, shape index: {}]
  %s6 = inlined_call_operand.vmem [shape: f32[32,4], index: 6, kind: input, shape index: {}]
  %s7 = inlined_call_operand.vmem [shape: f32[32,4], index: 7, kind: input, shape index: {}]
  %s8 = inlined_call_operand.vmem [shape: f32[10,1,32], index: 8, kind: input, shape index: {}]
  %s9 = inlined_call_operand.vmem [shape: f32[2,1,32], index: 9, kind: input, shape index: {}]
  %s10 = inlined_call_operand.vmem [shape: f32[2,1,32], index: 10, kind: input, shape index: {}]
  %s11 = inlined_call_operand.vmem [shape: f32[2,32,32], index: 11, kind: input, shape index: {}]
  %s12 = inlined_call_operand.vmem [shape: f32[2,32,32], index: 12, kind: input, shape index: {}]
  %s13 = inlined_call_operand.vmem [shape: f32[2,32,32], index: 13, kind: input, shape index: {}]
  %s14 = inlined_call_operand.vmem [shape: f32[2,1,32], index: 14, kind: input, shape index: {}]
  %s15 = inlined_call_operand.vmem [shape: f32[2,1,32], index: 15, kind: input, shape index: {}]
  %s16 = inlined_call_operand.vmem [shape: f32[2,1,32], index: 16, kind: input, shape index: {}]
  %s17 = inlined_call_operand.vmem [shape: f32[2,32,32], index: 17, kind: input, shape index: {}]
  %s18 = inlined_call_operand.vmem [shape: f32[2,1,32], index: 18, kind: input, shape index: {}]
  %s19 = inlined_call_operand.vmem [shape: f32[2,1,32], index: 19, kind: input, shape index: {}]
  %s20 = inlined_call_operand.vmem [shape: f32[2,1,32], index: 20, kind: input, shape index: {}]
  %s21 = inlined_call_operand.vmem [shape: f32[2,128,32], index: 21, kind: input, shape index: {}]
  %s22 = inlined_call_operand.vmem [shape: f32[2,1,128], index: 22, kind: input, shape index: {}]
  %s23 = inlined_call_operand.vmem [shape: f32[2,32,128], index: 23, kind: input, shape index: {}]
  %s24 = inlined_call_operand.vmem [shape: f32[2,1,32], index: 24, kind: input, shape index: {}]
  %s25 = inlined_call_operand.vmem [shape: f32[4,32], index: 25, kind: input, shape index: {}]
  %s26 = inlined_call_operand.vmem [shape: f32[1,4], index: 26, kind: input, shape index: {}]
  %s27 = inlined_call_operand.vmem [shape: f32[16,4], index: 27, kind: output, shape index: {}]
  %s28 = sld [smem:[#allocation0]]
  $region118: #{forward.1} parent=0
    _
  %s30 = ssub.s32 1, %s28
  %s31 = scalar_select 0, %s30, %s28
  // Predicated region
  $region2: #{forward.1} parent=0 // pred_check
    _
  $region3: #{forward.1} parent=0 // pred_check_branch
    %33 = sbr.rel (0) target = $region5
  $region4: #{forward.1} parent=0 // pred_region
    _
  $region5: #{forward.1} parent=0 // pred_fallthru
    _
  // Predicated region
  $region6: #{forward.1} parent=0 // pred_check
    _
  $region7: #{forward.1} parent=0 // pred_check_branch
    %35 = sbr.rel (0) target = $region9
  $region8: #{forward.1} parent=0 // pred_region
    _
  $region9: #{forward.1} parent=0 // pred_fallthru
    _
  // Predicated region
  $region10: #{forward.1} parent=0 // pred_check
    _
  $region11: #{forward.1} parent=0 // pred_check_branch
    %37 = sbr.rel (0) target = $region13
  $region12: #{forward.1} parent=0 // pred_region
    _
  $region13: #{forward.1} parent=0 // pred_fallthru
    _
  // Predicated region
  $region14: #{forward.1} parent=0 // pred_check
    _
  $region15: #{forward.1} parent=0 // pred_check_branch
    %39 = sbr.rel (0) target = $region17
  $region16: #{forward.1} parent=0 // pred_region
    _
  $region17: #{forward.1} parent=0 // pred_fallthru
    _
  // Predicated region
  $region18: #{forward.1} parent=0 // pred_check
    _
  $region19: #{forward.1} parent=0 // pred_check_branch
    %41 = sbr.rel (0) target = $region21
  $region20: #{forward.1} parent=0 // pred_region
    _
  $region21: #{forward.1} parent=0 // pred_fallthru
    _
  // Predicated region
  $region22: #{forward.1} parent=0 // pred_check
    _
  $region23: #{forward.1} parent=0 // pred_check_branch
    %43 = sbr.rel (0) target = $region25
  $region24: #{forward.1} parent=0 // pred_region
    _
  $region25: #{forward.1} parent=0 // pred_fallthru
    _
  // Predicated region
  $region26: #{forward.1} parent=0 // pred_check
    _
  $region27: #{forward.1} parent=0 // pred_check_branch
    %45 = sbr.rel (0) target = $region29
  $region28: #{forward.1} parent=0 // pred_region
    _
  $region29: #{forward.1} parent=0 // pred_fallthru
    _
  // Predicated region
  $region30: #{forward.1} parent=0 // pred_check
    _
  $region31: #{forward.1} parent=0 // pred_check_branch
    %47 = sbr.rel (0) target = $region33
  $region32: #{forward.1} parent=0 // pred_region
    _
  $region33: #{forward.1} parent=0 // pred_fallthru
    _
  // Predicated region
  $region34: #{forward.1} parent=0 // pred_check
    _
  $region35: #{forward.1} parent=0 // pred_check_branch
    %49 = sbr.rel (0) target = $region37
  $region36: #{forward.1} parent=0 // pred_region
    _
  $region37: #{forward.1} parent=0 // pred_fallthru
    _
  // Predicated region
  $region38: #{forward.1} parent=0 // pred_check
    _
  $region39: #{forward.1} parent=0 // pred_check_branch
    %51 = sbr.rel (0) target = $region41
  $region40: #{forward.1} parent=0 // pred_region
    _
  $region41: #{forward.1} parent=0 // pred_fallthru
    _
  // Predicated region
  $region42: #{forward.1} parent=0 // pred_check
    _
  $region43: #{forward.1} parent=0 // pred_check_branch
    %53 = sbr.rel (0) target = $region45
  $region44: #{forward.1} parent=0 // pred_region
    _
  $region45: #{forward.1} parent=0 // pred_fallthru
    _
  // Predicated region
  $region46: #{forward.1} parent=0 // pred_check
    _
  $region47: #{forward.1} parent=0 // pred_check_branch
    %55 = sbr.rel (0) target = $region49
  $region48: #{forward.1} parent=0 // pred_region
    _
  $region49: #{forward.1} parent=0 // pred_fallthru
    _
  // Predicated region
  $region50: #{forward.1} parent=0 // pred_check
    _
  $region51: #{forward.1} parent=0 // pred_check_branch
    %57 = sbr.rel (0) target = $region53
  $region52: #{forward.1} parent=0 // pred_region
    _
  $region53: #{forward.1} parent=0 // pred_fallthru
    _
  // Predicated region
  $region54: #{forward.1} parent=0 // pred_check
    _
  $region55: #{forward.1} parent=0 // pred_check_branch
    %59 = sbr.rel (0) target = $region57
  $region56: #{forward.1} parent=0 // pred_region
    _
  $region57: #{forward.1} parent=0 // pred_fallthru
    _
  // Predicated region
  $region58: #{forward.1} parent=0 // pred_check
    _
  $region59: #{forward.1} parent=0 // pred_check_branch
    %61 = sbr.rel (0) target = $region61
  $region60: #{forward.1} parent=0 // pred_region
    _
  $region61: #{forward.1} parent=0 // pred_fallthru
    _
  // Predicated region
  $region62: #{forward.1} parent=0 // pred_check
    _
  $region63: #{forward.1} parent=0 // pred_check_branch
    %63 = sbr.rel (0) target = $region65
  $region64: #{forward.1} parent=0 // pred_region
    _
  $region65: #{forward.1} parent=0 // pred_fallthru
    _
  // Predicated region
  $region66: #{forward.1} parent=0 // pred_check
    _
  $region67: #{forward.1} parent=0 // pred_check_branch
    %65 = sbr.rel (0) target = $region69
  $region68: #{forward.1} parent=0 // pred_region
    _
  $region69: #{forward.1} parent=0 // pred_fallthru
    _
  // Predicated region
  $region70: #{forward.1} parent=0 // pred_check
    _
  $region71: #{forward.1} parent=0 // pred_check_branch
    %67 = sbr.rel (0) target = $region73
  $region72: #{forward.1} parent=0 // pred_region
    _
  $region73: #{forward.1} parent=0 // pred_fallthru
    _
  // Predicated region
  $region74: #{forward.1} parent=0 // pred_check
    _
  $region75: #{forward.1} parent=0 // pred_check_branch
    %69 = sbr.rel (0) target = $region77
  $region76: #{forward.1} parent=0 // pred_region
    _
  $region77: #{forward.1} parent=0 // pred_fallthru
    _
  // Predicated region
  $region78: #{forward.1} parent=0 // pred_check
    _
  $region79: #{forward.1} parent=0 // pred_check_branch
    %71 = sbr.rel (0) target = $region81
  $region80: #{forward.1} parent=0 // pred_region
    _
  $region81: #{forward.1} parent=0 // pred_fallthru
    _
  // Predicated region
  $region82: #{forward.1} parent=0 // pred_check
    _
  $region83: #{forward.1} parent=0 // pred_check_branch
    %73 = sbr.rel (0) target = $region85
  $region84: #{forward.1} parent=0 // pred_region
    _
  $region85: #{forward.1} parent=0 // pred_fallthru
    _
  // Predicated region
  $region86: #{forward.1} parent=0 // pred_check
    _
  $region87: #{forward.1} parent=0 // pred_check_branch
    %75 = sbr.rel (0) target = $region89
  $region88: #{forward.1} parent=0 // pred_region
    _
  $region89: #{forward.1} parent=0 // pred_fallthru
    _
  // Predicated region
  $region90: #{forward.1} parent=0 // pred_check
    _
  $region91: #{forward.1} parent=0 // pred_check_branch
    %77 = sbr.rel (0) target = $region93
  $region92: #{forward.1} parent=0 // pred_region
    _
  $region93: #{forward.1} parent=0 // pred_fallthru
    _
  // Predicated region
  $region94: #{forward.1} parent=0 // pred_check
    _
  $region95: #{forward.1} parent=0 // pred_check_branch
    %79 = sbr.rel (0) target = $region97
  $region96: #{forward.1} parent=0 // pred_region
    _
  $region97: #{forward.1} parent=0 // pred_fallthru
    _
  // Predicated region
  $region98: #{forward.1} parent=0 // pred_check
    _
  $region99: #{forward.1} parent=0 // pred_check_branch
    %81 = sbr.rel (0) target = $region101
  $region100: #{forward.1} parent=0 // pred_region
    _
  $region101: #{forward.1} parent=0 // pred_fallthru
    _
  // Predicated region
  $region102: #{forward.1} parent=0 // pred_check
    _
  $region103: #{forward.1} parent=0 // pred_check_branch
    %83 = sbr.rel (0) target = $region105
  $region104: #{forward.1} parent=0 // pred_region
    _
  $region105: #{forward.1} parent=0 // pred_fallthru
    _
  // Predicated region
  $region106: #{forward.1} parent=0 // pred_check
    _
  $region107: #{forward.1} parent=0 // pred_check_branch
    %85 = sbr.rel (0) target = $region109
  $region108: #{forward.1} parent=0 // pred_region
    _
  $region109: #{forward.1} parent=0 // pred_fallthru
    _
  %v86 = vld [vmem:[%s4] sm:$0xff]
  %v87 = vld [vmem:[%s4 + $0x8] sm:$0xff]
  %v88 = vlaneseq
  %v89 = vand.u32 %v88, 127
  %90 = vset.pattern.permute.xlu0 0
  %91 = vperm.xlu0 %90, %v86
  %v92 = vpop.permute.xlu0 %91
  %93 = vset.pattern.permute.xlu0 0
  %94 = vperm.xlu0 %93, %v87
  %v95 = vpop.permute.xlu0 %94
  %vm96 = vcmp.eq.s32.totalorder %v89, %v92
  %vm97 = vcmp.eq.s32.totalorder %v89, %v95
  %v98 = vsel %vm96, 1.0, 0.0
  %v99 = vsel %vm97, 1.0, 0.0
  %v100 = vld [vmem:[%s5] sm:$0xff]
  %v101 = vld [vmem:[%s5 + $0x8] sm:$0xff]
  %v102 = vld [vmem:[%s5 + $0x10] sm:$0xff]
  %v103 = vld [vmem:[%s5 + $0x18] sm:$0xf]
  %vm104 = vcmask 228352
  %v106 = vsel %vm104, %v98, 0
  %v109 = vsel %vm104, %v99, 0
  %vm111 = vcmask 1043456
  %v113 = vsel %vm111, %v103, 0
  %115 = vmatprep.subr.mxu0 0.0
  %116 = vmatpush1.msra.mxu0 0.0
  %117 = vmatprep.subr.mxu0 0.0
  %118 = vmatpush1.msra.mxu0 0.0
  %119 = vmatprep.subr.mxu0 0.0
  %120 = vmatpush1.msra.mxu0 0.0
  %121 = vmatprep.subr.mxu0 0.0
  %122 = vmatpush1.msra.mxu0 0.0
  %123 = vmatprep.subr.mxu0 0.0
  %124 = vmatpush1.msra.mxu0 0.0
  %125 = vmatprep.subr.mxu0 0.0
  %126 = vmatpush1.msra.mxu0 0.0
  %127 = vmatprep.subr.mxu0 0.0
  %128 = vmatpush1.msra.mxu0 0.0
  %129 = vmatprep.subr.mxu0 0.0
  %130 = vmatpush1.msra.mxu0 0.0
  %131 = vmatprep.subr.mxu0 0.0
  %132 = vmatpush1.msra.mxu0 0.0
  %133 = vmatprep.subr.mxu0 0.0
  %134 = vmatpush1.msra.mxu0 0.0
  %135 = vmatprep.subr.mxu0 0.0
  %136 = vmatpush1.msra.mxu0 0.0
  %137 = vmatprep.subr.mxu0 0.0
  %138 = vmatpush1.msra.mxu0 0.0
  %139 = vmatprep.subr.mxu0 0.0
  %140 = vmatpush1.msra.mxu0 %v113
  %141 = vmatprep.subr.mxu0 0.0
  %142 = vmatpush1.msra.mxu0 %v102
  %143 = vmatprep.subr.mxu0 0.0
  %144 = vmatpush1.msra.mxu0 %v101
  %145 = vmatprep.subr.mxu0 0.0
  %146 = vmatpush1.msra.mxu0 %v100
  %147 = vmatprep.subr.mxu0 0.0
  %148 = vmatpush2.msra.mxu0 0.0
  %149 = vmatprep.subr.mxu0 0.0
  %150 = vmatpush2.msra.mxu0 0.0
  %151 = vmatprep.subr.mxu0 0.0
  %152 = vmatpush2.msra.mxu0 0.0
  %153 = vmatprep.subr.mxu0 0.0
  %154 = vmatpush2.msra.mxu0 0.0
  %155 = vmatprep.subr.mxu0 0.0
  %156 = vmatpush2.msra.mxu0 0.0
  %157 = vmatprep.subr.mxu0 0.0
  %158 = vmatpush2.msra.mxu0 0.0
  %159 = vmatprep.subr.mxu0 0.0
  %160 = vmatpush2.msra.mxu0 0.0
  %161 = vmatprep.subr.mxu0 0.0
  %162 = vmatpush2.msra.mxu0 0.0
  %163 = vmatprep.subr.mxu0 0.0
  %164 = vmatpush2.msra.mxu0 0.0
  %165 = vmatprep.subr.mxu0 0.0
  %166 = vmatpush2.msra.mxu0 0.0
  %167 = vmatprep.subr.mxu0 0.0
  %168 = vmatpush2.msra.mxu0 0.0
  %169 = vmatprep.subr.mxu0 0.0
  %170 = vmatpush2.msra.mxu0 0.0
  %171 = vmatprep.subr.mxu0 0.0
  %172 = vmatpush2.msra.mxu0 0.0
  %173 = vmatprep.subr.mxu0 0.0
  %174 = vmatpush2.msra.mxu0 0.0
  %175 = vmatprep.subr.mxu0 0.0
  %176 = vmatpush2.msra.mxu0 0.0
  %177 = vmatprep.subr.mxu0 0.0
  %178 = vmatpush2.msra.mxu0 0.0
  %179 = vmatprep.mubr.f32.mxu0 0.0
  %180 = vmatmul.mubr.f32.gmra.mxu0 %v106
  %v181 = vpop.f32.mrf.mxu0
  %v182 = vadd.f32 0.0, %v181
  %v183 = vpop.f32.mrf.mxu0
  %184 = vmatprep.mubr.f32.mxu0 0.0
  %185 = vmatmul.mubr.f32.gmra.mxu0 %v109
  %v186 = vpop.f32.mrf.mxu0
  %v187 = vadd.f32 0.0, %v186
  %v188 = vpop.f32.mrf.mxu0
  %189 = vdwg.mxu0
  %v190 = vld [vmem:[%s2] sm:$0xff]
  %v191 = vld [vmem:[%s2 + $0x8] sm:$0xff]
  %s192 = scalar_lea.vmem %s8, 8
  %v193 = vld [vmem:[%s192] sm:$0x1]
  %195 = vset.pattern.permute.xlu0 0
  %196 = vperm.xlu0 %195, %v190
  %v197 = vpop.permute.xlu0 %196
  %200 = vset.pattern.permute.xlu0 0
  %201 = vperm.xlu0 %200, %v191
  %v202 = vpop.permute.xlu0 %201
  %v205 = vlaneseq
  %v206 = vshrl.u32 %v205, 7
  %v207 = vsub.s32 0, %v206
  %v208 = vrot.slane %v193, %v207
  %v210 = vmul.f32 %v197, %v208
  %v211 = vmul.f32 %v202, %v208
  %s212 = scalar_lea.vmem %s8, 6
  %v213 = vld [vmem:[%s212] sm:$0x1]
  %v215 = vlaneseq
  %v216 = vshrl.u32 %v215, 7
  %v217 = vsub.s32 0, %v216
  %v218 = vrot.slane %v213, %v217
  %v220 = vadd.f32 %v210, %v218
  %v221 = vadd.f32 %v211, %v218
  %v222 = vadd.f32 %v220, %v182
  %v223 = vadd.f32 %v221, %v187
  %v224 = vld [vmem:[%s0] sm:$0xff]
  %v225 = vld [vmem:[%s0 + $0x8] sm:$0xff]
  %v226 = vld [vmem:[%s6] sm:$0xff]
  %v227 = vld [vmem:[%s6 + $0x8] sm:$0xff]
  %v228 = vld [vmem:[%s6 + $0x10] sm:$0xff]
  %v229 = vld [vmem:[%s6 + $0x18] sm:$0xff]
  %s230 = scalar_lea.vmem %s8, 4
  %v231 = vld [vmem:[%s230] sm:$0x1]
  %v233 = vlaneseq
  %v234 = vshrl.u32 %v233, 7
  %v235 = vsub.s32 0, %v234
  %v236 = vrot.slane %v231, %v235
  %vm238 = vcmask 31744
  %v240 = vsel %vm238, %v224, 0
  %v243 = vsel %vm238, %v225, 0
  %v246 = vsel %vm238, %v226, 0
  %v249 = vsel %vm238, %v227, 0
  %v252 = vsel %vm238, %v228, 0
  %v255 = vsel %vm238, %v229, 0
  %257 = vmatprep.subr.mxu0 0.0
  %258 = vmatpush1.xpose.msra.mxu0 0.0
  %259 = vmatprep.subr.mxu0 0.0
  %260 = vmatpush1.xpose.msra.mxu0 0.0
  %261 = vmatprep.subr.mxu0 0.0
  %262 = vmatpush1.xpose.msra.mxu0 0.0
  %263 = vmatprep.subr.mxu0 0.0
  %264 = vmatpush1.xpose.msra.mxu0 0.0
  %265 = vmatprep.subr.mxu0 0.0
  %266 = vmatpush1.xpose.msra.mxu0 0.0
  %267 = vmatprep.subr.mxu0 0.0
  %268 = vmatpush1.xpose.msra.mxu0 0.0
  %269 = vmatprep.subr.mxu0 0.0
  %270 = vmatpush1.xpose.msra.mxu0 0.0
  %271 = vmatprep.subr.mxu0 0.0
  %272 = vmatpush1.xpose.msra.mxu0 0.0
  %273 = vmatprep.subr.mxu0 0.0
  %274 = vmatpush1.xpose.msra.mxu0 0.0
  %275 = vmatprep.subr.mxu0 0.0
  %276 = vmatpush1.xpose.msra.mxu0 0.0
  %277 = vmatprep.subr.mxu0 0.0
  %278 = vmatpush1.xpose.msra.mxu0 0.0
  %279 = vmatprep.subr.mxu0 0.0
  %280 = vmatpush1.xpose.msra.mxu0 0.0
  %281 = vmatprep.subr.mxu0 0.0
  %282 = vmatpush1.xpose.msra.mxu0 %v255
  %283 = vmatprep.subr.mxu0 0.0
  %284 = vmatpush1.xpose.msra.mxu0 %v252
  %285 = vmatprep.subr.mxu0 0.0
  %286 = vmatpush1.xpose.msra.mxu0 %v249
  %287 = vmatprep.subr.mxu0 0.0
  %288 = vmatpush1.xpose.msra.mxu0 %v246
  %289 = vmatprep.subr.mxu0 0.0
  %290 = vmatpush2.xpose.msra.mxu0 0.0
  %291 = vmatprep.subr.mxu0 0.0
  %292 = vmatpush2.xpose.msra.mxu0 0.0
  %293 = vmatprep.subr.mxu0 0.0
  %294 = vmatpush2.xpose.msra.mxu0 0.0
  %295 = vmatprep.subr.mxu0 0.0
  %296 = vmatpush2.xpose.msra.mxu0 0.0
  %297 = vmatprep.subr.mxu0 0.0
  %298 = vmatpush2.xpose.msra.mxu0 0.0
  %299 = vmatprep.subr.mxu0 0.0
  %300 = vmatpush2.xpose.msra.mxu0 0.0
  %301 = vmatprep.subr.mxu0 0.0
  %302 = vmatpush2.xpose.msra.mxu0 0.0
  %303 = vmatprep.subr.mxu0 0.0
  %304 = vmatpush2.xpose.msra.mxu0 0.0
  %305 = vmatprep.subr.mxu0 0.0
  %306 = vmatpush2.xpose.msra.mxu0 0.0
  %307 = vmatprep.subr.mxu0 0.0
  %308 = vmatpush2.xpose.msra.mxu0 0.0
  %309 = vmatprep.subr.mxu0 0.0
  %310 = vmatpush2.xpose.msra.mxu0 0.0
  %311 = vmatprep.subr.mxu0 0.0
  %312 = vmatpush2.xpose.msra.mxu0 0.0
  %313 = vmatprep.subr.mxu0 0.0
  %314 = vmatpush2.xpose.msra.mxu0 0.0
  %315 = vmatprep.subr.mxu0 0.0
  %316 = vmatpush2.xpose.msra.mxu0 0.0
  %317 = vmatprep.subr.mxu0 0.0
  %318 = vmatpush2.xpose.msra.mxu0 0.0
  %319 = vmatprep.subr.mxu0 0.0
  %320 = vmatpush2.xpose.msra.mxu0 0.0
  %321 = vmatprep.mubr.f32.mxu0 0.0
  %322 = vmatmul.mubr.f32.gmra.mxu0 %v240
  %v323 = vpop.f32.mrf.mxu0
  %v324 = vadd.f32 %v236, %v323
  %v325 = vpop.f32.mrf.mxu0
  %326 = vmatprep.mubr.f32.mxu0 0.0
  %327 = vmatmul.mubr.f32.gmra.mxu0 %v243
  %v328 = vpop.f32.mrf.mxu0
  %v329 = vadd.f32 %v236, %v328
  %v330 = vpop.f32.mrf.mxu0
  %331 = vdwg.mxu0
  %v332 = vadd.f32 %v324, %v182
  %v333 = vadd.f32 %v329, %v187
  %v334 = vld [vmem:[%s1] sm:$0xff]
  %v335 = vld [vmem:[%s1 + $0x8] sm:$0xff]
  %v336 = vld [vmem:[%s7] sm:$0xff]
  %v337 = vld [vmem:[%s7 + $0x8] sm:$0xff]
  %v338 = vld [vmem:[%s7 + $0x10] sm:$0xff]
  %v339 = vld [vmem:[%s7 + $0x18] sm:$0xff]
  %s340 = scalar_lea.vmem %s8, 5
  %v341 = vld [vmem:[%s340] sm:$0x1]
  %v343 = vlaneseq
  %v344 = vshrl.u32 %v343, 7
  %v345 = vsub.s32 0, %v344
  %v346 = vrot.slane %v341, %v345
  %v349 = vsel %vm238, %v334, 0
  %v352 = vsel %vm238, %v335, 0
  %v355 = vsel %vm238, %v336, 0
  %v358 = vsel %vm238, %v337, 0
  %v361 = vsel %vm238, %v338, 0
  %v364 = vsel %vm238, %v339, 0
  %366 = vmatprep.subr.mxu0 0.0
  %367 = vmatpush1.xpose.msra.mxu0 0.0
  %368 = vmatprep.subr.mxu0 0.0
  %369 = vmatpush1.xpose.msra.mxu0 0.0
  %370 = vmatprep.subr.mxu0 0.0
  %371 = vmatpush1.xpose.msra.mxu0 0.0
  %372 = vmatprep.subr.mxu0 0.0
  %373 = vmatpush1.xpose.msra.mxu0 0.0
  %374 = vmatprep.subr.mxu0 0.0
  %375 = vmatpush1.xpose.msra.mxu0 0.0
  %376 = vmatprep.subr.mxu0 0.0
  %377 = vmatpush1.xpose.msra.mxu0 0.0
  %378 = vmatprep.subr.mxu0 0.0
  %379 = vmatpush1.xpose.msra.mxu0 0.0
  %380 = vmatprep.subr.mxu0 0.0
  %381 = vmatpush1.xpose.msra.mxu0 0.0
  %382 = vmatprep.subr.mxu0 0.0
  %383 = vmatpush1.xpose.msra.mxu0 0.0
  %384 = vmatprep.subr.mxu0 0.0
  %385 = vmatpush1.xpose.msra.mxu0 0.0
  %386 = vmatprep.subr.mxu0 0.0
  %387 = vmatpush1.xpose.msra.mxu0 0.0
  %388 = vmatprep.subr.mxu0 0.0
  %389 = vmatpush1.xpose.msra.mxu0 0.0
  %390 = vmatprep.subr.mxu0 0.0
  %391 = vmatpush1.xpose.msra.mxu0 %v364
  %392 = vmatprep.subr.mxu0 0.0
  %393 = vmatpush1.xpose.msra.mxu0 %v361
  %394 = vmatprep.subr.mxu0 0.0
  %395 = vmatpush1.xpose.msra.mxu0 %v358
  %396 = vmatprep.subr.mxu0 0.0
  %397 = vmatpush1.xpose.msra.mxu0 %v355
  %398 = vmatprep.subr.mxu0 0.0
  %399 = vmatpush2.xpose.msra.mxu0 0.0
  %400 = vmatprep.subr.mxu0 0.0
  %401 = vmatpush2.xpose.msra.mxu0 0.0
  %402 = vmatprep.subr.mxu0 0.0
  %403 = vmatpush2.xpose.msra.mxu0 0.0
  %404 = vmatprep.subr.mxu0 0.0
  %405 = vmatpush2.xpose.msra.mxu0 0.0
  %406 = vmatprep.subr.mxu0 0.0
  %407 = vmatpush2.xpose.msra.mxu0 0.0
  %408 = vmatprep.subr.mxu0 0.0
  %409 = vmatpush2.xpose.msra.mxu0 0.0
  %410 = vmatprep.subr.mxu0 0.0
  %411 = vmatpush2.xpose.msra.mxu0 0.0
  %412 = vmatprep.subr.mxu0 0.0
  %413 = vmatpush2.xpose.msra.mxu0 0.0
  %414 = vmatprep.subr.mxu0 0.0
  %415 = vmatpush2.xpose.msra.mxu0 0.0
  %416 = vmatprep.subr.mxu0 0.0
  %417 = vmatpush2.xpose.msra.mxu0 0.0
  %418 = vmatprep.subr.mxu0 0.0
  %419 = vmatpush2.xpose.msra.mxu0 0.0
  %420 = vmatprep.subr.mxu0 0.0
  %421 = vmatpush2.xpose.msra.mxu0 0.0
  %422 = vmatprep.subr.mxu0 0.0
  %423 = vmatpush2.xpose.msra.mxu0 0.0
  %424 = vmatprep.subr.mxu0 0.0
  %425 = vmatpush2.xpose.msra.mxu0 0.0
  %426 = vmatprep.subr.mxu0 0.0
  %427 = vmatpush2.xpose.msra.mxu0 0.0
  %428 = vmatprep.subr.mxu0 0.0
  %429 = vmatpush2.xpose.msra.mxu0 0.0
  %430 = vmatprep.mubr.f32.mxu0 0.0
  %431 = vmatmul.mubr.f32.gmra.mxu0 %v349
  %v432 = vpop.f32.mrf.mxu0
  %v433 = vadd.f32 %v346, %v432
  %v434 = vpop.f32.mrf.mxu0
  %435 = vmatprep.mubr.f32.mxu0 0.0
  %436 = vmatmul.mubr.f32.gmra.mxu0 %v352
  %v437 = vpop.f32.mrf.mxu0
  %v438 = vadd.f32 %v346, %v437
  %v439 = vpop.f32.mrf.mxu0
  %440 = vdwg.mxu0
  %v441 = vadd.f32 %v433, %v182
  %v442 = vadd.f32 %v438, %v187
  %v443 = vld [vmem:[%s3] sm:$0xff]
  %v444 = vld [vmem:[%s3 + $0x8] sm:$0xff]
  %s445 = scalar_lea.vmem %s8, 9
  %v446 = vld [vmem:[%s445] sm:$0x1]
  %448 = vset.pattern.permute.xlu0 0
  %449 = vperm.xlu0 %448, %v443
  %v450 = vpop.permute.xlu0 %449
  %453 = vset.pattern.permute.xlu0 0
  %454 = vperm.xlu0 %453, %v444
  %v455 = vpop.permute.xlu0 %454
  %v458 = vlaneseq
  %v459 = vshrl.u32 %v458, 7
  %v460 = vsub.s32 0, %v459
  %v461 = vrot.slane %v446, %v460
  %v463 = vmul.f32 %v450, %v461
  %v464 = vmul.f32 %v455, %v461
  %s465 = scalar_lea.vmem %s8, 7
  %v466 = vld [vmem:[%s465] sm:$0x1]
  %v468 = vlaneseq
  %v469 = vshrl.u32 %v468, 7
  %v470 = vsub.s32 0, %v469
  %v471 = vrot.slane %v466, %v470
  %v473 = vadd.f32 %v463, %v471
  %v474 = vadd.f32 %v464, %v471
  %vm475 = vcmask 261120
  %476 = vst.msk [vmem:[#allocation2] sm:$0xff] %vm475, %v222
  %477 = vst.msk [vmem:[#allocation2 + $0x8] sm:$0xff] %vm475, %v332
  %478 = vst.msk [vmem:[#allocation2 + $0x10] sm:$0xff] %vm475, %v441
  %479 = vst.msk [vmem:[#allocation2 + $0x18] sm:$0xff] %vm475, %v473
  %480 = vst.msk [vmem:[#allocation2 + $0x20] sm:$0xff] %vm475, %v223
  %481 = vst.msk [vmem:[#allocation2 + $0x28] sm:$0xff] %vm475, %v333
  %482 = vst.msk [vmem:[#allocation2 + $0x30] sm:$0xff] %vm475, %v442
  %483 = vst.msk [vmem:[#allocation2 + $0x38] sm:$0xff] %vm475, %v474
  %v484 = vld [vmem:[#allocation2] sm:$0xff]
  %v485 = vld [vmem:[#allocation2 + $0x8] sm:$0xff]
  %v486 = vld [vmem:[#allocation2 + $0x10] sm:$0xff]
  %v487 = vld [vmem:[#allocation2 + $0x18] sm:$0xff]
  %v488 = vld [vmem:[#allocation2 + $0x20] sm:$0xff]
  %v489 = vld [vmem:[#allocation2 + $0x28] sm:$0xff]
  %v490 = vld [vmem:[#allocation2 + $0x30] sm:$0xff]
  %v491 = vld [vmem:[#allocation2 + $0x38] sm:$0xff]
  %v492 = vld [vmem:[%s8] sm:$0x1]
  %s493 = scalar_lea.vmem %s8, 1
  %v494 = vld [vmem:[%s493] sm:$0x1]
  %v495 = vsel %vm475, %v484, 0.0
  %496 = vadd.xlane.f32.xlu0 %v495
  %v497 = vpop.xlane.xlu0 %496
  %v498 = vsel %vm475, %v485, 0.0
  %499 = vadd.xlane.f32.xlu0 %v498
  %v500 = vpop.xlane.xlu0 %499
  %v501 = vsel %vm475, %v486, 0.0
  %502 = vadd.xlane.f32.xlu0 %v501
  %v503 = vpop.xlane.xlu0 %502
  %v504 = vsel %vm475, %v487, 0.0
  %505 = vadd.xlane.f32.xlu0 %v504
  %v506 = vpop.xlane.xlu0 %505
  %v507 = vsel %vm475, %v488, 0.0
  %508 = vadd.xlane.f32.xlu0 %v507
  %v509 = vpop.xlane.xlu0 %508
  %v510 = vsel %vm475, %v489, 0.0
  %511 = vadd.xlane.f32.xlu0 %v510
  %v512 = vpop.xlane.xlu0 %511
  %v513 = vsel %vm475, %v490, 0.0
  %514 = vadd.xlane.f32.xlu0 %v513
  %v515 = vpop.xlane.xlu0 %514
  %v516 = vsel %vm475, %v491, 0.0
  %517 = vadd.xlane.f32.xlu0 %v516
  %v518 = vpop.xlane.xlu0 %517
  %v519 = vrcp.pop 32.0
  %v520 = vmul.f32 %v497, %v519
  %v521 = vmul.f32 %v500, %v519
  %v522 = vmul.f32 %v503, %v519
  %v523 = vmul.f32 %v506, %v519
  %v524 = vmul.f32 %v509, %v519
  %v525 = vmul.f32 %v512, %v519
  %v526 = vmul.f32 %v515, %v519
  %v527 = vmul.f32 %v518, %v519
  %v528 = vsub.f32 %v484, %v520
  %v529 = vsub.f32 %v485, %v521
  %v530 = vsub.f32 %v486, %v522
  %v531 = vsub.f32 %v487, %v523
  %v532 = vsub.f32 %v488, %v524
  %v533 = vsub.f32 %v489, %v525
  %v534 = vsub.f32 %v490, %v526
  %v535 = vsub.f32 %v491, %v527
  %v536 = vmul.f32 %v528, %v528
  %v537 = vmul.f32 %v529, %v529
  %v538 = vmul.f32 %v530, %v530
  %v539 = vmul.f32 %v531, %v531
  %v540 = vmul.f32 %v532, %v532
  %v541 = vmul.f32 %v533, %v533
  %v542 = vmul.f32 %v534, %v534
  %v543 = vmul.f32 %v535, %v535
  %v544 = vsel %vm475, %v536, 0.0
  %545 = vadd.xlane.f32.xlu0 %v544
  %v546 = vpop.xlane.xlu0 %545
  %v547 = vsel %vm475, %v537, 0.0
  %548 = vadd.xlane.f32.xlu0 %v547
  %v549 = vpop.xlane.xlu0 %548
  %v550 = vsel %vm475, %v538, 0.0
  %551 = vadd.xlane.f32.xlu0 %v550
  %v552 = vpop.xlane.xlu0 %551
  %v553 = vsel %vm475, %v539, 0.0
  %554 = vadd.xlane.f32.xlu0 %v553
  %v555 = vpop.xlane.xlu0 %554
  %v556 = vsel %vm475, %v540, 0.0
  %557 = vadd.xlane.f32.xlu0 %v556
  %v558 = vpop.xlane.xlu0 %557
  %v559 = vsel %vm475, %v541, 0.0
  %560 = vadd.xlane.f32.xlu0 %v559
  %v561 = vpop.xlane.xlu0 %560
  %v562 = vsel %vm475, %v542, 0.0
  %563 = vadd.xlane.f32.xlu0 %v562
  %v564 = vpop.xlane.xlu0 %563
  %v565 = vsel %vm475, %v543, 0.0
  %566 = vadd.xlane.f32.xlu0 %v565
  %v567 = vpop.xlane.xlu0 %566
  %v568 = vmul.f32 %v546, %v519
  %v569 = vmul.f32 %v549, %v519
  %v570 = vmul.f32 %v552, %v519
  %v571 = vmul.f32 %v555, %v519
  %v572 = vmul.f32 %v558, %v519
  %v573 = vmul.f32 %v561, %v519
  %v574 = vmul.f32 %v564, %v519
  %v575 = vmul.f32 %v567, %v519
  %v576 = vadd.f32 %v568, 1e-05
  %v577 = vadd.f32 %v569, 1e-05
  %v578 = vadd.f32 %v570, 1e-05
  %v579 = vadd.f32 %v571, 1e-05
  %v580 = vadd.f32 %v572, 1e-05
  %v581 = vadd.f32 %v573, 1e-05
  %v582 = vadd.f32 %v574, 1e-05
  %v583 = vadd.f32 %v575, 1e-05
  %v584 = vrsqrt.pop %v576
  %v585 = vrsqrt.pop %v577
  %v586 = vrsqrt.pop %v578
  %v587 = vrsqrt.pop %v579
  %v588 = vrsqrt.pop %v580
  %v589 = vrsqrt.pop %v581
  %v590 = vrsqrt.pop %v582
  %v591 = vrsqrt.pop %v583
  %v592 = vmul.f32 %v528, %v584
  %v593 = vmul.f32 %v529, %v585
  %v594 = vmul.f32 %v530, %v586
  %v595 = vmul.f32 %v531, %v587
  %v596 = vmul.f32 %v532, %v588
  %v597 = vmul.f32 %v533, %v589
  %v598 = vmul.f32 %v534, %v590
  %v599 = vmul.f32 %v535, %v591
  %v601 = vlaneseq
  %v602 = vshrl.u32 %v601, 7
  %v603 = vsub.s32 0, %v602
  %v604 = vrot.slane %v492, %v603
  %v606 = vmul.f32 %v592, %v604
  %v607 = vmul.f32 %v593, %v604
  %v608 = vmul.f32 %v594, %v604
  %v609 = vmul.f32 %v595, %v604
  %v610 = vmul.f32 %v596, %v604
  %v611 = vmul.f32 %v597, %v604
  %v612 = vmul.f32 %v598, %v604
  %v613 = vmul.f32 %v599, %v604
  %v615 = vlaneseq
  %v616 = vshrl.u32 %v615, 7
  %v617 = vsub.s32 0, %v616
  %v618 = vrot.slane %v494, %v617
  %v620 = vadd.f32 %v606, %v618
  %v621 = vadd.f32 %v607, %v618
  %v622 = vadd.f32 %v608, %v618
  %v623 = vadd.f32 %v609, %v618
  %v624 = vadd.f32 %v610, %v618
  %v625 = vadd.f32 %v611, %v618
  %v626 = vadd.f32 %v612, %v618
  %v627 = vadd.f32 %v613, %v618
  %v628 = vlaneseq
  %v629 = vshrl.u32 %v628, 7
  %v630 = vadd.s32 %v629, 8
  %v631 = vadd.s32 %v629, 16
  %v632 = vadd.s32 %v629, 24
  %v633 = vshrl.u32 %v629, 3
  %v634 = vshrl.u32 %v630, 3
  %v635 = vshrl.u32 %v631, 3
  %v636 = vshrl.u32 %v632, 3
  %v637 = vand.u32 %v629, 7
  %v638 = vand.u32 %v630, 7
  %v639 = vand.u32 %v631, 7
  %v640 = vand.u32 %v632, 7
  %v641 = vshrl.u32 %v89, 3
  %v642 = vand.u32 %v89, 7
  %v643 = vmul.u32 %v637, 4
  %v644 = vmul.u32 %v638, 4
  %v645 = vmul.u32 %v639, 4
  %v646 = vmul.u32 %v640, 4
  %v647 = vadd.s32 %v643, %v633
  %v648 = vadd.s32 %v644, %v634
  %v649 = vadd.s32 %v645, %v635
  %v650 = vadd.s32 %v646, %v636
  %v651 = vmul.u32 %v642, 4
  %v652 = vadd.s32 %v651, %v641
  %vm653 = vcmp.le.s32.totalorder %v652, %v647
  %vm654 = vcmp.le.s32.totalorder %v652, %v648
  %vm655 = vcmp.le.s32.totalorder %v652, %v649
  %vm656 = vcmp.le.s32.totalorder %v652, %v650
  %v657 = vsel %vm653, 0.0, -1e+30
  %v658 = vsel %vm654, 0.0, -1e+30
  %v659 = vsel %vm655, 0.0, -1e+30
  %v660 = vsel %vm656, 0.0, -1e+30
  %v661 = vld [vmem:[%s9] sm:$0x1]
  %v662 = vld [vmem:[%s10] sm:$0x1]
  %v663 = vsel %vm475, %v620, 0.0
  %664 = vadd.xlane.f32.xlu0 %v663
  %v665 = vpop.xlane.xlu0 %664
  %v666 = vsel %vm475, %v621, 0.0
  %667 = vadd.xlane.f32.xlu0 %v666
  %v668 = vpop.xlane.xlu0 %667
  %v669 = vsel %vm475, %v622, 0.0
  %670 = vadd.xlane.f32.xlu0 %v669
  %v671 = vpop.xlane.xlu0 %670
  %v672 = vsel %vm475, %v623, 0.0
  %673 = vadd.xlane.f32.xlu0 %v672
  %v674 = vpop.xlane.xlu0 %673
  %v675 = vsel %vm475, %v624, 0.0
  %676 = vadd.xlane.f32.xlu0 %v675
  %v677 = vpop.xlane.xlu0 %676
  %v678 = vsel %vm475, %v625, 0.0
  %679 = vadd.xlane.f32.xlu0 %v678
  %v680 = vpop.xlane.xlu0 %679
  %v681 = vsel %vm475, %v626, 0.0
  %682 = vadd.xlane.f32.xlu0 %v681
  %v683 = vpop.xlane.xlu0 %682
  %v684 = vsel %vm475, %v627, 0.0
  %685 = vadd.xlane.f32.xlu0 %v684
  %v686 = vpop.xlane.xlu0 %685
  %v687 = vmul.f32 %v665, %v519
  %v688 = vmul.f32 %v668, %v519
  %v689 = vmul.f32 %v671, %v519
  %v690 = vmul.f32 %v674, %v519
  %v691 = vmul.f32 %v677, %v519
  %v692 = vmul.f32 %v680, %v519
  %v693 = vmul.f32 %v683, %v519
  %v694 = vmul.f32 %v686, %v519
  %v695 = vsub.f32 %v620, %v687
  %v696 = vsub.f32 %v621, %v688
  %v697 = vsub.f32 %v622, %v689
  %v698 = vsub.f32 %v623, %v690
  %v699 = vsub.f32 %v624, %v691
  %v700 = vsub.f32 %v625, %v692
  %v701 = vsub.f32 %v626, %v693
  %v702 = vsub.f32 %v627, %v694
  %v703 = vmul.f32 %v695, %v695
  %v704 = vmul.f32 %v696, %v696
  %v705 = vmul.f32 %v697, %v697
  %v706 = vmul.f32 %v698, %v698
  %v707 = vmul.f32 %v699, %v699
  %v708 = vmul.f32 %v700, %v700
  %v709 = vmul.f32 %v701, %v701
  %v710 = vmul.f32 %v702, %v702
  %v711 = vsel %vm475, %v703, 0.0
  %712 = vadd.xlane.f32.xlu0 %v711
  %v713 = vpop.xlane.xlu0 %712
  %v714 = vsel %vm475, %v704, 0.0
  %715 = vadd.xlane.f32.xlu0 %v714
  %v716 = vpop.xlane.xlu0 %715
  %v717 = vsel %vm475, %v705, 0.0
  %718 = vadd.xlane.f32.xlu0 %v717
  %v719 = vpop.xlane.xlu0 %718
  %v720 = vsel %vm475, %v706, 0.0
  %721 = vadd.xlane.f32.xlu0 %v720
  %v722 = vpop.xlane.xlu0 %721
  %v723 = vsel %vm475, %v707, 0.0
  %724 = vadd.xlane.f32.xlu0 %v723
  %v725 = vpop.xlane.xlu0 %724
  %v726 = vsel %vm475, %v708, 0.0
  %727 = vadd.xlane.f32.xlu0 %v726
  %v728 = vpop.xlane.xlu0 %727
  %v729 = vsel %vm475, %v709, 0.0
  %730 = vadd.xlane.f32.xlu0 %v729
  %v731 = vpop.xlane.xlu0 %730
  %v732 = vsel %vm475, %v710, 0.0
  %733 = vadd.xlane.f32.xlu0 %v732
  %v734 = vpop.xlane.xlu0 %733
  %v735 = vmul.f32 %v713, %v519
  %v736 = vmul.f32 %v716, %v519
  %v737 = vmul.f32 %v719, %v519
  %v738 = vmul.f32 %v722, %v519
  %v739 = vmul.f32 %v725, %v519
  %v740 = vmul.f32 %v728, %v519
  %v741 = vmul.f32 %v731, %v519
  %v742 = vmul.f32 %v734, %v519
  %v743 = vadd.f32 %v735, 1e-05
  %v744 = vadd.f32 %v736, 1e-05
  %v745 = vadd.f32 %v737, 1e-05
  %v746 = vadd.f32 %v738, 1e-05
  %v747 = vadd.f32 %v739, 1e-05
  %v748 = vadd.f32 %v740, 1e-05
  %v749 = vadd.f32 %v741, 1e-05
  %v750 = vadd.f32 %v742, 1e-05
  %v751 = vrsqrt.pop %v743
  %v752 = vrsqrt.pop %v744
  %v753 = vrsqrt.pop %v745
  %v754 = vrsqrt.pop %v746
  %v755 = vrsqrt.pop %v747
  %v756 = vrsqrt.pop %v748
  %v757 = vrsqrt.pop %v749
  %v758 = vrsqrt.pop %v750
  %v759 = vmul.f32 %v695, %v751
  %v760 = vmul.f32 %v696, %v752
  %v761 = vmul.f32 %v697, %v753
  %v762 = vmul.f32 %v698, %v754
  %v763 = vmul.f32 %v699, %v755
  %v764 = vmul.f32 %v700, %v756
  %v765 = vmul.f32 %v701, %v757
  %v766 = vmul.f32 %v702, %v758
  %v768 = vlaneseq
  %v769 = vshrl.u32 %v768, 7
  %v770 = vsub.s32 0, %v769
  %v771 = vrot.slane %v661, %v770
  %v773 = vmul.f32 %v759, %v771
  %v774 = vmul.f32 %v760, %v771
  %v775 = vmul.f32 %v761, %v771
  %v776 = vmul.f32 %v762, %v771
  %v777 = vmul.f32 %v763, %v771
  %v778 = vmul.f32 %v764, %v771
  %v779 = vmul.f32 %v765, %v771
  %v780 = vmul.f32 %v766, %v771
  %v782 = vlaneseq
  %v783 = vshrl.u32 %v782, 7
  %v784 = vsub.s32 0, %v783
  %v785 = vrot.slane %v662, %v784
  %v787 = vadd.f32 %v773, %v785
  %v788 = vadd.f32 %v774, %v785
  %v789 = vadd.f32 %v775, %v785
  %v790 = vadd.f32 %v776, %v785
  %v791 = vadd.f32 %v777, %v785
  %v792 = vadd.f32 %v778, %v785
  %v793 = vadd.f32 %v779, %v785
  %v794 = vadd.f32 %v780, %v785
  %v795 = vld [vmem:[%s11] sm:$0xff]
  %v796 = vld [vmem:[%s11 + $0x8] sm:$0xff]
  %v797 = vld [vmem:[%s11 + $0x10] sm:$0xff]
  %v798 = vld [vmem:[%s11 + $0x18] sm:$0xff]
  %v799 = vld [vmem:[%s14] sm:$0x1]
  %v801 = vlaneseq
  %v802 = vshrl.u32 %v801, 7
  %v803 = vsub.s32 0, %v802
  %v804 = vrot.slane %v799, %v803
  %v807 = vsel %vm475, %v787, 0
  %v810 = vsel %vm475, %v788, 0
  %v813 = vsel %vm475, %v789, 0
  %v816 = vsel %vm475, %v790, 0
  %v819 = vsel %vm475, %v791, 0
  %v822 = vsel %vm475, %v792, 0
  %v825 = vsel %vm475, %v793, 0
  %v828 = vsel %vm475, %v794, 0
  %v831 = vsel %vm475, %v795, 0
  %v834 = vsel %vm475, %v796, 0
  %v837 = vsel %vm475, %v797, 0
  %v840 = vsel %vm475, %v798, 0
  %842 = vmatprep.subr.mxu0 0.0
  %843 = vmatpush1.xpose.msra.mxu0 0.0
  %844 = vmatprep.subr.mxu0 0.0
  %845 = vmatpush1.xpose.msra.mxu0 0.0
  %846 = vmatprep.subr.mxu0 0.0
  %847 = vmatpush1.xpose.msra.mxu0 0.0
  %848 = vmatprep.subr.mxu0 0.0
  %849 = vmatpush1.xpose.msra.mxu0 0.0
  %850 = vmatprep.subr.mxu0 0.0
  %851 = vmatpush1.xpose.msra.mxu0 0.0
  %852 = vmatprep.subr.mxu0 0.0
  %853 = vmatpush1.xpose.msra.mxu0 0.0
  %854 = vmatprep.subr.mxu0 0.0
  %855 = vmatpush1.xpose.msra.mxu0 0.0
  %856 = vmatprep.subr.mxu0 0.0
  %857 = vmatpush1.xpose.msra.mxu0 0.0
  %858 = vmatprep.subr.mxu0 0.0
  %859 = vmatpush1.xpose.msra.mxu0 0.0
  %860 = vmatprep.subr.mxu0 0.0
  %861 = vmatpush1.xpose.msra.mxu0 0.0
  %862 = vmatprep.subr.mxu0 0.0
  %863 = vmatpush1.xpose.msra.mxu0 0.0
  %864 = vmatprep.subr.mxu0 0.0
  %865 = vmatpush1.xpose.msra.mxu0 0.0
  %866 = vmatprep.subr.mxu0 0.0
  %867 = vmatpush1.xpose.msra.mxu0 %v840
  %868 = vmatprep.subr.mxu0 0.0
  %869 = vmatpush1.xpose.msra.mxu0 %v837
  %870 = vmatprep.subr.mxu0 0.0
  %871 = vmatpush1.xpose.msra.mxu0 %v834
  %872 = vmatprep.subr.mxu0 0.0
  %873 = vmatpush1.xpose.msra.mxu0 %v831
  %874 = vmatprep.subr.mxu0 0.0
  %875 = vmatpush2.xpose.msra.mxu0 0.0
  %876 = vmatprep.subr.mxu0 0.0
  %877 = vmatpush2.xpose.msra.mxu0 0.0
  %878 = vmatprep.subr.mxu0 0.0
  %879 = vmatpush2.xpose.msra.mxu0 0.0
  %880 = vmatprep.subr.mxu0 0.0
  %881 = vmatpush2.xpose.msra.mxu0 0.0
  %882 = vmatprep.subr.mxu0 0.0
  %883 = vmatpush2.xpose.msra.mxu0 0.0
  %884 = vmatprep.subr.mxu0 0.0
  %885 = vmatpush2.xpose.msra.mxu0 0.0
  %886 = vmatprep.subr.mxu0 0.0
  %887 = vmatpush2.xpose.msra.mxu0 0.0
  %888 = vmatprep.subr.mxu0 0.0
  %889 = vmatpush2.xpose.msra.mxu0 0.0
  %890 = vmatprep.subr.mxu0 0.0
  %891 = vmatpush2.xpose.msra.mxu0 0.0
  %892 = vmatprep.subr.mxu0 0.0
  %893 = vmatpush2.xpose.msra.mxu0 0.0
  %894 = vmatprep.subr.mxu0 0.0
  %895 = vmatpush2.xpose.msra.mxu0 0.0
  %896 = vmatprep.subr.mxu0 0.0
  %897 = vmatpush2.xpose.msra.mxu0 0.0
  %898 = vmatprep.subr.mxu0 0.0
  %899 = vmatpush2.xpose.msra.mxu0 0.0
  %900 = vmatprep.subr.mxu0 0.0
  %901 = vmatpush2.xpose.msra.mxu0 0.0
  %902 = vmatprep.subr.mxu0 0.0
  %903 = vmatpush2.xpose.msra.mxu0 0.0
  %904 = vmatprep.subr.mxu0 0.0
  %905 = vmatpush2.xpose.msra.mxu0 0.0
  %906 = vmatprep.mubr.f32.mxu0 0.0
  %907 = vmatmul.mubr.f32.gmra.mxu0 %v807
  %v908 = vpop.f32.mrf.mxu0
  %v909 = vadd.f32 %v804, %v908
  %v910 = vpop.f32.mrf.mxu0
  %911 = vmatprep.mubr.f32.mxu0 0.0
  %912 = vmatmul.mubr.f32.gmra.mxu0 %v810
  %v913 = vpop.f32.mrf.mxu0
  %v914 = vadd.f32 %v804, %v913
  %v915 = vpop.f32.mrf.mxu0
  %916 = vmatprep.mubr.f32.mxu0 0.0
  %917 = vmatmul.mubr.f32.gmra.mxu0 %v813
  %v918 = vpop.f32.mrf.mxu0
  %v919 = vadd.f32 %v804, %v918
  %v920 = vpop.f32.mrf.mxu0
  %921 = vmatprep.mubr.f32.mxu0 0.0
  %922 = vmatmul.mubr.f32.gmra.mxu0 %v816
  %v923 = vpop.f32.mrf.mxu0
  %v924 = vadd.f32 %v804, %v923
  %v925 = vpop.f32.mrf.mxu0
  %926 = vmatprep.mubr.f32.mxu0 0.0
  %927 = vmatmul.mubr.f32.gmra.mxu0 %v819
  %v928 = vpop.f32.mrf.mxu0
  %v929 = vadd.f32 %v804, %v928
  %v930 = vpop.f32.mrf.mxu0
  %931 = vmatprep.mubr.f32.mxu0 0.0
  %932 = vmatmul.mubr.f32.gmra.mxu0 %v822
  %v933 = vpop.f32.mrf.mxu0
  %v934 = vadd.f32 %v804, %v933
  %v935 = vpop.f32.mrf.mxu0
  %936 = vmatprep.mubr.f32.mxu0 0.0
  %937 = vmatmul.mubr.f32.gmra.mxu0 %v825
  %v938 = vpop.f32.mrf.mxu0
  %v939 = vadd.f32 %v804, %v938
  %v940 = vpop.f32.mrf.mxu0
  %941 = vmatprep.mubr.f32.mxu0 0.0
  %942 = vmatmul.mubr.f32.gmra.mxu0 %v828
  %v943 = vpop.f32.mrf.mxu0
  %v944 = vadd.f32 %v804, %v943
  %v945 = vpop.f32.mrf.mxu0
  %946 = vdwg.mxu0
  %v947 = vld [vmem:[%s12] sm:$0xff]
  %v948 = vld [vmem:[%s12 + $0x8] sm:$0xff]
  %v949 = vld [vmem:[%s12 + $0x10] sm:$0xff]
  %v950 = vld [vmem:[%s12 + $0x18] sm:$0xff]
  %v951 = vld [vmem:[%s15] sm:$0x1]
  %v953 = vlaneseq
  %v954 = vshrl.u32 %v953, 7
  %v955 = vsub.s32 0, %v954
  %v956 = vrot.slane %v951, %v955
  %v959 = vsel %vm475, %v947, 0
  %v962 = vsel %vm475, %v948, 0
  %v965 = vsel %vm475, %v949, 0
  %v968 = vsel %vm475, %v950, 0
  %970 = vmatprep.subr.mxu0 0.0
  %971 = vmatpush1.xpose.msra.mxu0 0.0
  %972 = vmatprep.subr.mxu0 0.0
  %973 = vmatpush1.xpose.msra.mxu0 0.0
  %974 = vmatprep.subr.mxu0 0.0
  %975 = vmatpush1.xpose.msra.mxu0 0.0
  %976 = vmatprep.subr.mxu0 0.0
  %977 = vmatpush1.xpose.msra.mxu0 0.0
  %978 = vmatprep.subr.mxu0 0.0
  %979 = vmatpush1.xpose.msra.mxu0 0.0
  %980 = vmatprep.subr.mxu0 0.0
  %981 = vmatpush1.xpose.msra.mxu0 0.0
  %982 = vmatprep.subr.mxu0 0.0
  %983 = vmatpush1.xpose.msra.mxu0 0.0
  %984 = vmatprep.subr.mxu0 0.0
  %985 = vmatpush1.xpose.msra.mxu0 0.0
  %986 = vmatprep.subr.mxu0 0.0
  %987 = vmatpush1.xpose.msra.mxu0 0.0
  %988 = vmatprep.subr.mxu0 0.0
  %989 = vmatpush1.xpose.msra.mxu0 0.0
  %990 = vmatprep.subr.mxu0 0.0
  %991 = vmatpush1.xpose.msra.mxu0 0.0
  %992 = vmatprep.subr.mxu0 0.0
  %993 = vmatpush1.xpose.msra.mxu0 0.0
  %994 = vmatprep.subr.mxu0 0.0
  %995 = vmatpush1.xpose.msra.mxu0 %v968
  %996 = vmatprep.subr.mxu0 0.0
  %997 = vmatpush1.xpose.msra.mxu0 %v965
  %998 = vmatprep.subr.mxu0 0.0
  %999 = vmatpush1.xpose.msra.mxu0 %v962
  %1000 = vmatprep.subr.mxu0 0.0
  %1001 = vmatpush1.xpose.msra.mxu0 %v959
  %1002 = vmatprep.subr.mxu0 0.0
  %1003 = vmatpush2.xpose.msra.mxu0 0.0
  %1004 = vmatprep.subr.mxu0 0.0
  %1005 = vmatpush2.xpose.msra.mxu0 0.0
  %1006 = vmatprep.subr.mxu0 0.0
  %1007 = vmatpush2.xpose.msra.mxu0 0.0
  %1008 = vmatprep.subr.mxu0 0.0
  %1009 = vmatpush2.xpose.msra.mxu0 0.0
  %1010 = vmatprep.subr.mxu0 0.0
  %1011 = vmatpush2.xpose.msra.mxu0 0.0
  %1012 = vmatprep.subr.mxu0 0.0
  %1013 = vmatpush2.xpose.msra.mxu0 0.0
  %1014 = vmatprep.subr.mxu0 0.0
  %1015 = vmatpush2.xpose.msra.mxu0 0.0
  %1016 = vmatprep.subr.mxu0 0.0
  %1017 = vmatpush2.xpose.msra.mxu0 0.0
  %1018 = vmatprep.subr.mxu0 0.0
  %1019 = vmatpush2.xpose.msra.mxu0 0.0
  %1020 = vmatprep.subr.mxu0 0.0
  %1021 = vmatpush2.xpose.msra.mxu0 0.0
  %1022 = vmatprep.subr.mxu0 0.0
  %1023 = vmatpush2.xpose.msra.mxu0 0.0
  %1024 = vmatprep.subr.mxu0 0.0
  %1025 = vmatpush2.xpose.msra.mxu0 0.0
  %1026 = vmatprep.subr.mxu0 0.0
  %1027 = vmatpush2.xpose.msra.mxu0 0.0
  %1028 = vmatprep.subr.mxu0 0.0
  %1029 = vmatpush2.xpose.msra.mxu0 0.0
  %1030 = vmatprep.subr.mxu0 0.0
  %1031 = vmatpush2.xpose.msra.mxu0 0.0
  %1032 = vmatprep.subr.mxu0 0.0
  %1033 = vmatpush2.xpose.msra.mxu0 0.0
  %1034 = vmatprep.mubr.f32.mxu0 0.0
  %1035 = vmatmul.mubr.f32.gmra.mxu0 %v807
  %v1036 = vpop.f32.mrf.mxu0
  %v1037 = vadd.f32 %v956, %v1036
  %v1038 = vpop.f32.mrf.mxu0
  %1039 = vmatprep.mubr.f32.mxu0 0.0
  %1040 = vmatmul.mubr.f32.gmra.mxu0 %v810
  %v1041 = vpop.f32.mrf.mxu0
  %v1042 = vadd.f32 %v956, %v1041
  %v1043 = vpop.f32.mrf.mxu0
  %1044 = vmatprep.mubr.f32.mxu0 0.0
  %1045 = vmatmul.mubr.f32.gmra.mxu0 %v813
  %v1046 = vpop.f32.mrf.mxu0
  %v1047 = vadd.f32 %v956, %v1046
  %v1048 = vpop.f32.mrf.mxu0
  %1049 = vmatprep.mubr.f32.mxu0 0.0
  %1050 = vmatmul.mubr.f32.gmra.mxu0 %v816
  %v1051 = vpop.f32.mrf.mxu0
  %v1052 = vadd.f32 %v956, %v1051
  %v1053 = vpop.f32.mrf.mxu0
  %1054 = vmatprep.mubr.f32.mxu0 0.0
  %1055 = vmatmul.mubr.f32.gmra.mxu0 %v819
  %v1056 = vpop.f32.mrf.mxu0
  %v1057 = vadd.f32 %v956, %v1056
  %v1058 = vpop.f32.mrf.mxu0
  %1059 = vmatprep.mubr.f32.mxu0 0.0
  %1060 = vmatmul.mubr.f32.gmra.mxu0 %v822
  %v1061 = vpop.f32.mrf.mxu0
  %v1062 = vadd.f32 %v956, %v1061
  %v1063 = vpop.f32.mrf.mxu0
  %1064 = vmatprep.mubr.f32.mxu0 0.0
  %1065 = vmatmul.mubr.f32.gmra.mxu0 %v825
  %v1066 = vpop.f32.mrf.mxu0
  %v1067 = vadd.f32 %v956, %v1066
  %v1068 = vpop.f32.mrf.mxu0
  %1069 = vmatprep.mubr.f32.mxu0 0.0
  %1070 = vmatmul.mubr.f32.gmra.mxu0 %v828
  %v1071 = vpop.f32.mrf.mxu0
  %v1072 = vadd.f32 %v956, %v1071
  %v1073 = vpop.f32.mrf.mxu0
  %1074 = vdwg.mxu0
  %v1075 = vld [vmem:[%s13] sm:$0xff]
  %v1076 = vld [vmem:[%s13 + $0x8] sm:$0xff]
  %v1077 = vld [vmem:[%s13 + $0x10] sm:$0xff]
  %v1078 = vld [vmem:[%s13 + $0x18] sm:$0xff]
  %v1079 = vld [vmem:[%s16] sm:$0x1]
  %v1081 = vlaneseq
  %v1082 = vshrl.u32 %v1081, 7
  %v1083 = vsub.s32 0, %v1082
  %v1084 = vrot.slane %v1079, %v1083
  %v1087 = vsel %vm475, %v1075, 0
  %v1090 = vsel %vm475, %v1076, 0
  %v1093 = vsel %vm475, %v1077, 0
  %v1096 = vsel %vm475, %v1078, 0
  %1098 = vmatprep.subr.mxu0 0.0
  %1099 = vmatpush1.xpose.msra.mxu0 0.0
  %1100 = vmatprep.subr.mxu0 0.0
  %1101 = vmatpush1.xpose.msra.mxu0 0.0
  %1102 = vmatprep.subr.mxu0 0.0
  %1103 = vmatpush1.xpose.msra.mxu0 0.0
  %1104 = vmatprep.subr.mxu0 0.0
  %1105 = vmatpush1.xpose.msra.mxu0 0.0
  %1106 = vmatprep.subr.mxu0 0.0
  %1107 = vmatpush1.xpose.msra.mxu0 0.0
  %1108 = vmatprep.subr.mxu0 0.0
  %1109 = vmatpush1.xpose.msra.mxu0 0.0
  %1110 = vmatprep.subr.mxu0 0.0
  %1111 = vmatpush1.xpose.msra.mxu0 0.0
  %1112 = vmatprep.subr.mxu0 0.0
  %1113 = vmatpush1.xpose.msra.mxu0 0.0
  %1114 = vmatprep.subr.mxu0 0.0
  %1115 = vmatpush1.xpose.msra.mxu0 0.0
  %1116 = vmatprep.subr.mxu0 0.0
  %1117 = vmatpush1.xpose.msra.mxu0 0.0
  %1118 = vmatprep.subr.mxu0 0.0
  %1119 = vmatpush1.xpose.msra.mxu0 0.0
  %1120 = vmatprep.subr.mxu0 0.0
  %1121 = vmatpush1.xpose.msra.mxu0 0.0
  %1122 = vmatprep.subr.mxu0 0.0
  %1123 = vmatpush1.xpose.msra.mxu0 %v1096
  %1124 = vmatprep.subr.mxu0 0.0
  %1125 = vmatpush1.xpose.msra.mxu0 %v1093
  %1126 = vmatprep.subr.mxu0 0.0
  %1127 = vmatpush1.xpose.msra.mxu0 %v1090
  %1128 = vmatprep.subr.mxu0 0.0
  %1129 = vmatpush1.xpose.msra.mxu0 %v1087
  %1130 = vmatprep.subr.mxu0 0.0
  %1131 = vmatpush2.xpose.msra.mxu0 0.0
  %1132 = vmatprep.subr.mxu0 0.0
  %1133 = vmatpush2.xpose.msra.mxu0 0.0
  %1134 = vmatprep.subr.mxu0 0.0
  %1135 = vmatpush2.xpose.msra.mxu0 0.0
  %1136 = vmatprep.subr.mxu0 0.0
  %1137 = vmatpush2.xpose.msra.mxu0 0.0
  %1138 = vmatprep.subr.mxu0 0.0
  %1139 = vmatpush2.xpose.msra.mxu0 0.0
  %1140 = vmatprep.subr.mxu0 0.0
  %1141 = vmatpush2.xpose.msra.mxu0 0.0
  %1142 = vmatprep.subr.mxu0 0.0
  %1143 = vmatpush2.xpose.msra.mxu0 0.0
  %1144 = vmatprep.subr.mxu0 0.0
  %1145 = vmatpush2.xpose.msra.mxu0 0.0
  %1146 = vmatprep.subr.mxu0 0.0
  %1147 = vmatpush2.xpose.msra.mxu0 0.0
  %1148 = vmatprep.subr.mxu0 0.0
  %1149 = vmatpush2.xpose.msra.mxu0 0.0
  %1150 = vmatprep.subr.mxu0 0.0
  %1151 = vmatpush2.xpose.msra.mxu0 0.0
  %1152 = vmatprep.subr.mxu0 0.0
  %1153 = vmatpush2.xpose.msra.mxu0 0.0
  %1154 = vmatprep.subr.mxu0 0.0
  %1155 = vmatpush2.xpose.msra.mxu0 0.0
  %1156 = vmatprep.subr.mxu0 0.0
  %1157 = vmatpush2.xpose.msra.mxu0 0.0
  %1158 = vmatprep.subr.mxu0 0.0
  %1159 = vmatpush2.xpose.msra.mxu0 0.0
  %1160 = vmatprep.subr.mxu0 0.0
  %1161 = vmatpush2.xpose.msra.mxu0 0.0
  %1162 = vmatprep.mubr.f32.mxu0 0.0
  %1163 = vmatmul.mubr.f32.gmra.mxu0 %v807
  %v1164 = vpop.f32.mrf.mxu0
  %v1165 = vadd.f32 %v1084, %v1164
  %v1166 = vpop.f32.mrf.mxu0
  %1167 = vmatprep.mubr.f32.mxu0 0.0
  %1168 = vmatmul.mubr.f32.gmra.mxu0 %v810
  %v1169 = vpop.f32.mrf.mxu0
  %v1170 = vadd.f32 %v1084, %v1169
  %v1171 = vpop.f32.mrf.mxu0
  %1172 = vmatprep.mubr.f32.mxu0 0.0
  %1173 = vmatmul.mubr.f32.gmra.mxu0 %v813
  %v1174 = vpop.f32.mrf.mxu0
  %v1175 = vadd.f32 %v1084, %v1174
  %v1176 = vpop.f32.mrf.mxu0
  %1177 = vmatprep.mubr.f32.mxu0 0.0
  %1178 = vmatmul.mubr.f32.gmra.mxu0 %v816
  %v1179 = vpop.f32.mrf.mxu0
  %v1180 = vadd.f32 %v1084, %v1179
  %v1181 = vpop.f32.mrf.mxu0
  %1182 = vmatprep.mubr.f32.mxu0 0.0
  %1183 = vmatmul.mubr.f32.gmra.mxu0 %v819
  %v1184 = vpop.f32.mrf.mxu0
  %v1185 = vadd.f32 %v1084, %v1184
  %v1186 = vpop.f32.mrf.mxu0
  %1187 = vmatprep.mubr.f32.mxu0 0.0
  %1188 = vmatmul.mubr.f32.gmra.mxu0 %v822
  %v1189 = vpop.f32.mrf.mxu0
  %v1190 = vadd.f32 %v1084, %v1189
  %v1191 = vpop.f32.mrf.mxu0
  %1192 = vmatprep.mubr.f32.mxu0 0.0
  %1193 = vmatmul.mubr.f32.gmra.mxu0 %v825
  %v1194 = vpop.f32.mrf.mxu0
  %v1195 = vadd.f32 %v1084, %v1194
  %v1196 = vpop.f32.mrf.mxu0
  %1197 = vmatprep.mubr.f32.mxu0 0.0
  %1198 = vmatmul.mubr.f32.gmra.mxu0 %v828
  %v1199 = vpop.f32.mrf.mxu0
  %v1200 = vadd.f32 %v1084, %v1199
  %v1201 = vpop.f32.mrf.mxu0
  %1202 = vdwg.mxu0
  %vm1203 = vcmask 130048
  %v1205 = vsel %vm1203, %v909, 0
  %v1208 = vsel %vm1203, %v914, 0
  %v1211 = vsel %vm1203, %v919, 0
  %v1214 = vsel %vm1203, %v924, 0
  %v1217 = vsel %vm1203, %v1037, 0
  %v1220 = vsel %vm1203, %v1042, 0
  %v1223 = vsel %vm1203, %v1047, 0
  %v1226 = vsel %vm1203, %v1052, 0
  %1228 = vmatprep.subr.mxu0 0.0
  %1229 = vmatpush1.xpose.msra.mxu0 0.0
  %1230 = vmatprep.subr.mxu0 0.0
  %1231 = vmatpush1.xpose.msra.mxu0 0.0
  %1232 = vmatprep.subr.mxu0 0.0
  %1233 = vmatpush1.xpose.msra.mxu0 0.0
  %1234 = vmatprep.subr.mxu0 0.0
  %1235 = vmatpush1.xpose.msra.mxu0 0.0
  %1236 = vmatprep.subr.mxu0 0.0
  %1237 = vmatpush1.xpose.msra.mxu0 0.0
  %1238 = vmatprep.subr.mxu0 0.0
  %1239 = vmatpush1.xpose.msra.mxu0 0.0
  %1240 = vmatprep.subr.mxu0 0.0
  %1241 = vmatpush1.xpose.msra.mxu0 0.0
  %1242 = vmatprep.subr.mxu0 0.0
  %1243 = vmatpush1.xpose.msra.mxu0 0.0
  %1244 = vmatprep.subr.mxu0 0.0
  %1245 = vmatpush1.xpose.msra.mxu0 0.0
  %1246 = vmatprep.subr.mxu0 0.0
  %1247 = vmatpush1.xpose.msra.mxu0 0.0
  %1248 = vmatprep.subr.mxu0 0.0
  %1249 = vmatpush1.xpose.msra.mxu0 0.0
  %1250 = vmatprep.subr.mxu0 0.0
  %1251 = vmatpush1.xpose.msra.mxu0 0.0
  %1252 = vmatprep.subr.mxu0 0.0
  %1253 = vmatpush1.xpose.msra.mxu0 %v1226
  %1254 = vmatprep.subr.mxu0 0.0
  %1255 = vmatpush1.xpose.msra.mxu0 %v1223
  %1256 = vmatprep.subr.mxu0 0.0
  %1257 = vmatpush1.xpose.msra.mxu0 %v1220
  %1258 = vmatprep.subr.mxu0 0.0
  %1259 = vmatpush1.xpose.msra.mxu0 %v1217
  %1260 = vmatprep.subr.mxu0 0.0
  %1261 = vmatpush2.xpose.msra.mxu0 0.0
  %1262 = vmatprep.subr.mxu0 0.0
  %1263 = vmatpush2.xpose.msra.mxu0 0.0
  %1264 = vmatprep.subr.mxu0 0.0
  %1265 = vmatpush2.xpose.msra.mxu0 0.0
  %1266 = vmatprep.subr.mxu0 0.0
  %1267 = vmatpush2.xpose.msra.mxu0 0.0
  %1268 = vmatprep.subr.mxu0 0.0
  %1269 = vmatpush2.xpose.msra.mxu0 0.0
  %1270 = vmatprep.subr.mxu0 0.0
  %1271 = vmatpush2.xpose.msra.mxu0 0.0
  %1272 = vmatprep.subr.mxu0 0.0
  %1273 = vmatpush2.xpose.msra.mxu0 0.0
  %1274 = vmatprep.subr.mxu0 0.0
  %1275 = vmatpush2.xpose.msra.mxu0 0.0
  %1276 = vmatprep.subr.mxu0 0.0
  %1277 = vmatpush2.xpose.msra.mxu0 0.0
  %1278 = vmatprep.subr.mxu0 0.0
  %1279 = vmatpush2.xpose.msra.mxu0 0.0
  %1280 = vmatprep.subr.mxu0 0.0
  %1281 = vmatpush2.xpose.msra.mxu0 0.0
  %1282 = vmatprep.subr.mxu0 0.0
  %1283 = vmatpush2.xpose.msra.mxu0 0.0
  %1284 = vmatprep.subr.mxu0 0.0
  %1285 = vmatpush2.xpose.msra.mxu0 0.0
  %1286 = vmatprep.subr.mxu0 0.0
  %1287 = vmatpush2.xpose.msra.mxu0 0.0
  %1288 = vmatprep.subr.mxu0 0.0
  %1289 = vmatpush2.xpose.msra.mxu0 0.0
  %1290 = vmatprep.subr.mxu0 0.0
  %1291 = vmatpush2.xpose.msra.mxu0 0.0
  %1292 = vmatprep.mubr.f32.mxu0 0.0
  %1293 = vmatmul.mubr.f32.gmra.mxu0 %v1205
  %v1294 = vpop.f32.mrf.mxu0
  %v1295 = vadd.f32 0.0, %v1294
  %v1296 = vpop.f32.mrf.mxu0
  %1297 = vmatprep.mubr.f32.mxu0 0.0
  %1298 = vmatmul.mubr.f32.gmra.mxu0 %v1208
  %v1299 = vpop.f32.mrf.mxu0
  %v1300 = vadd.f32 0.0, %v1299
  %v1301 = vpop.f32.mrf.mxu0
  %1302 = vmatprep.mubr.f32.mxu0 0.0
  %1303 = vmatmul.mubr.f32.gmra.mxu0 %v1211
  %v1304 = vpop.f32.mrf.mxu0
  %v1305 = vadd.f32 0.0, %v1304
  %v1306 = vpop.f32.mrf.mxu0
  %1307 = vmatprep.mubr.f32.mxu0 0.0
  %1308 = vmatmul.mubr.f32.gmra.mxu0 %v1214
  %v1309 = vpop.f32.mrf.mxu0
  %v1310 = vadd.f32 0.0, %v1309
  %v1311 = vpop.f32.mrf.mxu0
  %1312 = vdwg.mxu0
  %v1313 = vmul.f32 %v1295, 0.25
  %v1314 = vmul.f32 %v1300, 0.25
  %v1315 = vmul.f32 %v1305, 0.25
  %v1316 = vmul.f32 %v1310, 0.25
  %v1317 = vadd.f32 %v1313, %v657
  %v1318 = vadd.f32 %v1314, %v658
  %v1319 = vadd.f32 %v1315, %v659
  %v1320 = vadd.f32 %v1316, %v660
  %v1321 = vsel %vm475, %v1317, -inf
  %1322 = vmax.xlane.f32.xlu0 %v1321
  %v1323 = vpop.xlane.xlu0 %1322
  %v1324 = vsel %vm475, %v1318, -inf
  %1325 = vmax.xlane.f32.xlu0 %v1324
  %v1326 = vpop.xlane.xlu0 %1325
  %v1327 = vsel %vm475, %v1319, -inf
  %1328 = vmax.xlane.f32.xlu0 %v1327
  %v1329 = vpop.xlane.xlu0 %1328
  %v1330 = vsel %vm475, %v1320, -inf
  %1331 = vmax.xlane.f32.xlu0 %v1330
  %v1332 = vpop.xlane.xlu0 %1331
  %v1333 = vsub.f32 %v1317, %v1323
  %v1334 = vsub.f32 %v1318, %v1326
  %v1335 = vsub.f32 %v1319, %v1329
  %v1336 = vsub.f32 %v1320, %v1332
  %v1337 = vmul.f32 %v1333, 1.442695
  %v1338 = vpow.pop %v1337
  %v1339 = vmul.f32 %v1334, 1.442695
  %v1340 = vpow.pop %v1339
  %v1341 = vmul.f32 %v1335, 1.442695
  %v1342 = vpow.pop %v1341
  %v1343 = vmul.f32 %v1336, 1.442695
  %v1344 = vpow.pop %v1343
  %v1345 = vsel %vm475, %v1338, 0.0
  %1346 = vadd.xlane.f32.xlu0 %v1345
  %v1347 = vpop.xlane.xlu0 %1346
  %v1348 = vsel %vm475, %v1340, 0.0
  %1349 = vadd.xlane.f32.xlu0 %v1348
  %v1350 = vpop.xlane.xlu0 %1349
  %v1351 = vsel %vm475, %v1342, 0.0
  %1352 = vadd.xlane.f32.xlu0 %v1351
  %v1353 = vpop.xlane.xlu0 %1352
  %v1354 = vsel %vm475, %v1344, 0.0
  %1355 = vadd.xlane.f32.xlu0 %v1354
  %v1356 = vpop.xlane.xlu0 %1355
  %v1357 = vrcp.pop %v1347
  %v1358 = vrcp.pop %v1350
  %v1359 = vrcp.pop %v1353
  %v1360 = vrcp.pop %v1356
  %v1361 = vmul.f32 %v1338, %v1357
  %v1362 = vmul.f32 %v1340, %v1358
  %v1363 = vmul.f32 %v1342, %v1359
  %v1364 = vmul.f32 %v1344, %v1360
  %v1366 = vsel %vm475, %v1361, 0
  %v1369 = vsel %vm475, %v1362, 0
  %v1372 = vsel %vm475, %v1363, 0
  %v1375 = vsel %vm475, %v1364, 0
  %1377 = vmatprep.subr.mxu0 0.0
  %1378 = vmatpush1.msra.mxu0 0.0
  %1379 = vmatprep.subr.mxu0 0.0
  %1380 = vmatpush1.msra.mxu0 0.0
  %1381 = vmatprep.subr.mxu0 0.0
  %1382 = vmatpush1.msra.mxu0 0.0
  %1383 = vmatprep.subr.mxu0 0.0
  %1384 = vmatpush1.msra.mxu0 0.0
  %1385 = vmatprep.subr.mxu0 0.0
  %1386 = vmatpush1.msra.mxu0 0.0
  %1387 = vmatprep.subr.mxu0 0.0
  %1388 = vmatpush1.msra.mxu0 0.0
  %1389 = vmatprep.subr.mxu0 0.0
  %1390 = vmatpush1.msra.mxu0 0.0
  %1391 = vmatprep.subr.mxu0 0.0
  %1392 = vmatpush1.msra.mxu0 0.0
  %1393 = vmatprep.subr.mxu0 0.0
  %1394 = vmatpush1.msra.mxu0 0.0
  %1395 = vmatprep.subr.mxu0 0.0
  %1396 = vmatpush1.msra.mxu0 0.0
  %1397 = vmatprep.subr.mxu0 0.0
  %1398 = vmatpush1.msra.mxu0 0.0
  %1399 = vmatprep.subr.mxu0 0.0
  %1400 = vmatpush1.msra.mxu0 0.0
  %1401 = vmatprep.subr.mxu0 0.0
  %1402 = vmatpush1.msra.mxu0 %v1180
  %1403 = vmatprep.subr.mxu0 0.0
  %1404 = vmatpush1.msra.mxu0 %v1175
  %1405 = vmatprep.subr.mxu0 0.0
  %1406 = vmatpush1.msra.mxu0 %v1170
  %1407 = vmatprep.subr.mxu0 0.0
  %1408 = vmatpush1.msra.mxu0 %v1165
  %1409 = vmatprep.subr.mxu0 0.0
  %1410 = vmatpush2.msra.mxu0 0.0
  %1411 = vmatprep.subr.mxu0 0.0
  %1412 = vmatpush2.msra.mxu0 0.0
  %1413 = vmatprep.subr.mxu0 0.0
  %1414 = vmatpush2.msra.mxu0 0.0
  %1415 = vmatprep.subr.mxu0 0.0
  %1416 = vmatpush2.msra.mxu0 0.0
  %1417 = vmatprep.subr.mxu0 0.0
  %1418 = vmatpush2.msra.mxu0 0.0
  %1419 = vmatprep.subr.mxu0 0.0
  %1420 = vmatpush2.msra.mxu0 0.0
  %1421 = vmatprep.subr.mxu0 0.0
  %1422 = vmatpush2.msra.mxu0 0.0
  %1423 = vmatprep.subr.mxu0 0.0
  %1424 = vmatpush2.msra.mxu0 0.0
  %1425 = vmatprep.subr.mxu0 0.0
  %1426 = vmatpush2.msra.mxu0 0.0
  %1427 = vmatprep.subr.mxu0 0.0
  %1428 = vmatpush2.msra.mxu0 0.0
  %1429 = vmatprep.subr.mxu0 0.0
  %1430 = vmatpush2.msra.mxu0 0.0
  %1431 = vmatprep.subr.mxu0 0.0
  %1432 = vmatpush2.msra.mxu0 0.0
  %1433 = vmatprep.subr.mxu0 0.0
  %1434 = vmatpush2.msra.mxu0 0.0
  %1435 = vmatprep.subr.mxu0 0.0
  %1436 = vmatpush2.msra.mxu0 0.0
  %1437 = vmatprep.subr.mxu0 0.0
  %1438 = vmatpush2.msra.mxu0 0.0
  %1439 = vmatprep.subr.mxu0 0.0
  %1440 = vmatpush2.msra.mxu0 0.0
  %1441 = vmatprep.mubr.f32.mxu0 0.0
  %1442 = vmatmul.mubr.f32.gmra.mxu0 %v1366
  %v1443 = vpop.f32.mrf.mxu0
  %v1444 = vadd.f32 0.0, %v1443
  %v1445 = vpop.f32.mrf.mxu0
  %1446 = vmatprep.mubr.f32.mxu0 0.0
  %1447 = vmatmul.mubr.f32.gmra.mxu0 %v1369
  %v1448 = vpop.f32.mrf.mxu0
  %v1449 = vadd.f32 0.0, %v1448
  %v1450 = vpop.f32.mrf.mxu0
  %1451 = vmatprep.mubr.f32.mxu0 0.0
  %1452 = vmatmul.mubr.f32.gmra.mxu0 %v1372
  %v1453 = vpop.f32.mrf.mxu0
  %v1454 = vadd.f32 0.0, %v1453
  %v1455 = vpop.f32.mrf.mxu0
  %1456 = vmatprep.mubr.f32.mxu0 0.0
  %1457 = vmatmul.mubr.f32.gmra.mxu0 %v1375
  %v1458 = vpop.f32.mrf.mxu0
  %v1459 = vadd.f32 0.0, %v1458
  %v1460 = vpop.f32.mrf.mxu0
  %1461 = vdwg.mxu0
  %1462 = vst.msk [vmem:[#allocation2] sm:$0xff] %vm1203, %v1444
  %1463 = vst.msk [vmem:[#allocation2 + $0x8] sm:$0xff] %vm1203, %v1449
  %1464 = vst.msk [vmem:[#allocation2 + $0x10] sm:$0xff] %vm1203, %v1454
  %1465 = vst.msk [vmem:[#allocation2 + $0x18] sm:$0xff] %vm1203, %v1459
  %1466 = vrot.lane.b32.xlu0 %v909, 112
  %v1467 = vpop.permute.xlu0 %1466
  %1468 = vrot.lane.b32.xlu0 %v914, 112
  %v1469 = vpop.permute.xlu0 %1468
  %1470 = vrot.lane.b32.xlu0 %v919, 112
  %v1471 = vpop.permute.xlu0 %1470
  %1472 = vrot.lane.b32.xlu0 %v924, 112
  %v1473 = vpop.permute.xlu0 %1472
  %1474 = vrot.lane.b32.xlu0 %v1037, 112
  %v1475 = vpop.permute.xlu0 %1474
  %1476 = vrot.lane.b32.xlu0 %v1042, 112
  %v1477 = vpop.permute.xlu0 %1476
  %1478 = vrot.lane.b32.xlu0 %v1047, 112
  %v1479 = vpop.permute.xlu0 %1478
  %1480 = vrot.lane.b32.xlu0 %v1052, 112
  %v1481 = vpop.permute.xlu0 %1480
  %v1482 = vsel %vm1203, %v1467, 0
  %v1484 = vsel %vm1203, %v1469, 0
  %v1486 = vsel %vm1203, %v1471, 0
  %v1488 = vsel %vm1203, %v1473, 0
  %v1490 = vsel %vm1203, %v1475, 0
  %v1492 = vsel %vm1203, %v1477, 0
  %v1494 = vsel %vm1203, %v1479, 0
  %v1496 = vsel %vm1203, %v1481, 0
  %1498 = vmatprep.subr.mxu0 0.0
  %1499 = vmatpush1.xpose.msra.mxu0 0.0
  %1500 = vmatprep.subr.mxu0 0.0
  %1501 = vmatpush1.xpose.msra.mxu0 0.0
  %1502 = vmatprep.subr.mxu0 0.0
  %1503 = vmatpush1.xpose.msra.mxu0 0.0
  %1504 = vmatprep.subr.mxu0 0.0
  %1505 = vmatpush1.xpose.msra.mxu0 0.0
  %1506 = vmatprep.subr.mxu0 0.0
  %1507 = vmatpush1.xpose.msra.mxu0 0.0
  %1508 = vmatprep.subr.mxu0 0.0
  %1509 = vmatpush1.xpose.msra.mxu0 0.0
  %1510 = vmatprep.subr.mxu0 0.0
  %1511 = vmatpush1.xpose.msra.mxu0 0.0
  %1512 = vmatprep.subr.mxu0 0.0
  %1513 = vmatpush1.xpose.msra.mxu0 0.0
  %1514 = vmatprep.subr.mxu0 0.0
  %1515 = vmatpush1.xpose.msra.mxu0 0.0
  %1516 = vmatprep.subr.mxu0 0.0
  %1517 = vmatpush1.xpose.msra.mxu0 0.0
  %1518 = vmatprep.subr.mxu0 0.0
  %1519 = vmatpush1.xpose.msra.mxu0 0.0
  %1520 = vmatprep.subr.mxu0 0.0
  %1521 = vmatpush1.xpose.msra.mxu0 0.0
  %1522 = vmatprep.subr.mxu0 0.0
  %1523 = vmatpush1.xpose.msra.mxu0 %v1496
  %1524 = vmatprep.subr.mxu0 0.0
  %1525 = vmatpush1.xpose.msra.mxu0 %v1494
  %1526 = vmatprep.subr.mxu0 0.0
  %1527 = vmatpush1.xpose.msra.mxu0 %v1492
  %1528 = vmatprep.subr.mxu0 0.0
  %1529 = vmatpush1.xpose.msra.mxu0 %v1490
  %1530 = vmatprep.subr.mxu0 0.0
  %1531 = vmatpush2.xpose.msra.mxu0 0.0
  %1532 = vmatprep.subr.mxu0 0.0
  %1533 = vmatpush2.xpose.msra.mxu0 0.0
  %1534 = vmatprep.subr.mxu0 0.0
  %1535 = vmatpush2.xpose.msra.mxu0 0.0
  %1536 = vmatprep.subr.mxu0 0.0
  %1537 = vmatpush2.xpose.msra.mxu0 0.0
  %1538 = vmatprep.subr.mxu0 0.0
  %1539 = vmatpush2.xpose.msra.mxu0 0.0
  %1540 = vmatprep.subr.mxu0 0.0
  %1541 = vmatpush2.xpose.msra.mxu0 0.0
  %1542 = vmatprep.subr.mxu0 0.0
  %1543 = vmatpush2.xpose.msra.mxu0 0.0
  %1544 = vmatprep.subr.mxu0 0.0
  %1545 = vmatpush2.xpose.msra.mxu0 0.0
  %1546 = vmatprep.subr.mxu0 0.0
  %1547 = vmatpush2.xpose.msra.mxu0 0.0
  %1548 = vmatprep.subr.mxu0 0.0
  %1549 = vmatpush2.xpose.msra.mxu0 0.0
  %1550 = vmatprep.subr.mxu0 0.0
  %1551 = vmatpush2.xpose.msra.mxu0 0.0
  %1552 = vmatprep.subr.mxu0 0.0
  %1553 = vmatpush2.xpose.msra.mxu0 0.0
  %1554 = vmatprep.subr.mxu0 0.0
  %1555 = vmatpush2.xpose.msra.mxu0 0.0
  %1556 = vmatprep.subr.mxu0 0.0
  %1557 = vmatpush2.xpose.msra.mxu0 0.0
  %1558 = vmatprep.subr.mxu0 0.0
  %1559 = vmatpush2.xpose.msra.mxu0 0.0
  %1560 = vmatprep.subr.mxu0 0.0
  %1561 = vmatpush2.xpose.msra.mxu0 0.0
  %1562 = vmatprep.mubr.f32.mxu0 0.0
  %1563 = vmatmul.mubr.f32.gmra.mxu0 %v1482
  %v1564 = vpop.f32.mrf.mxu0
  %v1565 = vadd.f32 0.0, %v1564
  %v1566 = vpop.f32.mrf.mxu0
  %1567 = vmatprep.mubr.f32.mxu0 0.0
  %1568 = vmatmul.mubr.f32.gmra.mxu0 %v1484
  %v1569 = vpop.f32.mrf.mxu0
  %v1570 = vadd.f32 0.0, %v1569
  %v1571 = vpop.f32.mrf.mxu0
  %1572 = vmatprep.mubr.f32.mxu0 0.0
  %1573 = vmatmul.mubr.f32.gmra.mxu0 %v1486
  %v1574 = vpop.f32.mrf.mxu0
  %v1575 = vadd.f32 0.0, %v1574
  %v1576 = vpop.f32.mrf.mxu0
  %1577 = vmatprep.mubr.f32.mxu0 0.0
  %1578 = vmatmul.mubr.f32.gmra.mxu0 %v1488
  %v1579 = vpop.f32.mrf.mxu0
  %v1580 = vadd.f32 0.0, %v1579
  %v1581 = vpop.f32.mrf.mxu0
  %1582 = vdwg.mxu0
  %v1583 = vmul.f32 %v1565, 0.25
  %v1584 = vmul.f32 %v1570, 0.25
  %v1585 = vmul.f32 %v1575, 0.25
  %v1586 = vmul.f32 %v1580, 0.25
  %v1587 = vadd.f32 %v1583, %v657
  %v1588 = vadd.f32 %v1584, %v658
  %v1589 = vadd.f32 %v1585, %v659
  %v1590 = vadd.f32 %v1586, %v660
  %v1591 = vsel %vm475, %v1587, -inf
  %1592 = vmax.xlane.f32.xlu0 %v1591
  %v1593 = vpop.xlane.xlu0 %1592
  %v1594 = vsel %vm475, %v1588, -inf
  %1595 = vmax.xlane.f32.xlu0 %v1594
  %v1596 = vpop.xlane.xlu0 %1595
  %v1597 = vsel %vm475, %v1589, -inf
  %1598 = vmax.xlane.f32.xlu0 %v1597
  %v1599 = vpop.xlane.xlu0 %1598
  %v1600 = vsel %vm475, %v1590, -inf
  %1601 = vmax.xlane.f32.xlu0 %v1600
  %v1602 = vpop.xlane.xlu0 %1601
  %v1603 = vsub.f32 %v1587, %v1593
  %v1604 = vsub.f32 %v1588, %v1596
  %v1605 = vsub.f32 %v1589, %v1599
  %v1606 = vsub.f32 %v1590, %v1602
  %v1607 = vmul.f32 %v1603, 1.442695
  %v1608 = vpow.pop %v1607
  %v1609 = vmul.f32 %v1604, 1.442695
  %v1610 = vpow.pop %v1609
  %v1611 = vmul.f32 %v1605, 1.442695
  %v1612 = vpow.pop %v1611
  %v1613 = vmul.f32 %v1606, 1.442695
  %v1614 = vpow.pop %v1613
  %v1615 = vsel %vm475, %v1608, 0.0
  %1616 = vadd.xlane.f32.xlu0 %v1615
  %v1617 = vpop.xlane.xlu0 %1616
  %v1618 = vsel %vm475, %v1610, 0.0
  %1619 = vadd.xlane.f32.xlu0 %v1618
  %v1620 = vpop.xlane.xlu0 %1619
  %v1621 = vsel %vm475, %v1612, 0.0
  %1622 = vadd.xlane.f32.xlu0 %v1621
  %v1623 = vpop.xlane.xlu0 %1622
  %v1624 = vsel %vm475, %v1614, 0.0
  %1625 = vadd.xlane.f32.xlu0 %v1624
  %v1626 = vpop.xlane.xlu0 %1625
  %v1627 = vrcp.pop %v1617
  %v1628 = vrcp.pop %v1620
  %v1629 = vrcp.pop %v1623
  %v1630 = vrcp.pop %v1626
  %v1631 = vmul.f32 %v1608, %v1627
  %v1632 = vmul.f32 %v1610, %v1628
  %v1633 = vmul.f32 %v1612, %v1629
  %v1634 = vmul.f32 %v1614, %v1630
  %1639 = vrot.lane.b32.xlu0 %v1165, 112
  %v1640 = vpop.permute.xlu0 %1639
  %1641 = vrot.lane.b32.xlu0 %v1170, 112
  %v1642 = vpop.permute.xlu0 %1641
  %1643 = vrot.lane.b32.xlu0 %v1175, 112
  %v1644 = vpop.permute.xlu0 %1643
  %1645 = vrot.lane.b32.xlu0 %v1180, 112
  %v1646 = vpop.permute.xlu0 %1645
  %v1652 = vsel %vm475, %v1631, 0
  %v1655 = vsel %vm475, %v1632, 0
  %v1658 = vsel %vm475, %v1633, 0
  %v1661 = vsel %vm475, %v1634, 0
  %1663 = vmatprep.subr.mxu0 0.0
  %1664 = vmatpush1.msra.mxu0 0.0
  %1665 = vmatprep.subr.mxu0 0.0
  %1666 = vmatpush1.msra.mxu0 0.0
  %1667 = vmatprep.subr.mxu0 0.0
  %1668 = vmatpush1.msra.mxu0 0.0
  %1669 = vmatprep.subr.mxu0 0.0
  %1670 = vmatpush1.msra.mxu0 0.0
  %1671 = vmatprep.subr.mxu0 0.0
  %1672 = vmatpush1.msra.mxu0 0.0
  %1673 = vmatprep.subr.mxu0 0.0
  %1674 = vmatpush1.msra.mxu0 0.0
  %1675 = vmatprep.subr.mxu0 0.0
  %1676 = vmatpush1.msra.mxu0 0.0
  %1677 = vmatprep.subr.mxu0 0.0
  %1678 = vmatpush1.msra.mxu0 0.0
  %1679 = vmatprep.subr.mxu0 0.0
  %1680 = vmatpush1.msra.mxu0 0.0
  %1681 = vmatprep.subr.mxu0 0.0
  %1682 = vmatpush1.msra.mxu0 0.0
  %1683 = vmatprep.subr.mxu0 0.0
  %1684 = vmatpush1.msra.mxu0 0.0
  %1685 = vmatprep.subr.mxu0 0.0
  %1686 = vmatpush1.msra.mxu0 0.0
  %1687 = vmatprep.subr.mxu0 0.0
  %1688 = vmatpush1.msra.mxu0 %v1646
  %1689 = vmatprep.subr.mxu0 0.0
  %1690 = vmatpush1.msra.mxu0 %v1644
  %1691 = vmatprep.subr.mxu0 0.0
  %1692 = vmatpush1.msra.mxu0 %v1642
  %1693 = vmatprep.subr.mxu0 0.0
  %1694 = vmatpush1.msra.mxu0 %v1640
  %1695 = vmatprep.subr.mxu0 0.0
  %1696 = vmatpush2.msra.mxu0 0.0
  %1697 = vmatprep.subr.mxu0 0.0
  %1698 = vmatpush2.msra.mxu0 0.0
  %1699 = vmatprep.subr.mxu0 0.0
  %1700 = vmatpush2.msra.mxu0 0.0
  %1701 = vmatprep.subr.mxu0 0.0
  %1702 = vmatpush2.msra.mxu0 0.0
  %1703 = vmatprep.subr.mxu0 0.0
  %1704 = vmatpush2.msra.mxu0 0.0
  %1705 = vmatprep.subr.mxu0 0.0
  %1706 = vmatpush2.msra.mxu0 0.0
  %1707 = vmatprep.subr.mxu0 0.0
  %1708 = vmatpush2.msra.mxu0 0.0
  %1709 = vmatprep.subr.mxu0 0.0
  %1710 = vmatpush2.msra.mxu0 0.0
  %1711 = vmatprep.subr.mxu0 0.0
  %1712 = vmatpush2.msra.mxu0 0.0
  %1713 = vmatprep.subr.mxu0 0.0
  %1714 = vmatpush2.msra.mxu0 0.0
  %1715 = vmatprep.subr.mxu0 0.0
  %1716 = vmatpush2.msra.mxu0 0.0
  %1717 = vmatprep.subr.mxu0 0.0
  %1718 = vmatpush2.msra.mxu0 0.0
  %1719 = vmatprep.subr.mxu0 0.0
  %1720 = vmatpush2.msra.mxu0 0.0
  %1721 = vmatprep.subr.mxu0 0.0
  %1722 = vmatpush2.msra.mxu0 0.0
  %1723 = vmatprep.subr.mxu0 0.0
  %1724 = vmatpush2.msra.mxu0 0.0
  %1725 = vmatprep.subr.mxu0 0.0
  %1726 = vmatpush2.msra.mxu0 0.0
  %1727 = vmatprep.mubr.f32.mxu0 0.0
  %1728 = vmatmul.mubr.f32.gmra.mxu0 %v1652
  %v1729 = vpop.f32.mrf.mxu0
  %v1730 = vadd.f32 0.0, %v1729
  %v1731 = vpop.f32.mrf.mxu0
  %1732 = vmatprep.mubr.f32.mxu0 0.0
  %1733 = vmatmul.mubr.f32.gmra.mxu0 %v1655
  %v1734 = vpop.f32.mrf.mxu0
  %v1735 = vadd.f32 0.0, %v1734
  %v1736 = vpop.f32.mrf.mxu0
  %1737 = vmatprep.mubr.f32.mxu0 0.0
  %1738 = vmatmul.mubr.f32.gmra.mxu0 %v1658
  %v1739 = vpop.f32.mrf.mxu0
  %v1740 = vadd.f32 0.0, %v1739
  %v1741 = vpop.f32.mrf.mxu0
  %1742 = vmatprep.mubr.f32.mxu0 0.0
  %1743 = vmatmul.mubr.f32.gmra.mxu0 %v1661
  %v1744 = vpop.f32.mrf.mxu0
  %v1745 = vadd.f32 0.0, %v1744
  %v1746 = vpop.f32.mrf.mxu0
  %1747 = vdwg.mxu0
  %1752 = vrot.lane.b32.xlu0 %v1730, 16
  %v1753 = vpop.permute.xlu0 %1752
  %1754 = vrot.lane.b32.xlu0 %v1735, 16
  %v1755 = vpop.permute.xlu0 %1754
  %1756 = vrot.lane.b32.xlu0 %v1740, 16
  %v1757 = vpop.permute.xlu0 %1756
  %1758 = vrot.lane.b32.xlu0 %v1745, 16
  %v1759 = vpop.permute.xlu0 %1758
  %vm1764 = vcmask 261248
  %1765 = vst.msk [vmem:[#allocation2] sm:$0xff] %vm1764, %v1753
  %1766 = vst.msk [vmem:[#allocation2 + $0x8] sm:$0xff] %vm1764, %v1755
  %1767 = vst.msk [vmem:[#allocation2 + $0x10] sm:$0xff] %vm1764, %v1757
  %1768 = vst.msk [vmem:[#allocation2 + $0x18] sm:$0xff] %vm1764, %v1759
  %v1770 = vsel %vm1203, %v929, 0
  %v1773 = vsel %vm1203, %v934, 0
  %v1776 = vsel %vm1203, %v939, 0
  %v1779 = vsel %vm1203, %v944, 0
  %v1782 = vsel %vm1203, %v1057, 0
  %v1785 = vsel %vm1203, %v1062, 0
  %v1788 = vsel %vm1203, %v1067, 0
  %v1791 = vsel %vm1203, %v1072, 0
  %1793 = vmatprep.subr.mxu0 0.0
  %1794 = vmatpush1.xpose.msra.mxu0 0.0
  %1795 = vmatprep.subr.mxu0 0.0
  %1796 = vmatpush1.xpose.msra.mxu0 0.0
  %1797 = vmatprep.subr.mxu0 0.0
  %1798 = vmatpush1.xpose.msra.mxu0 0.0
  %1799 = vmatprep.subr.mxu0 0.0
  %1800 = vmatpush1.xpose.msra.mxu0 0.0
  %1801 = vmatprep.subr.mxu0 0.0
  %1802 = vmatpush1.xpose.msra.mxu0 0.0
  %1803 = vmatprep.subr.mxu0 0.0
  %1804 = vmatpush1.xpose.msra.mxu0 0.0
  %1805 = vmatprep.subr.mxu0 0.0
  %1806 = vmatpush1.xpose.msra.mxu0 0.0
  %1807 = vmatprep.subr.mxu0 0.0
  %1808 = vmatpush1.xpose.msra.mxu0 0.0
  %1809 = vmatprep.subr.mxu0 0.0
  %1810 = vmatpush1.xpose.msra.mxu0 0.0
  %1811 = vmatprep.subr.mxu0 0.0
  %1812 = vmatpush1.xpose.msra.mxu0 0.0
  %1813 = vmatprep.subr.mxu0 0.0
  %1814 = vmatpush1.xpose.msra.mxu0 0.0
  %1815 = vmatprep.subr.mxu0 0.0
  %1816 = vmatpush1.xpose.msra.mxu0 0.0
  %1817 = vmatprep.subr.mxu0 0.0
  %1818 = vmatpush1.xpose.msra.mxu0 %v1791
  %1819 = vmatprep.subr.mxu0 0.0
  %1820 = vmatpush1.xpose.msra.mxu0 %v1788
  %1821 = vmatprep.subr.mxu0 0.0
  %1822 = vmatpush1.xpose.msra.mxu0 %v1785
  %1823 = vmatprep.subr.mxu0 0.0
  %1824 = vmatpush1.xpose.msra.mxu0 %v1782
  %1825 = vmatprep.subr.mxu0 0.0
  %1826 = vmatpush2.xpose.msra.mxu0 0.0
  %1827 = vmatprep.subr.mxu0 0.0
  %1828 = vmatpush2.xpose.msra.mxu0 0.0
  %1829 = vmatprep.subr.mxu0 0.0
  %1830 = vmatpush2.xpose.msra.mxu0 0.0
  %1831 = vmatprep.subr.mxu0 0.0
  %1832 = vmatpush2.xpose.msra.mxu0 0.0
  %1833 = vmatprep.subr.mxu0 0.0
  %1834 = vmatpush2.xpose.msra.mxu0 0.0
  %1835 = vmatprep.subr.mxu0 0.0
  %1836 = vmatpush2.xpose.msra.mxu0 0.0
  %1837 = vmatprep.subr.mxu0 0.0
  %1838 = vmatpush2.xpose.msra.mxu0 0.0
  %1839 = vmatprep.subr.mxu0 0.0
  %1840 = vmatpush2.xpose.msra.mxu0 0.0
  %1841 = vmatprep.subr.mxu0 0.0
  %1842 = vmatpush2.xpose.msra.mxu0 0.0
  %1843 = vmatprep.subr.mxu0 0.0
  %1844 = vmatpush2.xpose.msra.mxu0 0.0
  %1845 = vmatprep.subr.mxu0 0.0
  %1846 = vmatpush2.xpose.msra.mxu0 0.0
  %1847 = vmatprep.subr.mxu0 0.0
  %1848 = vmatpush2.xpose.msra.mxu0 0.0
  %1849 = vmatprep.subr.mxu0 0.0
  %1850 = vmatpush2.xpose.msra.mxu0 0.0
  %1851 = vmatprep.subr.mxu0 0.0
  %1852 = vmatpush2.xpose.msra.mxu0 0.0
  %1853 = vmatprep.subr.mxu0 0.0
  %1854 = vmatpush2.xpose.msra.mxu0 0.0
  %1855 = vmatprep.subr.mxu0 0.0
  %1856 = vmatpush2.xpose.msra.mxu0 0.0
  %1857 = vmatprep.mubr.f32.mxu0 0.0
  %1858 = vmatmul.mubr.f32.gmra.mxu0 %v1770
  %v1859 = vpop.f32.mrf.mxu0
  %v1860 = vadd.f32 0.0, %v1859
  %v1861 = vpop.f32.mrf.mxu0
  %1862 = vmatprep.mubr.f32.mxu0 0.0
  %1863 = vmatmul.mubr.f32.gmra.mxu0 %v1773
  %v1864 = vpop.f32.mrf.mxu0
  %v1865 = vadd.f32 0.0, %v1864
  %v1866 = vpop.f32.mrf.mxu0
  %1867 = vmatprep.mubr.f32.mxu0 0.0
  %1868 = vmatmul.mubr.f32.gmra.mxu0 %v1776
  %v1869 = vpop.f32.mrf.mxu0
  %v1870 = vadd.f32 0.0, %v1869
  %v1871 = vpop.f32.mrf.mxu0
  %1872 = vmatprep.mubr.f32.mxu0 0.0
  %1873 = vmatmul.mubr.f32.gmra.mxu0 %v1779
  %v1874 = vpop.f32.mrf.mxu0
  %v1875 = vadd.f32 0.0, %v1874
  %v1876 = vpop.f32.mrf.mxu0
  %1877 = vdwg.mxu0
  %v1878 = vmul.f32 %v1860, 0.25
  %v1879 = vmul.f32 %v1865, 0.25
  %v1880 = vmul.f32 %v1870, 0.25
  %v1881 = vmul.f32 %v1875, 0.25
  %v1882 = vadd.f32 %v1878, %v657
  %v1883 = vadd.f32 %v1879, %v658
  %v1884 = vadd.f32 %v1880, %v659
  %v1885 = vadd.f32 %v1881, %v660
  %v1886 = vsel %vm475, %v1882, -inf
  %1887 = vmax.xlane.f32.xlu0 %v1886
  %v1888 = vpop.xlane.xlu0 %1887
  %v1889 = vsel %vm475, %v1883, -inf
  %1890 = vmax.xlane.f32.xlu0 %v1889
  %v1891 = vpop.xlane.xlu0 %1890
  %v1892 = vsel %vm475, %v1884, -inf
  %1893 = vmax.xlane.f32.xlu0 %v1892
  %v1894 = vpop.xlane.xlu0 %1893
  %v1895 = vsel %vm475, %v1885, -inf
  %1896 = vmax.xlane.f32.xlu0 %v1895
  %v1897 = vpop.xlane.xlu0 %1896
  %v1898 = vsub.f32 %v1882, %v1888
  %v1899 = vsub.f32 %v1883, %v1891
  %v1900 = vsub.f32 %v1884, %v1894
  %v1901 = vsub.f32 %v1885, %v1897
  %v1902 = vmul.f32 %v1898, 1.442695
  %v1903 = vpow.pop %v1902
  %v1904 = vmul.f32 %v1899, 1.442695
  %v1905 = vpow.pop %v1904
  %v1906 = vmul.f32 %v1900, 1.442695
  %v1907 = vpow.pop %v1906
  %v1908 = vmul.f32 %v1901, 1.442695
  %v1909 = vpow.pop %v1908
  %v1910 = vsel %vm475, %v1903, 0.0
  %1911 = vadd.xlane.f32.xlu0 %v1910
  %v1912 = vpop.xlane.xlu0 %1911
  %v1913 = vsel %vm475, %v1905, 0.0
  %1914 = vadd.xlane.f32.xlu0 %v1913
  %v1915 = vpop.xlane.xlu0 %1914
  %v1916 = vsel %vm475, %v1907, 0.0
  %1917 = vadd.xlane.f32.xlu0 %v1916
  %v1918 = vpop.xlane.xlu0 %1917
  %v1919 = vsel %vm475, %v1909, 0.0
  %1920 = vadd.xlane.f32.xlu0 %v1919
  %v1921 = vpop.xlane.xlu0 %1920
  %v1922 = vrcp.pop %v1912
  %v1923 = vrcp.pop %v1915
  %v1924 = vrcp.pop %v1918
  %v1925 = vrcp.pop %v1921
  %v1926 = vmul.f32 %v1903, %v1922
  %v1927 = vmul.f32 %v1905, %v1923
  %v1928 = vmul.f32 %v1907, %v1924
  %v1929 = vmul.f32 %v1909, %v1925
  %v1931 = vsel %vm475, %v1926, 0
  %v1934 = vsel %vm475, %v1927, 0
  %v1937 = vsel %vm475, %v1928, 0
  %v1940 = vsel %vm475, %v1929, 0
  %1942 = vmatprep.subr.mxu0 0.0
  %1943 = vmatpush1.msra.mxu0 0.0
  %1944 = vmatprep.subr.mxu0 0.0
  %1945 = vmatpush1.msra.mxu0 0.0
  %1946 = vmatprep.subr.mxu0 0.0
  %1947 = vmatpush1.msra.mxu0 0.0
  %1948 = vmatprep.subr.mxu0 0.0
  %1949 = vmatpush1.msra.mxu0 0.0
  %1950 = vmatprep.subr.mxu0 0.0
  %1951 = vmatpush1.msra.mxu0 0.0
  %1952 = vmatprep.subr.mxu0 0.0
  %1953 = vmatpush1.msra.mxu0 0.0
  %1954 = vmatprep.subr.mxu0 0.0
  %1955 = vmatpush1.msra.mxu0 0.0
  %1956 = vmatprep.subr.mxu0 0.0
  %1957 = vmatpush1.msra.mxu0 0.0
  %1958 = vmatprep.subr.mxu0 0.0
  %1959 = vmatpush1.msra.mxu0 0.0
  %1960 = vmatprep.subr.mxu0 0.0
  %1961 = vmatpush1.msra.mxu0 0.0
  %1962 = vmatprep.subr.mxu0 0.0
  %1963 = vmatpush1.msra.mxu0 0.0
  %1964 = vmatprep.subr.mxu0 0.0
  %1965 = vmatpush1.msra.mxu0 0.0
  %1966 = vmatprep.subr.mxu0 0.0
  %1967 = vmatpush1.msra.mxu0 %v1200
  %1968 = vmatprep.subr.mxu0 0.0
  %1969 = vmatpush1.msra.mxu0 %v1195
  %1970 = vmatprep.subr.mxu0 0.0
  %1971 = vmatpush1.msra.mxu0 %v1190
  %1972 = vmatprep.subr.mxu0 0.0
  %1973 = vmatpush1.msra.mxu0 %v1185
  %1974 = vmatprep.subr.mxu0 0.0
  %1975 = vmatpush2.msra.mxu0 0.0
  %1976 = vmatprep.subr.mxu0 0.0
  %1977 = vmatpush2.msra.mxu0 0.0
  %1978 = vmatprep.subr.mxu0 0.0
  %1979 = vmatpush2.msra.mxu0 0.0
  %1980 = vmatprep.subr.mxu0 0.0
  %1981 = vmatpush2.msra.mxu0 0.0
  %1982 = vmatprep.subr.mxu0 0.0
  %1983 = vmatpush2.msra.mxu0 0.0
  %1984 = vmatprep.subr.mxu0 0.0
  %1985 = vmatpush2.msra.mxu0 0.0
  %1986 = vmatprep.subr.mxu0 0.0
  %1987 = vmatpush2.msra.mxu0 0.0
  %1988 = vmatprep.subr.mxu0 0.0
  %1989 = vmatpush2.msra.mxu0 0.0
  %1990 = vmatprep.subr.mxu0 0.0
  %1991 = vmatpush2.msra.mxu0 0.0
  %1992 = vmatprep.subr.mxu0 0.0
  %1993 = vmatpush2.msra.mxu0 0.0
  %1994 = vmatprep.subr.mxu0 0.0
  %1995 = vmatpush2.msra.mxu0 0.0
  %1996 = vmatprep.subr.mxu0 0.0
  %1997 = vmatpush2.msra.mxu0 0.0
  %1998 = vmatprep.subr.mxu0 0.0
  %1999 = vmatpush2.msra.mxu0 0.0
  %2000 = vmatprep.subr.mxu0 0.0
  %2001 = vmatpush2.msra.mxu0 0.0
  %2002 = vmatprep.subr.mxu0 0.0
  %2003 = vmatpush2.msra.mxu0 0.0
  %2004 = vmatprep.subr.mxu0 0.0
  %2005 = vmatpush2.msra.mxu0 0.0
  %2006 = vmatprep.mubr.f32.mxu0 0.0
  %2007 = vmatmul.mubr.f32.gmra.mxu0 %v1931
  %v2008 = vpop.f32.mrf.mxu0
  %v2009 = vadd.f32 0.0, %v2008
  %v2010 = vpop.f32.mrf.mxu0
  %2011 = vmatprep.mubr.f32.mxu0 0.0
  %2012 = vmatmul.mubr.f32.gmra.mxu0 %v1934
  %v2013 = vpop.f32.mrf.mxu0
  %v2014 = vadd.f32 0.0, %v2013
  %v2015 = vpop.f32.mrf.mxu0
  %2016 = vmatprep.mubr.f32.mxu0 0.0
  %2017 = vmatmul.mubr.f32.gmra.mxu0 %v1937
  %v2018 = vpop.f32.mrf.mxu0
  %v2019 = vadd.f32 0.0, %v2018
  %v2020 = vpop.f32.mrf.mxu0
  %2021 = vmatprep.mubr.f32.mxu0 0.0
  %2022 = vmatmul.mubr.f32.gmra.mxu0 %v1940
  %v2023 = vpop.f32.mrf.mxu0
  %v2024 = vadd.f32 0.0, %v2023
  %v2025 = vpop.f32.mrf.mxu0
  %2026 = vdwg.mxu0
  %2027 = vst.msk [vmem:[#allocation2 + $0x20] sm:$0xff] %vm1203, %v2009
  %2028 = vst.msk [vmem:[#allocation2 + $0x28] sm:$0xff] %vm1203, %v2014
  %2029 = vst.msk [vmem:[#allocation2 + $0x30] sm:$0xff] %vm1203, %v2019
  %2030 = vst.msk [vmem:[#allocation2 + $0x38] sm:$0xff] %vm1203, %v2024
  %2031 = vrot.lane.b32.xlu0 %v929, 112
  %v2032 = vpop.permute.xlu0 %2031
  %2033 = vrot.lane.b32.xlu0 %v934, 112
  %v2034 = vpop.permute.xlu0 %2033
  %2035 = vrot.lane.b32.xlu0 %v939, 112
  %v2036 = vpop.permute.xlu0 %2035
  %2037 = vrot.lane.b32.xlu0 %v944, 112
  %v2038 = vpop.permute.xlu0 %2037
  %2039 = vrot.lane.b32.xlu0 %v1057, 112
  %v2040 = vpop.permute.xlu0 %2039
  %2041 = vrot.lane.b32.xlu0 %v1062, 112
  %v2042 = vpop.permute.xlu0 %2041
  %2043 = vrot.lane.b32.xlu0 %v1067, 112
  %v2044 = vpop.permute.xlu0 %2043
  %2045 = vrot.lane.b32.xlu0 %v1072, 112
  %v2046 = vpop.permute.xlu0 %2045
  %v2047 = vsel %vm1203, %v2032, 0
  %v2049 = vsel %vm1203, %v2034, 0
  %v2051 = vsel %vm1203, %v2036, 0
  %v2053 = vsel %vm1203, %v2038, 0
  %v2055 = vsel %vm1203, %v2040, 0
  %v2057 = vsel %vm1203, %v2042, 0
  %v2059 = vsel %vm1203, %v2044, 0
  %v2061 = vsel %vm1203, %v2046, 0
  %2063 = vmatprep.subr.mxu0 0.0
  %2064 = vmatpush1.xpose.msra.mxu0 0.0
  %2065 = vmatprep.subr.mxu0 0.0
  %2066 = vmatpush1.xpose.msra.mxu0 0.0
  %2067 = vmatprep.subr.mxu0 0.0
  %2068 = vmatpush1.xpose.msra.mxu0 0.0
  %2069 = vmatprep.subr.mxu0 0.0
  %2070 = vmatpush1.xpose.msra.mxu0 0.0
  %2071 = vmatprep.subr.mxu0 0.0
  %2072 = vmatpush1.xpose.msra.mxu0 0.0
  %2073 = vmatprep.subr.mxu0 0.0
  %2074 = vmatpush1.xpose.msra.mxu0 0.0
  %2075 = vmatprep.subr.mxu0 0.0
  %2076 = vmatpush1.xpose.msra.mxu0 0.0
  %2077 = vmatprep.subr.mxu0 0.0
  %2078 = vmatpush1.xpose.msra.mxu0 0.0
  %2079 = vmatprep.subr.mxu0 0.0
  %2080 = vmatpush1.xpose.msra.mxu0 0.0
  %2081 = vmatprep.subr.mxu0 0.0
  %2082 = vmatpush1.xpose.msra.mxu0 0.0
  %2083 = vmatprep.subr.mxu0 0.0
  %2084 = vmatpush1.xpose.msra.mxu0 0.0
  %2085 = vmatprep.subr.mxu0 0.0
  %2086 = vmatpush1.xpose.msra.mxu0 0.0
  %2087 = vmatprep.subr.mxu0 0.0
  %2088 = vmatpush1.xpose.msra.mxu0 %v2061
  %2089 = vmatprep.subr.mxu0 0.0
  %2090 = vmatpush1.xpose.msra.mxu0 %v2059
  %2091 = vmatprep.subr.mxu0 0.0
  %2092 = vmatpush1.xpose.msra.mxu0 %v2057
  %2093 = vmatprep.subr.mxu0 0.0
  %2094 = vmatpush1.xpose.msra.mxu0 %v2055
  %2095 = vmatprep.subr.mxu0 0.0
  %2096 = vmatpush2.xpose.msra.mxu0 0.0
  %2097 = vmatprep.subr.mxu0 0.0
  %2098 = vmatpush2.xpose.msra.mxu0 0.0
  %2099 = vmatprep.subr.mxu0 0.0
  %2100 = vmatpush2.xpose.msra.mxu0 0.0
  %2101 = vmatprep.subr.mxu0 0.0
  %2102 = vmatpush2.xpose.msra.mxu0 0.0
  %2103 = vmatprep.subr.mxu0 0.0
  %2104 = vmatpush2.xpose.msra.mxu0 0.0
  %2105 = vmatprep.subr.mxu0 0.0
  %2106 = vmatpush2.xpose.msra.mxu0 0.0
  %2107 = vmatprep.subr.mxu0 0.0
  %2108 = vmatpush2.xpose.msra.mxu0 0.0
  %2109 = vmatprep.subr.mxu0 0.0
  %2110 = vmatpush2.xpose.msra.mxu0 0.0
  %2111 = vmatprep.subr.mxu0 0.0
  %2112 = vmatpush2.xpose.msra.mxu0 0.0
  %2113 = vmatprep.subr.mxu0 0.0
  %2114 = vmatpush2.xpose.msra.mxu0 0.0
  %2115 = vmatprep.subr.mxu0 0.0
  %2116 = vmatpush2.xpose.msra.mxu0 0.0
  %2117 = vmatprep.subr.mxu0 0.0
  %2118 = vmatpush2.xpose.msra.mxu0 0.0
  %2119 = vmatprep.subr.mxu0 0.0
  %2120 = vmatpush2.xpose.msra.mxu0 0.0
  %2121 = vmatprep.subr.mxu0 0.0
  %2122 = vmatpush2.xpose.msra.mxu0 0.0
  %2123 = vmatprep.subr.mxu0 0.0
  %2124 = vmatpush2.xpose.msra.mxu0 0.0
  %2125 = vmatprep.subr.mxu0 0.0
  %2126 = vmatpush2.xpose.msra.mxu0 0.0
  %2127 = vmatprep.mubr.f32.mxu0 0.0
  %2128 = vmatmul.mubr.f32.gmra.mxu0 %v2047
  %v2129 = vpop.f32.mrf.mxu0
  %v2130 = vadd.f32 0.0, %v2129
  %v2131 = vpop.f32.mrf.mxu0
  %2132 = vmatprep.mubr.f32.mxu0 0.0
  %2133 = vmatmul.mubr.f32.gmra.mxu0 %v2049
  %v2134 = vpop.f32.mrf.mxu0
  %v2135 = vadd.f32 0.0, %v2134
  %v2136 = vpop.f32.mrf.mxu0
  %2137 = vmatprep.mubr.f32.mxu0 0.0
  %2138 = vmatmul.mubr.f32.gmra.mxu0 %v2051
  %v2139 = vpop.f32.mrf.mxu0
  %v2140 = vadd.f32 0.0, %v2139
  %v2141 = vpop.f32.mrf.mxu0
  %2142 = vmatprep.mubr.f32.mxu0 0.0
  %2143 = vmatmul.mubr.f32.gmra.mxu0 %v2053
  %v2144 = vpop.f32.mrf.mxu0
  %v2145 = vadd.f32 0.0, %v2144
  %v2146 = vpop.f32.mrf.mxu0
  %2147 = vdwg.mxu0
  %v2148 = vmul.f32 %v2130, 0.25
  %v2149 = vmul.f32 %v2135, 0.25
  %v2150 = vmul.f32 %v2140, 0.25
  %v2151 = vmul.f32 %v2145, 0.25
  %v2152 = vadd.f32 %v2148, %v657
  %v2153 = vadd.f32 %v2149, %v658
  %v2154 = vadd.f32 %v2150, %v659
  %v2155 = vadd.f32 %v2151, %v660
  %v2156 = vsel %vm475, %v2152, -inf
  %2157 = vmax.xlane.f32.xlu0 %v2156
  %v2158 = vpop.xlane.xlu0 %2157
  %v2159 = vsel %vm475, %v2153, -inf
  %2160 = vmax.xlane.f32.xlu0 %v2159
  %v2161 = vpop.xlane.xlu0 %2160
  %v2162 = vsel %vm475, %v2154, -inf
  %2163 = vmax.xlane.f32.xlu0 %v2162
  %v2164 = vpop.xlane.xlu0 %2163
  %v2165 = vsel %vm475, %v2155, -inf
  %2166 = vmax.xlane.f32.xlu0 %v2165
  %v2167 = vpop.xlane.xlu0 %2166
  %v2168 = vsub.f32 %v2152, %v2158
  %v2169 = vsub.f32 %v2153, %v2161
  %v2170 = vsub.f32 %v2154, %v2164
  %v2171 = vsub.f32 %v2155, %v2167
  %v2172 = vmul.f32 %v2168, 1.442695
  %v2173 = vpow.pop %v2172
  %v2174 = vmul.f32 %v2169, 1.442695
  %v2175 = vpow.pop %v2174
  %v2176 = vmul.f32 %v2170, 1.442695
  %v2177 = vpow.pop %v2176
  %v2178 = vmul.f32 %v2171, 1.442695
  %v2179 = vpow.pop %v2178
  %v2180 = vsel %vm475, %v2173, 0.0
  %2181 = vadd.xlane.f32.xlu0 %v2180
  %v2182 = vpop.xlane.xlu0 %2181
  %v2183 = vsel %vm475, %v2175, 0.0
  %2184 = vadd.xlane.f32.xlu0 %v2183
  %v2185 = vpop.xlane.xlu0 %2184
  %v2186 = vsel %vm475, %v2177, 0.0
  %2187 = vadd.xlane.f32.xlu0 %v2186
  %v2188 = vpop.xlane.xlu0 %2187
  %v2189 = vsel %vm475, %v2179, 0.0
  %2190 = vadd.xlane.f32.xlu0 %v2189
  %v2191 = vpop.xlane.xlu0 %2190
  %v2192 = vrcp.pop %v2182
  %v2193 = vrcp.pop %v2185
  %v2194 = vrcp.pop %v2188
  %v2195 = vrcp.pop %v2191
  %v2196 = vmul.f32 %v2173, %v2192
  %v2197 = vmul.f32 %v2175, %v2193
  %v2198 = vmul.f32 %v2177, %v2194
  %v2199 = vmul.f32 %v2179, %v2195
  %2204 = vrot.lane.b32.xlu0 %v1185, 112
  %v2205 = vpop.permute.xlu0 %2204
  %2206 = vrot.lane.b32.xlu0 %v1190, 112
  %v2207 = vpop.permute.xlu0 %2206
  %2208 = vrot.lane.b32.xlu0 %v1195, 112
  %v2209 = vpop.permute.xlu0 %2208
  %2210 = vrot.lane.b32.xlu0 %v1200, 112
  %v2211 = vpop.permute.xlu0 %2210
  %v2217 = vsel %vm475, %v2196, 0
  %v2220 = vsel %vm475, %v2197, 0
  %v2223 = vsel %vm475, %v2198, 0
  %v2226 = vsel %vm475, %v2199, 0
  %2228 = vmatprep.subr.mxu0 0.0
  %2229 = vmatpush1.msra.mxu0 0.0
  %2230 = vmatprep.subr.mxu0 0.0
  %2231 = vmatpush1.msra.mxu0 0.0
  %2232 = vmatprep.subr.mxu0 0.0
  %2233 = vmatpush1.msra.mxu0 0.0
  %2234 = vmatprep.subr.mxu0 0.0
  %2235 = vmatpush1.msra.mxu0 0.0
  %2236 = vmatprep.subr.mxu0 0.0
  %2237 = vmatpush1.msra.mxu0 0.0
  %2238 = vmatprep.subr.mxu0 0.0
  %2239 = vmatpush1.msra.mxu0 0.0
  %2240 = vmatprep.subr.mxu0 0.0
  %2241 = vmatpush1.msra.mxu0 0.0
  %2242 = vmatprep.subr.mxu0 0.0
  %2243 = vmatpush1.msra.mxu0 0.0
  %2244 = vmatprep.subr.mxu0 0.0
  %2245 = vmatpush1.msra.mxu0 0.0
  %2246 = vmatprep.subr.mxu0 0.0
  %2247 = vmatpush1.msra.mxu0 0.0
  %2248 = vmatprep.subr.mxu0 0.0
  %2249 = vmatpush1.msra.mxu0 0.0
  %2250 = vmatprep.subr.mxu0 0.0
  %2251 = vmatpush1.msra.mxu0 0.0
  %2252 = vmatprep.subr.mxu0 0.0
  %2253 = vmatpush1.msra.mxu0 %v2211
  %2254 = vmatprep.subr.mxu0 0.0
  %2255 = vmatpush1.msra.mxu0 %v2209
  %2256 = vmatprep.subr.mxu0 0.0
  %2257 = vmatpush1.msra.mxu0 %v2207
  %2258 = vmatprep.subr.mxu0 0.0
  %2259 = vmatpush1.msra.mxu0 %v2205
  %2260 = vmatprep.subr.mxu0 0.0
  %2261 = vmatpush2.msra.mxu0 0.0
  %2262 = vmatprep.subr.mxu0 0.0
  %2263 = vmatpush2.msra.mxu0 0.0
  %2264 = vmatprep.subr.mxu0 0.0
  %2265 = vmatpush2.msra.mxu0 0.0
  %2266 = vmatprep.subr.mxu0 0.0
  %2267 = vmatpush2.msra.mxu0 0.0
  %2268 = vmatprep.subr.mxu0 0.0
  %2269 = vmatpush2.msra.mxu0 0.0
  %2270 = vmatprep.subr.mxu0 0.0
  %2271 = vmatpush2.msra.mxu0 0.0
  %2272 = vmatprep.subr.mxu0 0.0
  %2273 = vmatpush2.msra.mxu0 0.0
  %2274 = vmatprep.subr.mxu0 0.0
  %2275 = vmatpush2.msra.mxu0 0.0
  %2276 = vmatprep.subr.mxu0 0.0
  %2277 = vmatpush2.msra.mxu0 0.0
  %2278 = vmatprep.subr.mxu0 0.0
  %2279 = vmatpush2.msra.mxu0 0.0
  %2280 = vmatprep.subr.mxu0 0.0
  %2281 = vmatpush2.msra.mxu0 0.0
  %2282 = vmatprep.subr.mxu0 0.0
  %2283 = vmatpush2.msra.mxu0 0.0
  %2284 = vmatprep.subr.mxu0 0.0
  %2285 = vmatpush2.msra.mxu0 0.0
  %2286 = vmatprep.subr.mxu0 0.0
  %2287 = vmatpush2.msra.mxu0 0.0
  %2288 = vmatprep.subr.mxu0 0.0
  %2289 = vmatpush2.msra.mxu0 0.0
  %2290 = vmatprep.subr.mxu0 0.0
  %2291 = vmatpush2.msra.mxu0 0.0
  %2292 = vmatprep.mubr.f32.mxu0 0.0
  %2293 = vmatmul.mubr.f32.gmra.mxu0 %v2217
  %v2294 = vpop.f32.mrf.mxu0
  %v2295 = vadd.f32 0.0, %v2294
  %v2296 = vpop.f32.mrf.mxu0
  %2297 = vmatprep.mubr.f32.mxu0 0.0
  %2298 = vmatmul.mubr.f32.gmra.mxu0 %v2220
  %v2299 = vpop.f32.mrf.mxu0
  %v2300 = vadd.f32 0.0, %v2299
  %v2301 = vpop.f32.mrf.mxu0
  %2302 = vmatprep.mubr.f32.mxu0 0.0
  %2303 = vmatmul.mubr.f32.gmra.mxu0 %v2223
  %v2304 = vpop.f32.mrf.mxu0
  %v2305 = vadd.f32 0.0, %v2304
  %v2306 = vpop.f32.mrf.mxu0
  %2307 = vmatprep.mubr.f32.mxu0 0.0
  %2308 = vmatmul.mubr.f32.gmra.mxu0 %v2226
  %v2309 = vpop.f32.mrf.mxu0
  %v2310 = vadd.f32 0.0, %v2309
  %v2311 = vpop.f32.mrf.mxu0
  %2312 = vdwg.mxu0
  %2317 = vrot.lane.b32.xlu0 %v2295, 16
  %v2318 = vpop.permute.xlu0 %2317
  %2319 = vrot.lane.b32.xlu0 %v2300, 16
  %v2320 = vpop.permute.xlu0 %2319
  %2321 = vrot.lane.b32.xlu0 %v2305, 16
  %v2322 = vpop.permute.xlu0 %2321
  %2323 = vrot.lane.b32.xlu0 %v2310, 16
  %v2324 = vpop.permute.xlu0 %2323
  %2329 = vst.msk [vmem:[#allocation2 + $0x20] sm:$0xff] %vm1764, %v2318
  %2330 = vst.msk [vmem:[#allocation2 + $0x28] sm:$0xff] %vm1764, %v2320
  %2331 = vst.msk [vmem:[#allocation2 + $0x30] sm:$0xff] %vm1764, %v2322
  %2332 = vst.msk [vmem:[#allocation2 + $0x38] sm:$0xff] %vm1764, %v2324
  %v2333 = vld [vmem:[#allocation2] sm:$0xff]
  %v2334 = vld [vmem:[#allocation2 + $0x8] sm:$0xff]
  %v2335 = vld [vmem:[#allocation2 + $0x10] sm:$0xff]
  %v2336 = vld [vmem:[#allocation2 + $0x18] sm:$0xff]
  %v2337 = vld [vmem:[#allocation2 + $0x20] sm:$0xff]
  %v2338 = vld [vmem:[#allocation2 + $0x28] sm:$0xff]
  %v2339 = vld [vmem:[#allocation2 + $0x30] sm:$0xff]
  %v2340 = vld [vmem:[#allocation2 + $0x38] sm:$0xff]
  %v2341 = vld [vmem:[%s17] sm:$0xff]
  %v2342 = vld [vmem:[%s17 + $0x8] sm:$0xff]
  %v2343 = vld [vmem:[%s17 + $0x10] sm:$0xff]
  %v2344 = vld [vmem:[%s17 + $0x18] sm:$0xff]
  %v2345 = vld [vmem:[%s18] sm:$0x1]
  %v2347 = vlaneseq
  %v2348 = vshrl.u32 %v2347, 7
  %v2349 = vsub.s32 0, %v2348
  %v2350 = vrot.slane %v2345, %v2349
  %v2353 = vsel %vm475, %v2333, 0
  %v2356 = vsel %vm475, %v2334, 0
  %v2359 = vsel %vm475, %v2335, 0
  %v2362 = vsel %vm475, %v2336, 0
  %v2365 = vsel %vm475, %v2337, 0
  %v2368 = vsel %vm475, %v2338, 0
  %v2371 = vsel %vm475, %v2339, 0
  %v2374 = vsel %vm475, %v2340, 0
  %v2377 = vsel %vm475, %v2341, 0
  %v2380 = vsel %vm475, %v2342, 0
  %v2383 = vsel %vm475, %v2343, 0
  %v2386 = vsel %vm475, %v2344, 0
  %2388 = vmatprep.subr.mxu0 0.0
  %2389 = vmatpush1.xpose.msra.mxu0 0.0
  %2390 = vmatprep.subr.mxu0 0.0
  %2391 = vmatpush1.xpose.msra.mxu0 0.0
  %2392 = vmatprep.subr.mxu0 0.0
  %2393 = vmatpush1.xpose.msra.mxu0 0.0
  %2394 = vmatprep.subr.mxu0 0.0
  %2395 = vmatpush1.xpose.msra.mxu0 0.0
  %2396 = vmatprep.subr.mxu0 0.0
  %2397 = vmatpush1.xpose.msra.mxu0 0.0
  %2398 = vmatprep.subr.mxu0 0.0
  %2399 = vmatpush1.xpose.msra.mxu0 0.0
  %2400 = vmatprep.subr.mxu0 0.0
  %2401 = vmatpush1.xpose.msra.mxu0 0.0
  %2402 = vmatprep.subr.mxu0 0.0
  %2403 = vmatpush1.xpose.msra.mxu0 0.0
  %2404 = vmatprep.subr.mxu0 0.0
  %2405 = vmatpush1.xpose.msra.mxu0 0.0
  %2406 = vmatprep.subr.mxu0 0.0
  %2407 = vmatpush1.xpose.msra.mxu0 0.0
  %2408 = vmatprep.subr.mxu0 0.0
  %2409 = vmatpush1.xpose.msra.mxu0 0.0
  %2410 = vmatprep.subr.mxu0 0.0
  %2411 = vmatpush1.xpose.msra.mxu0 0.0
  %2412 = vmatprep.subr.mxu0 0.0
  %2413 = vmatpush1.xpose.msra.mxu0 %v2386
  %2414 = vmatprep.subr.mxu0 0.0
  %2415 = vmatpush1.xpose.msra.mxu0 %v2383
  %2416 = vmatprep.subr.mxu0 0.0
  %2417 = vmatpush1.xpose.msra.mxu0 %v2380
  %2418 = vmatprep.subr.mxu0 0.0
  %2419 = vmatpush1.xpose.msra.mxu0 %v2377
  %2420 = vmatprep.subr.mxu0 0.0
  %2421 = vmatpush2.xpose.msra.mxu0 0.0
  %2422 = vmatprep.subr.mxu0 0.0
  %2423 = vmatpush2.xpose.msra.mxu0 0.0
  %2424 = vmatprep.subr.mxu0 0.0
  %2425 = vmatpush2.xpose.msra.mxu0 0.0
  %2426 = vmatprep.subr.mxu0 0.0
  %2427 = vmatpush2.xpose.msra.mxu0 0.0
  %2428 = vmatprep.subr.mxu0 0.0
  %2429 = vmatpush2.xpose.msra.mxu0 0.0
  %2430 = vmatprep.subr.mxu0 0.0
  %2431 = vmatpush2.xpose.msra.mxu0 0.0
  %2432 = vmatprep.subr.mxu0 0.0
  %2433 = vmatpush2.xpose.msra.mxu0 0.0
  %2434 = vmatprep.subr.mxu0 0.0
  %2435 = vmatpush2.xpose.msra.mxu0 0.0
  %2436 = vmatprep.subr.mxu0 0.0
  %2437 = vmatpush2.xpose.msra.mxu0 0.0
  %2438 = vmatprep.subr.mxu0 0.0
  %2439 = vmatpush2.xpose.msra.mxu0 0.0
  %2440 = vmatprep.subr.mxu0 0.0
  %2441 = vmatpush2.xpose.msra.mxu0 0.0
  %2442 = vmatprep.subr.mxu0 0.0
  %2443 = vmatpush2.xpose.msra.mxu0 0.0
  %2444 = vmatprep.subr.mxu0 0.0
  %2445 = vmatpush2.xpose.msra.mxu0 0.0
  %2446 = vmatprep.subr.mxu0 0.0
  %2447 = vmatpush2.xpose.msra.mxu0 0.0
  %2448 = vmatprep.subr.mxu0 0.0
  %2449 = vmatpush2.xpose.msra.mxu0 0.0
  %2450 = vmatprep.subr.mxu0 0.0
  %2451 = vmatpush2.xpose.msra.mxu0 0.0
  %2452 = vmatprep.mubr.f32.mxu0 0.0
  %2453 = vmatmul.mubr.f32.gmra.mxu0 %v2353
  %v2454 = vpop.f32.mrf.mxu0
  %v2455 = vadd.f32 %v2350, %v2454
  %v2456 = vpop.f32.mrf.mxu0
  %2457 = vmatprep.mubr.f32.mxu0 0.0
  %2458 = vmatmul.mubr.f32.gmra.mxu0 %v2356
  %v2459 = vpop.f32.mrf.mxu0
  %v2460 = vadd.f32 %v2350, %v2459
  %v2461 = vpop.f32.mrf.mxu0
  %2462 = vmatprep.mubr.f32.mxu0 0.0
  %2463 = vmatmul.mubr.f32.gmra.mxu0 %v2359
  %v2464 = vpop.f32.mrf.mxu0
  %v2465 = vadd.f32 %v2350, %v2464
  %v2466 = vpop.f32.mrf.mxu0
  %2467 = vmatprep.mubr.f32.mxu0 0.0
  %2468 = vmatmul.mubr.f32.gmra.mxu0 %v2362
  %v2469 = vpop.f32.mrf.mxu0
  %v2470 = vadd.f32 %v2350, %v2469
  %v2471 = vpop.f32.mrf.mxu0
  %2472 = vmatprep.mubr.f32.mxu0 0.0
  %2473 = vmatmul.mubr.f32.gmra.mxu0 %v2365
  %v2474 = vpop.f32.mrf.mxu0
  %v2475 = vadd.f32 %v2350, %v2474
  %v2476 = vpop.f32.mrf.mxu0
  %2477 = vmatprep.mubr.f32.mxu0 0.0
  %2478 = vmatmul.mubr.f32.gmra.mxu0 %v2368
  %v2479 = vpop.f32.mrf.mxu0
  %v2480 = vadd.f32 %v2350, %v2479
  %v2481 = vpop.f32.mrf.mxu0
  %2482 = vmatprep.mubr.f32.mxu0 0.0
  %2483 = vmatmul.mubr.f32.gmra.mxu0 %v2371
  %v2484 = vpop.f32.mrf.mxu0
  %v2485 = vadd.f32 %v2350, %v2484
  %v2486 = vpop.f32.mrf.mxu0
  %2487 = vmatprep.mubr.f32.mxu0 0.0
  %2488 = vmatmul.mubr.f32.gmra.mxu0 %v2374
  %v2489 = vpop.f32.mrf.mxu0
  %v2490 = vadd.f32 %v2350, %v2489
  %v2491 = vpop.f32.mrf.mxu0
  %2492 = vdwg.mxu0
  %v2493 = vadd.f32 %v620, %v2455
  %v2494 = vadd.f32 %v621, %v2460
  %v2495 = vadd.f32 %v622, %v2465
  %v2496 = vadd.f32 %v623, %v2470
  %v2497 = vadd.f32 %v624, %v2475
  %v2498 = vadd.f32 %v625, %v2480
  %v2499 = vadd.f32 %v626, %v2485
  %v2500 = vadd.f32 %v627, %v2490
  %v2501 = vld [vmem:[%s19] sm:$0x1]
  %v2502 = vld [vmem:[%s20] sm:$0x1]
  %v2503 = vsel %vm475, %v2493, 0.0
  %2504 = vadd.xlane.f32.xlu0 %v2503
  %v2505 = vpop.xlane.xlu0 %2504
  %v2506 = vsel %vm475, %v2494, 0.0
  %2507 = vadd.xlane.f32.xlu0 %v2506
  %v2508 = vpop.xlane.xlu0 %2507
  %v2509 = vsel %vm475, %v2495, 0.0
  %2510 = vadd.xlane.f32.xlu0 %v2509
  %v2511 = vpop.xlane.xlu0 %2510
  %v2512 = vsel %vm475, %v2496, 0.0
  %2513 = vadd.xlane.f32.xlu0 %v2512
  %v2514 = vpop.xlane.xlu0 %2513
  %v2515 = vsel %vm475, %v2497, 0.0
  %2516 = vadd.xlane.f32.xlu0 %v2515
  %v2517 = vpop.xlane.xlu0 %2516
  %v2518 = vsel %vm475, %v2498, 0.0
  %2519 = vadd.xlane.f32.xlu0 %v2518
  %v2520 = vpop.xlane.xlu0 %2519
  %v2521 = vsel %vm475, %v2499, 0.0
  %2522 = vadd.xlane.f32.xlu0 %v2521
  %v2523 = vpop.xlane.xlu0 %2522
  %v2524 = vsel %vm475, %v2500, 0.0
  %2525 = vadd.xlane.f32.xlu0 %v2524
  %v2526 = vpop.xlane.xlu0 %2525
  %v2527 = vmul.f32 %v2505, %v519
  %v2528 = vmul.f32 %v2508, %v519
  %v2529 = vmul.f32 %v2511, %v519
  %v2530 = vmul.f32 %v2514, %v519
  %v2531 = vmul.f32 %v2517, %v519
  %v2532 = vmul.f32 %v2520, %v519
  %v2533 = vmul.f32 %v2523, %v519
  %v2534 = vmul.f32 %v2526, %v519
  %v2535 = vsub.f32 %v2493, %v2527
  %v2536 = vsub.f32 %v2494, %v2528
  %v2537 = vsub.f32 %v2495, %v2529
  %v2538 = vsub.f32 %v2496, %v2530
  %v2539 = vsub.f32 %v2497, %v2531
  %v2540 = vsub.f32 %v2498, %v2532
  %v2541 = vsub.f32 %v2499, %v2533
  %v2542 = vsub.f32 %v2500, %v2534
  %v2543 = vmul.f32 %v2535, %v2535
  %v2544 = vmul.f32 %v2536, %v2536
  %v2545 = vmul.f32 %v2537, %v2537
  %v2546 = vmul.f32 %v2538, %v2538
  %v2547 = vmul.f32 %v2539, %v2539
  %v2548 = vmul.f32 %v2540, %v2540
  %v2549 = vmul.f32 %v2541, %v2541
  %v2550 = vmul.f32 %v2542, %v2542
  %v2551 = vsel %vm475, %v2543, 0.0
  %2552 = vadd.xlane.f32.xlu0 %v2551
  %v2553 = vpop.xlane.xlu0 %2552
  %v2554 = vsel %vm475, %v2544, 0.0
  %2555 = vadd.xlane.f32.xlu0 %v2554
  %v2556 = vpop.xlane.xlu0 %2555
  %v2557 = vsel %vm475, %v2545, 0.0
  %2558 = vadd.xlane.f32.xlu0 %v2557
  %v2559 = vpop.xlane.xlu0 %2558
  %v2560 = vsel %vm475, %v2546, 0.0
  %2561 = vadd.xlane.f32.xlu0 %v2560
  %v2562 = vpop.xlane.xlu0 %2561
  %v2563 = vsel %vm475, %v2547, 0.0
  %2564 = vadd.xlane.f32.xlu0 %v2563
  %v2565 = vpop.xlane.xlu0 %2564
  %v2566 = vsel %vm475, %v2548, 0.0
  %2567 = vadd.xlane.f32.xlu0 %v2566
  %v2568 = vpop.xlane.xlu0 %2567
  %v2569 = vsel %vm475, %v2549, 0.0
  %2570 = vadd.xlane.f32.xlu0 %v2569
  %v2571 = vpop.xlane.xlu0 %2570
  %v2572 = vsel %vm475, %v2550, 0.0
  %2573 = vadd.xlane.f32.xlu0 %v2572
  %v2574 = vpop.xlane.xlu0 %2573
  %v2575 = vmul.f32 %v2553, %v519
  %v2576 = vmul.f32 %v2556, %v519
  %v2577 = vmul.f32 %v2559, %v519
  %v2578 = vmul.f32 %v2562, %v519
  %v2579 = vmul.f32 %v2565, %v519
  %v2580 = vmul.f32 %v2568, %v519
  %v2581 = vmul.f32 %v2571, %v519
  %v2582 = vmul.f32 %v2574, %v519
  %v2583 = vadd.f32 %v2575, 1e-05
  %v2584 = vadd.f32 %v2576, 1e-05
  %v2585 = vadd.f32 %v2577, 1e-05
  %v2586 = vadd.f32 %v2578, 1e-05
  %v2587 = vadd.f32 %v2579, 1e-05
  %v2588 = vadd.f32 %v2580, 1e-05
  %v2589 = vadd.f32 %v2581, 1e-05
  %v2590 = vadd.f32 %v2582, 1e-05
  %v2591 = vrsqrt.pop %v2583
  %v2592 = vrsqrt.pop %v2584
  %v2593 = vrsqrt.pop %v2585
  %v2594 = vrsqrt.pop %v2586
  %v2595 = vrsqrt.pop %v2587
  %v2596 = vrsqrt.pop %v2588
  %v2597 = vrsqrt.pop %v2589
  %v2598 = vrsqrt.pop %v2590
  %v2599 = vmul.f32 %v2535, %v2591
  %v2600 = vmul.f32 %v2536, %v2592
  %v2601 = vmul.f32 %v2537, %v2593
  %v2602 = vmul.f32 %v2538, %v2594
  %v2603 = vmul.f32 %v2539, %v2595
  %v2604 = vmul.f32 %v2540, %v2596
  %v2605 = vmul.f32 %v2541, %v2597
  %v2606 = vmul.f32 %v2542, %v2598
  %v2608 = vlaneseq
  %v2609 = vshrl.u32 %v2608, 7
  %v2610 = vsub.s32 0, %v2609
  %v2611 = vrot.slane %v2501, %v2610
  %v2613 = vmul.f32 %v2599, %v2611
  %v2614 = vmul.f32 %v2600, %v2611
  %v2615 = vmul.f32 %v2601, %v2611
  %v2616 = vmul.f32 %v2602, %v2611
  %v2617 = vmul.f32 %v2603, %v2611
  %v2618 = vmul.f32 %v2604, %v2611
  %v2619 = vmul.f32 %v2605, %v2611
  %v2620 = vmul.f32 %v2606, %v2611
  %v2622 = vlaneseq
  %v2623 = vshrl.u32 %v2622, 7
  %v2624 = vsub.s32 0, %v2623
  %v2625 = vrot.slane %v2502, %v2624
  %v2627 = vadd.f32 %v2613, %v2625
  %v2628 = vadd.f32 %v2614, %v2625
  %v2629 = vadd.f32 %v2615, %v2625
  %v2630 = vadd.f32 %v2616, %v2625
  %v2631 = vadd.f32 %v2617, %v2625
  %v2632 = vadd.f32 %v2618, %v2625
  %v2633 = vadd.f32 %v2619, %v2625
  %v2634 = vadd.f32 %v2620, %v2625
  %v2635 = vld [vmem:[%s21] sm:$0xff]
  %v2636 = vld [vmem:[%s21 + $0x8] sm:$0xff]
  %v2637 = vld [vmem:[%s21 + $0x10] sm:$0xff]
  %v2638 = vld [vmem:[%s21 + $0x18] sm:$0xff]
  %v2639 = vld [vmem:[%s21 + $0x20] sm:$0xff]
  %v2640 = vld [vmem:[%s21 + $0x28] sm:$0xff]
  %v2641 = vld [vmem:[%s21 + $0x30] sm:$0xff]
  %v2642 = vld [vmem:[%s21 + $0x38] sm:$0xff]
  %v2643 = vld [vmem:[%s21 + $0x40] sm:$0xff]
  %v2644 = vld [vmem:[%s21 + $0x48] sm:$0xff]
  %v2645 = vld [vmem:[%s21 + $0x50] sm:$0xff]
  %v2646 = vld [vmem:[%s21 + $0x58] sm:$0xff]
  %v2647 = vld [vmem:[%s21 + $0x60] sm:$0xff]
  %v2648 = vld [vmem:[%s21 + $0x68] sm:$0xff]
  %v2649 = vld [vmem:[%s21 + $0x70] sm:$0xff]
  %v2650 = vld [vmem:[%s21 + $0x78] sm:$0xff]
  %v2651 = vld [vmem:[%s22] sm:$0x1]
  %v2653 = vlaneseq
  %v2654 = vshrl.u32 %v2653, 7
  %v2655 = vsub.s32 0, %v2654
  %v2656 = vrot.slane %v2651, %v2655
  %v2659 = vsel %vm475, %v2627, 0
  %v2662 = vsel %vm475, %v2628, 0
  %v2665 = vsel %vm475, %v2629, 0
  %v2668 = vsel %vm475, %v2630, 0
  %v2671 = vsel %vm475, %v2631, 0
  %v2674 = vsel %vm475, %v2632, 0
  %v2677 = vsel %vm475, %v2633, 0
  %v2680 = vsel %vm475, %v2634, 0
  %v2683 = vsel %vm475, %v2635, 0
  %v2686 = vsel %vm475, %v2636, 0
  %v2689 = vsel %vm475, %v2637, 0
  %v2692 = vsel %vm475, %v2638, 0
  %v2695 = vsel %vm475, %v2639, 0
  %v2698 = vsel %vm475, %v2640, 0
  %v2701 = vsel %vm475, %v2641, 0
  %v2704 = vsel %vm475, %v2642, 0
  %v2707 = vsel %vm475, %v2643, 0
  %v2710 = vsel %vm475, %v2644, 0
  %v2713 = vsel %vm475, %v2645, 0
  %v2716 = vsel %vm475, %v2646, 0
  %v2719 = vsel %vm475, %v2647, 0
  %v2722 = vsel %vm475, %v2648, 0
  %v2725 = vsel %vm475, %v2649, 0
  %v2728 = vsel %vm475, %v2650, 0
  %2730 = vmatprep.subr.mxu0 0.0
  %2731 = vmatpush1.xpose.msra.mxu0 %v2728
  %2732 = vmatprep.subr.mxu0 0.0
  %2733 = vmatpush1.xpose.msra.mxu0 %v2725
  %2734 = vmatprep.subr.mxu0 0.0
  %2735 = vmatpush1.xpose.msra.mxu0 %v2722
  %2736 = vmatprep.subr.mxu0 0.0
  %2737 = vmatpush1.xpose.msra.mxu0 %v2719
  %2738 = vmatprep.subr.mxu0 0.0
  %2739 = vmatpush1.xpose.msra.mxu0 %v2716
  %2740 = vmatprep.subr.mxu0 0.0
  %2741 = vmatpush1.xpose.msra.mxu0 %v2713
  %2742 = vmatprep.subr.mxu0 0.0
  %2743 = vmatpush1.xpose.msra.mxu0 %v2710
  %2744 = vmatprep.subr.mxu0 0.0
  %2745 = vmatpush1.xpose.msra.mxu0 %v2707
  %2746 = vmatprep.subr.mxu0 0.0
  %2747 = vmatpush1.xpose.msra.mxu0 %v2704
  %2748 = vmatprep.subr.mxu0 0.0
  %2749 = vmatpush1.xpose.msra.mxu0 %v2701
  %2750 = vmatprep.subr.mxu0 0.0
  %2751 = vmatpush1.xpose.msra.mxu0 %v2698
  %2752 = vmatprep.subr.mxu0 0.0
  %2753 = vmatpush1.xpose.msra.mxu0 %v2695
  %2754 = vmatprep.subr.mxu0 0.0
  %2755 = vmatpush1.xpose.msra.mxu0 %v2692
  %2756 = vmatprep.subr.mxu0 0.0
  %2757 = vmatpush1.xpose.msra.mxu0 %v2689
  %2758 = vmatprep.subr.mxu0 0.0
  %2759 = vmatpush1.xpose.msra.mxu0 %v2686
  %2760 = vmatprep.subr.mxu0 0.0
  %2761 = vmatpush1.xpose.msra.mxu0 %v2683
  %2762 = vmatprep.subr.mxu0 0.0
  %2763 = vmatpush2.xpose.msra.mxu0 0.0
  %2764 = vmatprep.subr.mxu0 0.0
  %2765 = vmatpush2.xpose.msra.mxu0 0.0
  %2766 = vmatprep.subr.mxu0 0.0
  %2767 = vmatpush2.xpose.msra.mxu0 0.0
  %2768 = vmatprep.subr.mxu0 0.0
  %2769 = vmatpush2.xpose.msra.mxu0 0.0
  %2770 = vmatprep.subr.mxu0 0.0
  %2771 = vmatpush2.xpose.msra.mxu0 0.0
  %2772 = vmatprep.subr.mxu0 0.0
  %2773 = vmatpush2.xpose.msra.mxu0 0.0
  %2774 = vmatprep.subr.mxu0 0.0
  %2775 = vmatpush2.xpose.msra.mxu0 0.0
  %2776 = vmatprep.subr.mxu0 0.0
  %2777 = vmatpush2.xpose.msra.mxu0 0.0
  %2778 = vmatprep.subr.mxu0 0.0
  %2779 = vmatpush2.xpose.msra.mxu0 0.0
  %2780 = vmatprep.subr.mxu0 0.0
  %2781 = vmatpush2.xpose.msra.mxu0 0.0
  %2782 = vmatprep.subr.mxu0 0.0
  %2783 = vmatpush2.xpose.msra.mxu0 0.0
  %2784 = vmatprep.subr.mxu0 0.0
  %2785 = vmatpush2.xpose.msra.mxu0 0.0
  %2786 = vmatprep.subr.mxu0 0.0
  %2787 = vmatpush2.xpose.msra.mxu0 0.0
  %2788 = vmatprep.subr.mxu0 0.0
  %2789 = vmatpush2.xpose.msra.mxu0 0.0
  %2790 = vmatprep.subr.mxu0 0.0
  %2791 = vmatpush2.xpose.msra.mxu0 0.0
  %2792 = vmatprep.subr.mxu0 0.0
  %2793 = vmatpush2.xpose.msra.mxu0 0.0
  %2794 = vmatprep.mubr.f32.mxu0 0.0
  %2795 = vmatmul.mubr.f32.gmra.mxu0 %v2659
  %v2796 = vpop.f32.mrf.mxu0
  %v2797 = vadd.f32 %v2656, %v2796
  %v2798 = vpop.f32.mrf.mxu0
  %2799 = vmatprep.mubr.f32.mxu0 0.0
  %2800 = vmatmul.mubr.f32.gmra.mxu0 %v2662
  %v2801 = vpop.f32.mrf.mxu0
  %v2802 = vadd.f32 %v2656, %v2801
  %v2803 = vpop.f32.mrf.mxu0
  %2804 = vmatprep.mubr.f32.mxu0 0.0
  %2805 = vmatmul.mubr.f32.gmra.mxu0 %v2665
  %v2806 = vpop.f32.mrf.mxu0
  %v2807 = vadd.f32 %v2656, %v2806
  %v2808 = vpop.f32.mrf.mxu0
  %2809 = vmatprep.mubr.f32.mxu0 0.0
  %2810 = vmatmul.mubr.f32.gmra.mxu0 %v2668
  %v2811 = vpop.f32.mrf.mxu0
  %v2812 = vadd.f32 %v2656, %v2811
  %v2813 = vpop.f32.mrf.mxu0
  %2814 = vmatprep.mubr.f32.mxu0 0.0
  %2815 = vmatmul.mubr.f32.gmra.mxu0 %v2671
  %v2816 = vpop.f32.mrf.mxu0
  %v2817 = vadd.f32 %v2656, %v2816
  %v2818 = vpop.f32.mrf.mxu0
  %2819 = vmatprep.mubr.f32.mxu0 0.0
  %2820 = vmatmul.mubr.f32.gmra.mxu0 %v2674
  %v2821 = vpop.f32.mrf.mxu0
  %v2822 = vadd.f32 %v2656, %v2821
  %v2823 = vpop.f32.mrf.mxu0
  %2824 = vmatprep.mubr.f32.mxu0 0.0
  %2825 = vmatmul.mubr.f32.gmra.mxu0 %v2677
  %v2826 = vpop.f32.mrf.mxu0
  %v2827 = vadd.f32 %v2656, %v2826
  %v2828 = vpop.f32.mrf.mxu0
  %2829 = vmatprep.mubr.f32.mxu0 0.0
  %2830 = vmatmul.mubr.f32.gmra.mxu0 %v2680
  %v2831 = vpop.f32.mrf.mxu0
  %v2832 = vadd.f32 %v2656, %v2831
  %v2833 = vpop.f32.mrf.mxu0
  %2834 = vdwg.mxu0
  %v2835 = vmul.f32 %v2797, 0.5
  %v2836 = vmul.f32 %v2802, 0.5
  %v2837 = vmul.f32 %v2807, 0.5
  %v2838 = vmul.f32 %v2812, 0.5
  %v2839 = vmul.f32 %v2817, 0.5
  %v2840 = vmul.f32 %v2822, 0.5
  %v2841 = vmul.f32 %v2827, 0.5
  %v2842 = vmul.f32 %v2832, 0.5
  %v2843 = vmul.f32 %v2797, 0.70710677
  %v2844 = vmul.f32 %v2802, 0.70710677
  %v2845 = vmul.f32 %v2807, 0.70710677
  %v2846 = vmul.f32 %v2812, 0.70710677
  %v2847 = vmul.f32 %v2817, 0.70710677
  %v2848 = vmul.f32 %v2822, 0.70710677
  %v2849 = vmul.f32 %v2827, 0.70710677
  %v2850 = vmul.f32 %v2832, 0.70710677
  %v2851 = verf.f32.pop %v2843
  %v2852 = verf.f32.pop %v2844
  %v2853 = verf.f32.pop %v2845
  %v2854 = verf.f32.pop %v2846
  %v2855 = verf.f32.pop %v2847
  %v2856 = verf.f32.pop %v2848
  %v2857 = verf.f32.pop %v2849
  %v2858 = verf.f32.pop %v2850
  %v2859 = vadd.f32 %v2851, 1.0
  %v2860 = vadd.f32 %v2852, 1.0
  %v2861 = vadd.f32 %v2853, 1.0
  %v2862 = vadd.f32 %v2854, 1.0
  %v2863 = vadd.f32 %v2855, 1.0
  %v2864 = vadd.f32 %v2856, 1.0
  %v2865 = vadd.f32 %v2857, 1.0
  %v2866 = vadd.f32 %v2858, 1.0
  %v2867 = vmul.f32 %v2835, %v2859
  %v2868 = vmul.f32 %v2836, %v2860
  %v2869 = vmul.f32 %v2837, %v2861
  %v2870 = vmul.f32 %v2838, %v2862
  %v2871 = vmul.f32 %v2839, %v2863
  %v2872 = vmul.f32 %v2840, %v2864
  %v2873 = vmul.f32 %v2841, %v2865
  %v2874 = vmul.f32 %v2842, %v2866
  %v2875 = vld [vmem:[%s23] sm:$0xff]
  %v2876 = vld [vmem:[%s23 + $0x8] sm:$0xff]
  %v2877 = vld [vmem:[%s23 + $0x10] sm:$0xff]
  %v2878 = vld [vmem:[%s23 + $0x18] sm:$0xff]
  %v2879 = vld [vmem:[%s24] sm:$0x1]
  %v2881 = vlaneseq
  %v2882 = vshrl.u32 %v2881, 7
  %v2883 = vsub.s32 0, %v2882
  %v2884 = vrot.slane %v2879, %v2883
  %2886 = vmatprep.subr.mxu0 0.0
  %2887 = vmatpush1.xpose.msra.mxu0 0.0
  %2888 = vmatprep.subr.mxu0 0.0
  %2889 = vmatpush1.xpose.msra.mxu0 0.0
  %2890 = vmatprep.subr.mxu0 0.0
  %2891 = vmatpush1.xpose.msra.mxu0 0.0
  %2892 = vmatprep.subr.mxu0 0.0
  %2893 = vmatpush1.xpose.msra.mxu0 0.0
  %2894 = vmatprep.subr.mxu0 0.0
  %2895 = vmatpush1.xpose.msra.mxu0 0.0
  %2896 = vmatprep.subr.mxu0 0.0
  %2897 = vmatpush1.xpose.msra.mxu0 0.0
  %2898 = vmatprep.subr.mxu0 0.0
  %2899 = vmatpush1.xpose.msra.mxu0 0.0
  %2900 = vmatprep.subr.mxu0 0.0
  %2901 = vmatpush1.xpose.msra.mxu0 0.0
  %2902 = vmatprep.subr.mxu0 0.0
  %2903 = vmatpush1.xpose.msra.mxu0 0.0
  %2904 = vmatprep.subr.mxu0 0.0
  %2905 = vmatpush1.xpose.msra.mxu0 0.0
  %2906 = vmatprep.subr.mxu0 0.0
  %2907 = vmatpush1.xpose.msra.mxu0 0.0
  %2908 = vmatprep.subr.mxu0 0.0
  %2909 = vmatpush1.xpose.msra.mxu0 0.0
  %2910 = vmatprep.subr.mxu0 0.0
  %2911 = vmatpush1.xpose.msra.mxu0 %v2878
  %2912 = vmatprep.subr.mxu0 0.0
  %2913 = vmatpush1.xpose.msra.mxu0 %v2877
  %2914 = vmatprep.subr.mxu0 0.0
  %2915 = vmatpush1.xpose.msra.mxu0 %v2876
  %2916 = vmatprep.subr.mxu0 0.0
  %2917 = vmatpush1.xpose.msra.mxu0 %v2875
  %2918 = vmatprep.subr.mxu0 0.0
  %2919 = vmatpush2.xpose.msra.mxu0 0.0
  %2920 = vmatprep.subr.mxu0 0.0
  %2921 = vmatpush2.xpose.msra.mxu0 0.0
  %2922 = vmatprep.subr.mxu0 0.0
  %2923 = vmatpush2.xpose.msra.mxu0 0.0
  %2924 = vmatprep.subr.mxu0 0.0
  %2925 = vmatpush2.xpose.msra.mxu0 0.0
  %2926 = vmatprep.subr.mxu0 0.0
  %2927 = vmatpush2.xpose.msra.mxu0 0.0
  %2928 = vmatprep.subr.mxu0 0.0
  %2929 = vmatpush2.xpose.msra.mxu0 0.0
  %2930 = vmatprep.subr.mxu0 0.0
  %2931 = vmatpush2.xpose.msra.mxu0 0.0
  %2932 = vmatprep.subr.mxu0 0.0
  %2933 = vmatpush2.xpose.msra.mxu0 0.0
  %2934 = vmatprep.subr.mxu0 0.0
  %2935 = vmatpush2.xpose.msra.mxu0 0.0
  %2936 = vmatprep.subr.mxu0 0.0
  %2937 = vmatpush2.xpose.msra.mxu0 0.0
  %2938 = vmatprep.subr.mxu0 0.0
  %2939 = vmatpush2.xpose.msra.mxu0 0.0
  %2940 = vmatprep.subr.mxu0 0.0
  %2941 = vmatpush2.xpose.msra.mxu0 0.0
  %2942 = vmatprep.subr.mxu0 0.0
  %2943 = vmatpush2.xpose.msra.mxu0 0.0
  %2944 = vmatprep.subr.mxu0 0.0
  %2945 = vmatpush2.xpose.msra.mxu0 0.0
  %2946 = vmatprep.subr.mxu0 0.0
  %2947 = vmatpush2.xpose.msra.mxu0 0.0
  %2948 = vmatprep.subr.mxu0 0.0
  %2949 = vmatpush2.xpose.msra.mxu0 0.0
  %2950 = vmatprep.mubr.f32.mxu0 0.0
  %2951 = vmatmul.mubr.f32.gmra.mxu0 %v2867
  %v2952 = vpop.f32.mrf.mxu0
  %v2953 = vadd.f32 %v2884, %v2952
  %v2954 = vpop.f32.mrf.mxu0
  %2955 = vmatprep.mubr.f32.mxu0 0.0
  %2956 = vmatmul.mubr.f32.gmra.mxu0 %v2868
  %v2957 = vpop.f32.mrf.mxu0
  %v2958 = vadd.f32 %v2884, %v2957
  %v2959 = vpop.f32.mrf.mxu0
  %2960 = vmatprep.mubr.f32.mxu0 0.0
  %2961 = vmatmul.mubr.f32.gmra.mxu0 %v2869
  %v2962 = vpop.f32.mrf.mxu0
  %v2963 = vadd.f32 %v2884, %v2962
  %v2964 = vpop.f32.mrf.mxu0
  %2965 = vmatprep.mubr.f32.mxu0 0.0
  %2966 = vmatmul.mubr.f32.gmra.mxu0 %v2870
  %v2967 = vpop.f32.mrf.mxu0
  %v2968 = vadd.f32 %v2884, %v2967
  %v2969 = vpop.f32.mrf.mxu0
  %2970 = vmatprep.mubr.f32.mxu0 0.0
  %2971 = vmatmul.mubr.f32.gmra.mxu0 %v2871
  %v2972 = vpop.f32.mrf.mxu0
  %v2973 = vadd.f32 %v2884, %v2972
  %v2974 = vpop.f32.mrf.mxu0
  %2975 = vmatprep.mubr.f32.mxu0 0.0
  %2976 = vmatmul.mubr.f32.gmra.mxu0 %v2872
  %v2977 = vpop.f32.mrf.mxu0
  %v2978 = vadd.f32 %v2884, %v2977
  %v2979 = vpop.f32.mrf.mxu0
  %2980 = vmatprep.mubr.f32.mxu0 0.0
  %2981 = vmatmul.mubr.f32.gmra.mxu0 %v2873
  %v2982 = vpop.f32.mrf.mxu0
  %v2983 = vadd.f32 %v2884, %v2982
  %v2984 = vpop.f32.mrf.mxu0
  %2985 = vmatprep.mubr.f32.mxu0 0.0
  %2986 = vmatmul.mubr.f32.gmra.mxu0 %v2874
  %v2987 = vpop.f32.mrf.mxu0
  %v2988 = vadd.f32 %v2884, %v2987
  %v2989 = vpop.f32.mrf.mxu0
  %2990 = vdwg.mxu0
  %v2991 = vadd.f32 %v2493, %v2953
  %v2992 = vadd.f32 %v2494, %v2958
  %v2993 = vadd.f32 %v2495, %v2963
  %v2994 = vadd.f32 %v2496, %v2968
  %v2995 = vadd.f32 %v2497, %v2973
  %v2996 = vadd.f32 %v2498, %v2978
  %v2997 = vadd.f32 %v2499, %v2983
  %v2998 = vadd.f32 %v2500, %v2988
  %s2999 = scalar_lea.vmem %s9, 1
  %v3000 = vld [vmem:[%s2999] sm:$0x1]
  %s3001 = scalar_lea.vmem %s10, 1
  %v3002 = vld [vmem:[%s3001] sm:$0x1]
  %v3003 = vsel %vm475, %v2991, 0.0
  %3004 = vadd.xlane.f32.xlu0 %v3003
  %v3005 = vpop.xlane.xlu0 %3004
  %v3006 = vsel %vm475, %v2992, 0.0
  %3007 = vadd.xlane.f32.xlu0 %v3006
  %v3008 = vpop.xlane.xlu0 %3007
  %v3009 = vsel %vm475, %v2993, 0.0
  %3010 = vadd.xlane.f32.xlu0 %v3009
  %v3011 = vpop.xlane.xlu0 %3010
  %v3012 = vsel %vm475, %v2994, 0.0
  %3013 = vadd.xlane.f32.xlu0 %v3012
  %v3014 = vpop.xlane.xlu0 %3013
  %v3015 = vsel %vm475, %v2995, 0.0
  %3016 = vadd.xlane.f32.xlu0 %v3015
  %v3017 = vpop.xlane.xlu0 %3016
  %v3018 = vsel %vm475, %v2996, 0.0
  %3019 = vadd.xlane.f32.xlu0 %v3018
  %v3020 = vpop.xlane.xlu0 %3019
  %v3021 = vsel %vm475, %v2997, 0.0
  %3022 = vadd.xlane.f32.xlu0 %v3021
  %v3023 = vpop.xlane.xlu0 %3022
  %v3024 = vsel %vm475, %v2998, 0.0
  %3025 = vadd.xlane.f32.xlu0 %v3024
  %v3026 = vpop.xlane.xlu0 %3025
  %v3027 = vmul.f32 %v3005, %v519
  %v3028 = vmul.f32 %v3008, %v519
  %v3029 = vmul.f32 %v3011, %v519
  %v3030 = vmul.f32 %v3014, %v519
  %v3031 = vmul.f32 %v3017, %v519
  %v3032 = vmul.f32 %v3020, %v519
  %v3033 = vmul.f32 %v3023, %v519
  %v3034 = vmul.f32 %v3026, %v519
  %v3035 = vsub.f32 %v2991, %v3027
  %v3036 = vsub.f32 %v2992, %v3028
  %v3037 = vsub.f32 %v2993, %v3029
  %v3038 = vsub.f32 %v2994, %v3030
  %v3039 = vsub.f32 %v2995, %v3031
  %v3040 = vsub.f32 %v2996, %v3032
  %v3041 = vsub.f32 %v2997, %v3033
  %v3042 = vsub.f32 %v2998, %v3034
  %v3043 = vmul.f32 %v3035, %v3035
  %v3044 = vmul.f32 %v3036, %v3036
  %v3045 = vmul.f32 %v3037, %v3037
  %v3046 = vmul.f32 %v3038, %v3038
  %v3047 = vmul.f32 %v3039, %v3039
  %v3048 = vmul.f32 %v3040, %v3040
  %v3049 = vmul.f32 %v3041, %v3041
  %v3050 = vmul.f32 %v3042, %v3042
  %v3051 = vsel %vm475, %v3043, 0.0
  %3052 = vadd.xlane.f32.xlu0 %v3051
  %v3053 = vpop.xlane.xlu0 %3052
  %v3054 = vsel %vm475, %v3044, 0.0
  %3055 = vadd.xlane.f32.xlu0 %v3054
  %v3056 = vpop.xlane.xlu0 %3055
  %v3057 = vsel %vm475, %v3045, 0.0
  %3058 = vadd.xlane.f32.xlu0 %v3057
  %v3059 = vpop.xlane.xlu0 %3058
  %v3060 = vsel %vm475, %v3046, 0.0
  %3061 = vadd.xlane.f32.xlu0 %v3060
  %v3062 = vpop.xlane.xlu0 %3061
  %v3063 = vsel %vm475, %v3047, 0.0
  %3064 = vadd.xlane.f32.xlu0 %v3063
  %v3065 = vpop.xlane.xlu0 %3064
  %v3066 = vsel %vm475, %v3048, 0.0
  %3067 = vadd.xlane.f32.xlu0 %v3066
  %v3068 = vpop.xlane.xlu0 %3067
  %v3069 = vsel %vm475, %v3049, 0.0
  %3070 = vadd.xlane.f32.xlu0 %v3069
  %v3071 = vpop.xlane.xlu0 %3070
  %v3072 = vsel %vm475, %v3050, 0.0
  %3073 = vadd.xlane.f32.xlu0 %v3072
  %v3074 = vpop.xlane.xlu0 %3073
  %v3075 = vmul.f32 %v3053, %v519
  %v3076 = vmul.f32 %v3056, %v519
  %v3077 = vmul.f32 %v3059, %v519
  %v3078 = vmul.f32 %v3062, %v519
  %v3079 = vmul.f32 %v3065, %v519
  %v3080 = vmul.f32 %v3068, %v519
  %v3081 = vmul.f32 %v3071, %v519
  %v3082 = vmul.f32 %v3074, %v519
  %v3083 = vadd.f32 %v3075, 1e-05
  %v3084 = vadd.f32 %v3076, 1e-05
  %v3085 = vadd.f32 %v3077, 1e-05
  %v3086 = vadd.f32 %v3078, 1e-05
  %v3087 = vadd.f32 %v3079, 1e-05
  %v3088 = vadd.f32 %v3080, 1e-05
  %v3089 = vadd.f32 %v3081, 1e-05
  %v3090 = vadd.f32 %v3082, 1e-05
  %v3091 = vrsqrt.pop %v3083
  %v3092 = vrsqrt.pop %v3084
  %v3093 = vrsqrt.pop %v3085
  %v3094 = vrsqrt.pop %v3086
  %v3095 = vrsqrt.pop %v3087
  %v3096 = vrsqrt.pop %v3088
  %v3097 = vrsqrt.pop %v3089
  %v3098 = vrsqrt.pop %v3090
  %v3099 = vmul.f32 %v3035, %v3091
  %v3100 = vmul.f32 %v3036, %v3092
  %v3101 = vmul.f32 %v3037, %v3093
  %v3102 = vmul.f32 %v3038, %v3094
  %v3103 = vmul.f32 %v3039, %v3095
  %v3104 = vmul.f32 %v3040, %v3096
  %v3105 = vmul.f32 %v3041, %v3097
  %v3106 = vmul.f32 %v3042, %v3098
  %v3108 = vlaneseq
  %v3109 = vshrl.u32 %v3108, 7
  %v3110 = vsub.s32 0, %v3109
  %v3111 = vrot.slane %v3000, %v3110
  %v3113 = vmul.f32 %v3099, %v3111
  %v3114 = vmul.f32 %v3100, %v3111
  %v3115 = vmul.f32 %v3101, %v3111
  %v3116 = vmul.f32 %v3102, %v3111
  %v3117 = vmul.f32 %v3103, %v3111
  %v3118 = vmul.f32 %v3104, %v3111
  %v3119 = vmul.f32 %v3105, %v3111
  %v3120 = vmul.f32 %v3106, %v3111
  %v3122 = vlaneseq
  %v3123 = vshrl.u32 %v3122, 7
  %v3124 = vsub.s32 0, %v3123
  %v3125 = vrot.slane %v3002, %v3124
  %v3127 = vadd.f32 %v3113, %v3125
  %v3128 = vadd.f32 %v3114, %v3125
  %v3129 = vadd.f32 %v3115, %v3125
  %v3130 = vadd.f32 %v3116, %v3125
  %v3131 = vadd.f32 %v3117, %v3125
  %v3132 = vadd.f32 %v3118, %v3125
  %v3133 = vadd.f32 %v3119, %v3125
  %v3134 = vadd.f32 %v3120, %v3125
  %s3135 = scalar_lea.vmem %s11, 32
  %v3136 = vld [vmem:[%s3135] sm:$0xff]
  %v3137 = vld [vmem:[%s3135 + $0x8] sm:$0xff]
  %v3138 = vld [vmem:[%s3135 + $0x10] sm:$0xff]
  %v3139 = vld [vmem:[%s3135 + $0x18] sm:$0xff]
  %s3140 = scalar_lea.vmem %s14, 1
  %v3141 = vld [vmem:[%s3140] sm:$0x1]
  %v3143 = vlaneseq
  %v3144 = vshrl.u32 %v3143, 7
  %v3145 = vsub.s32 0, %v3144
  %v3146 = vrot.slane %v3141, %v3145
  %v3149 = vsel %vm475, %v3127, 0
  %v3152 = vsel %vm475, %v3128, 0
  %v3155 = vsel %vm475, %v3129, 0
  %v3158 = vsel %vm475, %v3130, 0
  %v3161 = vsel %vm475, %v3131, 0
  %v3164 = vsel %vm475, %v3132, 0
  %v3167 = vsel %vm475, %v3133, 0
  %v3170 = vsel %vm475, %v3134, 0
  %v3173 = vsel %vm475, %v3136, 0
  %v3176 = vsel %vm475, %v3137, 0
  %v3179 = vsel %vm475, %v3138, 0
  %v3182 = vsel %vm475, %v3139, 0
  %3184 = vmatprep.subr.mxu0 0.0
  %3185 = vmatpush1.xpose.msra.mxu0 0.0
  %3186 = vmatprep.subr.mxu0 0.0
  %3187 = vmatpush1.xpose.msra.mxu0 0.0
  %3188 = vmatprep.subr.mxu0 0.0
  %3189 = vmatpush1.xpose.msra.mxu0 0.0
  %3190 = vmatprep.subr.mxu0 0.0
  %3191 = vmatpush1.xpose.msra.mxu0 0.0
  %3192 = vmatprep.subr.mxu0 0.0
  %3193 = vmatpush1.xpose.msra.mxu0 0.0
  %3194 = vmatprep.subr.mxu0 0.0
  %3195 = vmatpush1.xpose.msra.mxu0 0.0
  %3196 = vmatprep.subr.mxu0 0.0
  %3197 = vmatpush1.xpose.msra.mxu0 0.0
  %3198 = vmatprep.subr.mxu0 0.0
  %3199 = vmatpush1.xpose.msra.mxu0 0.0
  %3200 = vmatprep.subr.mxu0 0.0
  %3201 = vmatpush1.xpose.msra.mxu0 0.0
  %3202 = vmatprep.subr.mxu0 0.0
  %3203 = vmatpush1.xpose.msra.mxu0 0.0
  %3204 = vmatprep.subr.mxu0 0.0
  %3205 = vmatpush1.xpose.msra.mxu0 0.0
  %3206 = vmatprep.subr.mxu0 0.0
  %3207 = vmatpush1.xpose.msra.mxu0 0.0
  %3208 = vmatprep.subr.mxu0 0.0
  %3209 = vmatpush1.xpose.msra.mxu0 %v3182
  %3210 = vmatprep.subr.mxu0 0.0
  %3211 = vmatpush1.xpose.msra.mxu0 %v3179
  %3212 = vmatprep.subr.mxu0 0.0
  %3213 = vmatpush1.xpose.msra.mxu0 %v3176
  %3214 = vmatprep.subr.mxu0 0.0
  %3215 = vmatpush1.xpose.msra.mxu0 %v3173
  %3216 = vmatprep.subr.mxu0 0.0
  %3217 = vmatpush2.xpose.msra.mxu0 0.0
  %3218 = vmatprep.subr.mxu0 0.0
  %3219 = vmatpush2.xpose.msra.mxu0 0.0
  %3220 = vmatprep.subr.mxu0 0.0
  %3221 = vmatpush2.xpose.msra.mxu0 0.0
  %3222 = vmatprep.subr.mxu0 0.0
  %3223 = vmatpush2.xpose.msra.mxu0 0.0
  %3224 = vmatprep.subr.mxu0 0.0
  %3225 = vmatpush2.xpose.msra.mxu0 0.0
  %3226 = vmatprep.subr.mxu0 0.0
  %3227 = vmatpush2.xpose.msra.mxu0 0.0
  %3228 = vmatprep.subr.mxu0 0.0
  %3229 = vmatpush2.xpose.msra.mxu0 0.0
  %3230 = vmatprep.subr.mxu0 0.0
  %3231 = vmatpush2.xpose.msra.mxu0 0.0
  %3232 = vmatprep.subr.mxu0 0.0
  %3233 = vmatpush2.xpose.msra.mxu0 0.0
  %3234 = vmatprep.subr.mxu0 0.0
  %3235 = vmatpush2.xpose.msra.mxu0 0.0
  %3236 = vmatprep.subr.mxu0 0.0
  %3237 = vmatpush2.xpose.msra.mxu0 0.0
  %3238 = vmatprep.subr.mxu0 0.0
  %3239 = vmatpush2.xpose.msra.mxu0 0.0
  %3240 = vmatprep.subr.mxu0 0.0
  %3241 = vmatpush2.xpose.msra.mxu0 0.0
  %3242 = vmatprep.subr.mxu0 0.0
  %3243 = vmatpush2.xpose.msra.mxu0 0.0
  %3244 = vmatprep.subr.mxu0 0.0
  %3245 = vmatpush2.xpose.msra.mxu0 0.0
  %3246 = vmatprep.subr.mxu0 0.0
  %3247 = vmatpush2.xpose.msra.mxu0 0.0
  %3248 = vmatprep.mubr.f32.mxu0 0.0
  %3249 = vmatmul.mubr.f32.gmra.mxu0 %v3149
  %v3250 = vpop.f32.mrf.mxu0
  %v3251 = vadd.f32 %v3146, %v3250
  %v3252 = vpop.f32.mrf.mxu0
  %3253 = vmatprep.mubr.f32.mxu0 0.0
  %3254 = vmatmul.mubr.f32.gmra.mxu0 %v3152
  %v3255 = vpop.f32.mrf.mxu0
  %v3256 = vadd.f32 %v3146, %v3255
  %v3257 = vpop.f32.mrf.mxu0
  %3258 = vmatprep.mubr.f32.mxu0 0.0
  %3259 = vmatmul.mubr.f32.gmra.mxu0 %v3155
  %v3260 = vpop.f32.mrf.mxu0
  %v3261 = vadd.f32 %v3146, %v3260
  %v3262 = vpop.f32.mrf.mxu0
  %3263 = vmatprep.mubr.f32.mxu0 0.0
  %3264 = vmatmul.mubr.f32.gmra.mxu0 %v3158
  %v3265 = vpop.f32.mrf.mxu0
  %v3266 = vadd.f32 %v3146, %v3265
  %v3267 = vpop.f32.mrf.mxu0
  %3268 = vmatprep.mubr.f32.mxu0 0.0
  %3269 = vmatmul.mubr.f32.gmra.mxu0 %v3161
  %v3270 = vpop.f32.mrf.mxu0
  %v3271 = vadd.f32 %v3146, %v3270
  %v3272 = vpop.f32.mrf.mxu0
  %3273 = vmatprep.mubr.f32.mxu0 0.0
  %3274 = vmatmul.mubr.f32.gmra.mxu0 %v3164
  %v3275 = vpop.f32.mrf.mxu0
  %v3276 = vadd.f32 %v3146, %v3275
  %v3277 = vpop.f32.mrf.mxu0
  %3278 = vmatprep.mubr.f32.mxu0 0.0
  %3279 = vmatmul.mubr.f32.gmra.mxu0 %v3167
  %v3280 = vpop.f32.mrf.mxu0
  %v3281 = vadd.f32 %v3146, %v3280
  %v3282 = vpop.f32.mrf.mxu0
  %3283 = vmatprep.mubr.f32.mxu0 0.0
  %3284 = vmatmul.mubr.f32.gmra.mxu0 %v3170
  %v3285 = vpop.f32.mrf.mxu0
  %v3286 = vadd.f32 %v3146, %v3285
  %v3287 = vpop.f32.mrf.mxu0
  %3288 = vdwg.mxu0
  %s3289 = scalar_lea.vmem %s12, 32
  %v3290 = vld [vmem:[%s3289] sm:$0xff]
  %v3291 = vld [vmem:[%s3289 + $0x8] sm:$0xff]
  %v3292 = vld [vmem:[%s3289 + $0x10] sm:$0xff]
  %v3293 = vld [vmem:[%s3289 + $0x18] sm:$0xff]
  %s3294 = scalar_lea.vmem %s15, 1
  %v3295 = vld [vmem:[%s3294] sm:$0x1]
  %v3297 = vlaneseq
  %v3298 = vshrl.u32 %v3297, 7
  %v3299 = vsub.s32 0, %v3298
  %v3300 = vrot.slane %v3295, %v3299
  %v3303 = vsel %vm475, %v3290, 0
  %v3306 = vsel %vm475, %v3291, 0
  %v3309 = vsel %vm475, %v3292, 0
  %v3312 = vsel %vm475, %v3293, 0
  %3314 = vmatprep.subr.mxu0 0.0
  %3315 = vmatpush1.xpose.msra.mxu0 0.0
  %3316 = vmatprep.subr.mxu0 0.0
  %3317 = vmatpush1.xpose.msra.mxu0 0.0
  %3318 = vmatprep.subr.mxu0 0.0
  %3319 = vmatpush1.xpose.msra.mxu0 0.0
  %3320 = vmatprep.subr.mxu0 0.0
  %3321 = vmatpush1.xpose.msra.mxu0 0.0
  %3322 = vmatprep.subr.mxu0 0.0
  %3323 = vmatpush1.xpose.msra.mxu0 0.0
  %3324 = vmatprep.subr.mxu0 0.0
  %3325 = vmatpush1.xpose.msra.mxu0 0.0
  %3326 = vmatprep.subr.mxu0 0.0
  %3327 = vmatpush1.xpose.msra.mxu0 0.0
  %3328 = vmatprep.subr.mxu0 0.0
  %3329 = vmatpush1.xpose.msra.mxu0 0.0
  %3330 = vmatprep.subr.mxu0 0.0
  %3331 = vmatpush1.xpose.msra.mxu0 0.0
  %3332 = vmatprep.subr.mxu0 0.0
  %3333 = vmatpush1.xpose.msra.mxu0 0.0
  %3334 = vmatprep.subr.mxu0 0.0
  %3335 = vmatpush1.xpose.msra.mxu0 0.0
  %3336 = vmatprep.subr.mxu0 0.0
  %3337 = vmatpush1.xpose.msra.mxu0 0.0
  %3338 = vmatprep.subr.mxu0 0.0
  %3339 = vmatpush1.xpose.msra.mxu0 %v3312
  %3340 = vmatprep.subr.mxu0 0.0
  %3341 = vmatpush1.xpose.msra.mxu0 %v3309
  %3342 = vmatprep.subr.mxu0 0.0
  %3343 = vmatpush1.xpose.msra.mxu0 %v3306
  %3344 = vmatprep.subr.mxu0 0.0
  %3345 = vmatpush1.xpose.msra.mxu0 %v3303
  %3346 = vmatprep.subr.mxu0 0.0
  %3347 = vmatpush2.xpose.msra.mxu0 0.0
  %3348 = vmatprep.subr.mxu0 0.0
  %3349 = vmatpush2.xpose.msra.mxu0 0.0
  %3350 = vmatprep.subr.mxu0 0.0
  %3351 = vmatpush2.xpose.msra.mxu0 0.0
  %3352 = vmatprep.subr.mxu0 0.0
  %3353 = vmatpush2.xpose.msra.mxu0 0.0
  %3354 = vmatprep.subr.mxu0 0.0
  %3355 = vmatpush2.xpose.msra.mxu0 0.0
  %3356 = vmatprep.subr.mxu0 0.0
  %3357 = vmatpush2.xpose.msra.mxu0 0.0
  %3358 = vmatprep.subr.mxu0 0.0
  %3359 = vmatpush2.xpose.msra.mxu0 0.0
  %3360 = vmatprep.subr.mxu0 0.0
  %3361 = vmatpush2.xpose.msra.mxu0 0.0
  %3362 = vmatprep.subr.mxu0 0.0
  %3363 = vmatpush2.xpose.msra.mxu0 0.0
  %3364 = vmatprep.subr.mxu0 0.0
  %3365 = vmatpush2.xpose.msra.mxu0 0.0
  %3366 = vmatprep.subr.mxu0 0.0
  %3367 = vmatpush2.xpose.msra.mxu0 0.0
  %3368 = vmatprep.subr.mxu0 0.0
  %3369 = vmatpush2.xpose.msra.mxu0 0.0
  %3370 = vmatprep.subr.mxu0 0.0
  %3371 = vmatpush2.xpose.msra.mxu0 0.0
  %3372 = vmatprep.subr.mxu0 0.0
  %3373 = vmatpush2.xpose.msra.mxu0 0.0
  %3374 = vmatprep.subr.mxu0 0.0
  %3375 = vmatpush2.xpose.msra.mxu0 0.0
  %3376 = vmatprep.subr.mxu0 0.0
  %3377 = vmatpush2.xpose.msra.mxu0 0.0
  %3378 = vmatprep.mubr.f32.mxu0 0.0
  %3379 = vmatmul.mubr.f32.gmra.mxu0 %v3149
  %v3380 = vpop.f32.mrf.mxu0
  %v3381 = vadd.f32 %v3300, %v3380
  %v3382 = vpop.f32.mrf.mxu0
  %3383 = vmatprep.mubr.f32.mxu0 0.0
  %3384 = vmatmul.mubr.f32.gmra.mxu0 %v3152
  %v3385 = vpop.f32.mrf.mxu0
  %v3386 = vadd.f32 %v3300, %v3385
  %v3387 = vpop.f32.mrf.mxu0
  %3388 = vmatprep.mubr.f32.mxu0 0.0
  %3389 = vmatmul.mubr.f32.gmra.mxu0 %v3155
  %v3390 = vpop.f32.mrf.mxu0
  %v3391 = vadd.f32 %v3300, %v3390
  %v3392 = vpop.f32.mrf.mxu0
  %3393 = vmatprep.mubr.f32.mxu0 0.0
  %3394 = vmatmul.mubr.f32.gmra.mxu0 %v3158
  %v3395 = vpop.f32.mrf.mxu0
  %v3396 = vadd.f32 %v3300, %v3395
  %v3397 = vpop.f32.mrf.mxu0
  %3398 = vmatprep.mubr.f32.mxu0 0.0
  %3399 = vmatmul.mubr.f32.gmra.mxu0 %v3161
  %v3400 = vpop.f32.mrf.mxu0
  %v3401 = vadd.f32 %v3300, %v3400
  %v3402 = vpop.f32.mrf.mxu0
  %3403 = vmatprep.mubr.f32.mxu0 0.0
  %3404 = vmatmul.mubr.f32.gmra.mxu0 %v3164
  %v3405 = vpop.f32.mrf.mxu0
  %v3406 = vadd.f32 %v3300, %v3405
  %v3407 = vpop.f32.mrf.mxu0
  %3408 = vmatprep.mubr.f32.mxu0 0.0
  %3409 = vmatmul.mubr.f32.gmra.mxu0 %v3167
  %v3410 = vpop.f32.mrf.mxu0
  %v3411 = vadd.f32 %v3300, %v3410
  %v3412 = vpop.f32.mrf.mxu0
  %3413 = vmatprep.mubr.f32.mxu0 0.0
  %3414 = vmatmul.mubr.f32.gmra.mxu0 %v3170
  %v3415 = vpop.f32.mrf.mxu0
  %v3416 = vadd.f32 %v3300, %v3415
  %v3417 = vpop.f32.mrf.mxu0
  %3418 = vdwg.mxu0
  %s3419 = scalar_lea.vmem %s13, 32
  %v3420 = vld [vmem:[%s3419] sm:$0xff]
  %v3421 = vld [vmem:[%s3419 + $0x8] sm:$0xff]
  %v3422 = vld [vmem:[%s3419 + $0x10] sm:$0xff]
  %v3423 = vld [vmem:[%s3419 + $0x18] sm:$0xff]
  %s3424 = scalar_lea.vmem %s16, 1
  %v3425 = vld [vmem:[%s3424] sm:$0x1]
  %v3427 = vlaneseq
  %v3428 = vshrl.u32 %v3427, 7
  %v3429 = vsub.s32 0, %v3428
  %v3430 = vrot.slane %v3425, %v3429
  %v3433 = vsel %vm475, %v3420, 0
  %v3436 = vsel %vm475, %v3421, 0
  %v3439 = vsel %vm475, %v3422, 0
  %v3442 = vsel %vm475, %v3423, 0
  %3444 = vmatprep.subr.mxu0 0.0
  %3445 = vmatpush1.xpose.msra.mxu0 0.0
  %3446 = vmatprep.subr.mxu0 0.0
  %3447 = vmatpush1.xpose.msra.mxu0 0.0
  %3448 = vmatprep.subr.mxu0 0.0
  %3449 = vmatpush1.xpose.msra.mxu0 0.0
  %3450 = vmatprep.subr.mxu0 0.0
  %3451 = vmatpush1.xpose.msra.mxu0 0.0
  %3452 = vmatprep.subr.mxu0 0.0
  %3453 = vmatpush1.xpose.msra.mxu0 0.0
  %3454 = vmatprep.subr.mxu0 0.0
  %3455 = vmatpush1.xpose.msra.mxu0 0.0
  %3456 = vmatprep.subr.mxu0 0.0
  %3457 = vmatpush1.xpose.msra.mxu0 0.0
  %3458 = vmatprep.subr.mxu0 0.0
  %3459 = vmatpush1.xpose.msra.mxu0 0.0
  %3460 = vmatprep.subr.mxu0 0.0
  %3461 = vmatpush1.xpose.msra.mxu0 0.0
  %3462 = vmatprep.subr.mxu0 0.0
  %3463 = vmatpush1.xpose.msra.mxu0 0.0
  %3464 = vmatprep.subr.mxu0 0.0
  %3465 = vmatpush1.xpose.msra.mxu0 0.0
  %3466 = vmatprep.subr.mxu0 0.0
  %3467 = vmatpush1.xpose.msra.mxu0 0.0
  %3468 = vmatprep.subr.mxu0 0.0
  %3469 = vmatpush1.xpose.msra.mxu0 %v3442
  %3470 = vmatprep.subr.mxu0 0.0
  %3471 = vmatpush1.xpose.msra.mxu0 %v3439
  %3472 = vmatprep.subr.mxu0 0.0
  %3473 = vmatpush1.xpose.msra.mxu0 %v3436
  %3474 = vmatprep.subr.mxu0 0.0
  %3475 = vmatpush1.xpose.msra.mxu0 %v3433
  %3476 = vmatprep.subr.mxu0 0.0
  %3477 = vmatpush2.xpose.msra.mxu0 0.0
  %3478 = vmatprep.subr.mxu0 0.0
  %3479 = vmatpush2.xpose.msra.mxu0 0.0
  %3480 = vmatprep.subr.mxu0 0.0
  %3481 = vmatpush2.xpose.msra.mxu0 0.0
  %3482 = vmatprep.subr.mxu0 0.0
  %3483 = vmatpush2.xpose.msra.mxu0 0.0
  %3484 = vmatprep.subr.mxu0 0.0
  %3485 = vmatpush2.xpose.msra.mxu0 0.0
  %3486 = vmatprep.subr.mxu0 0.0
  %3487 = vmatpush2.xpose.msra.mxu0 0.0
  %3488 = vmatprep.subr.mxu0 0.0
  %3489 = vmatpush2.xpose.msra.mxu0 0.0
  %3490 = vmatprep.subr.mxu0 0.0
  %3491 = vmatpush2.xpose.msra.mxu0 0.0
  %3492 = vmatprep.subr.mxu0 0.0
  %3493 = vmatpush2.xpose.msra.mxu0 0.0
  %3494 = vmatprep.subr.mxu0 0.0
  %3495 = vmatpush2.xpose.msra.mxu0 0.0
  %3496 = vmatprep.subr.mxu0 0.0
  %3497 = vmatpush2.xpose.msra.mxu0 0.0
  %3498 = vmatprep.subr.mxu0 0.0
  %3499 = vmatpush2.xpose.msra.mxu0 0.0
  %3500 = vmatprep.subr.mxu0 0.0
  %3501 = vmatpush2.xpose.msra.mxu0 0.0
  %3502 = vmatprep.subr.mxu0 0.0
  %3503 = vmatpush2.xpose.msra.mxu0 0.0
  %3504 = vmatprep.subr.mxu0 0.0
  %3505 = vmatpush2.xpose.msra.mxu0 0.0
  %3506 = vmatprep.subr.mxu0 0.0
  %3507 = vmatpush2.xpose.msra.mxu0 0.0
  %3508 = vmatprep.mubr.f32.mxu0 0.0
  %3509 = vmatmul.mubr.f32.gmra.mxu0 %v3149
  %v3510 = vpop.f32.mrf.mxu0
  %v3511 = vadd.f32 %v3430, %v3510
  %v3512 = vpop.f32.mrf.mxu0
  %3513 = vmatprep.mubr.f32.mxu0 0.0
  %3514 = vmatmul.mubr.f32.gmra.mxu0 %v3152
  %v3515 = vpop.f32.mrf.mxu0
  %v3516 = vadd.f32 %v3430, %v3515
  %v3517 = vpop.f32.mrf.mxu0
  %3518 = vmatprep.mubr.f32.mxu0 0.0
  %3519 = vmatmul.mubr.f32.gmra.mxu0 %v3155
  %v3520 = vpop.f32.mrf.mxu0
  %v3521 = vadd.f32 %v3430, %v3520
  %v3522 = vpop.f32.mrf.mxu0
  %3523 = vmatprep.mubr.f32.mxu0 0.0
  %3524 = vmatmul.mubr.f32.gmra.mxu0 %v3158
  %v3525 = vpop.f32.mrf.mxu0
  %v3526 = vadd.f32 %v3430, %v3525
  %v3527 = vpop.f32.mrf.mxu0
  %3528 = vmatprep.mubr.f32.mxu0 0.0
  %3529 = vmatmul.mubr.f32.gmra.mxu0 %v3161
  %v3530 = vpop.f32.mrf.mxu0
  %v3531 = vadd.f32 %v3430, %v3530
  %v3532 = vpop.f32.mrf.mxu0
  %3533 = vmatprep.mubr.f32.mxu0 0.0
  %3534 = vmatmul.mubr.f32.gmra.mxu0 %v3164
  %v3535 = vpop.f32.mrf.mxu0
  %v3536 = vadd.f32 %v3430, %v3535
  %v3537 = vpop.f32.mrf.mxu0
  %3538 = vmatprep.mubr.f32.mxu0 0.0
  %3539 = vmatmul.mubr.f32.gmra.mxu0 %v3167
  %v3540 = vpop.f32.mrf.mxu0
  %v3541 = vadd.f32 %v3430, %v3540
  %v3542 = vpop.f32.mrf.mxu0
  %3543 = vmatprep.mubr.f32.mxu0 0.0
  %3544 = vmatmul.mubr.f32.gmra.mxu0 %v3170
  %v3545 = vpop.f32.mrf.mxu0
  %v3546 = vadd.f32 %v3430, %v3545
  %v3547 = vpop.f32.mrf.mxu0
  %3548 = vdwg.mxu0
  %v3550 = vsel %vm1203, %v3251, 0
  %v3553 = vsel %vm1203, %v3256, 0
  %v3556 = vsel %vm1203, %v3261, 0
  %v3559 = vsel %vm1203, %v3266, 0
  %v3562 = vsel %vm1203, %v3381, 0
  %v3565 = vsel %vm1203, %v3386, 0
  %v3568 = vsel %vm1203, %v3391, 0
  %v3571 = vsel %vm1203, %v3396, 0
  %3573 = vmatprep.subr.mxu0 0.0
  %3574 = vmatpush1.xpose.msra.mxu0 0.0
  %3575 = vmatprep.subr.mxu0 0.0
  %3576 = vmatpush1.xpose.msra.mxu0 0.0
  %3577 = vmatprep.subr.mxu0 0.0
  %3578 = vmatpush1.xpose.msra.mxu0 0.0
  %3579 = vmatprep.subr.mxu0 0.0
  %3580 = vmatpush1.xpose.msra.mxu0 0.0
  %3581 = vmatprep.subr.mxu0 0.0
  %3582 = vmatpush1.xpose.msra.mxu0 0.0
  %3583 = vmatprep.subr.mxu0 0.0
  %3584 = vmatpush1.xpose.msra.mxu0 0.0
  %3585 = vmatprep.subr.mxu0 0.0
  %3586 = vmatpush1.xpose.msra.mxu0 0.0
  %3587 = vmatprep.subr.mxu0 0.0
  %3588 = vmatpush1.xpose.msra.mxu0 0.0
  %3589 = vmatprep.subr.mxu0 0.0
  %3590 = vmatpush1.xpose.msra.mxu0 0.0
  %3591 = vmatprep.subr.mxu0 0.0
  %3592 = vmatpush1.xpose.msra.mxu0 0.0
  %3593 = vmatprep.subr.mxu0 0.0
  %3594 = vmatpush1.xpose.msra.mxu0 0.0
  %3595 = vmatprep.subr.mxu0 0.0
  %3596 = vmatpush1.xpose.msra.mxu0 0.0
  %3597 = vmatprep.subr.mxu0 0.0
  %3598 = vmatpush1.xpose.msra.mxu0 %v3571
  %3599 = vmatprep.subr.mxu0 0.0
  %3600 = vmatpush1.xpose.msra.mxu0 %v3568
  %3601 = vmatprep.subr.mxu0 0.0
  %3602 = vmatpush1.xpose.msra.mxu0 %v3565
  %3603 = vmatprep.subr.mxu0 0.0
  %3604 = vmatpush1.xpose.msra.mxu0 %v3562
  %3605 = vmatprep.subr.mxu0 0.0
  %3606 = vmatpush2.xpose.msra.mxu0 0.0
  %3607 = vmatprep.subr.mxu0 0.0
  %3608 = vmatpush2.xpose.msra.mxu0 0.0
  %3609 = vmatprep.subr.mxu0 0.0
  %3610 = vmatpush2.xpose.msra.mxu0 0.0
  %3611 = vmatprep.subr.mxu0 0.0
  %3612 = vmatpush2.xpose.msra.mxu0 0.0
  %3613 = vmatprep.subr.mxu0 0.0
  %3614 = vmatpush2.xpose.msra.mxu0 0.0
  %3615 = vmatprep.subr.mxu0 0.0
  %3616 = vmatpush2.xpose.msra.mxu0 0.0
  %3617 = vmatprep.subr.mxu0 0.0
  %3618 = vmatpush2.xpose.msra.mxu0 0.0
  %3619 = vmatprep.subr.mxu0 0.0
  %3620 = vmatpush2.xpose.msra.mxu0 0.0
  %3621 = vmatprep.subr.mxu0 0.0
  %3622 = vmatpush2.xpose.msra.mxu0 0.0
  %3623 = vmatprep.subr.mxu0 0.0
  %3624 = vmatpush2.xpose.msra.mxu0 0.0
  %3625 = vmatprep.subr.mxu0 0.0
  %3626 = vmatpush2.xpose.msra.mxu0 0.0
  %3627 = vmatprep.subr.mxu0 0.0
  %3628 = vmatpush2.xpose.msra.mxu0 0.0
  %3629 = vmatprep.subr.mxu0 0.0
  %3630 = vmatpush2.xpose.msra.mxu0 0.0
  %3631 = vmatprep.subr.mxu0 0.0
  %3632 = vmatpush2.xpose.msra.mxu0 0.0
  %3633 = vmatprep.subr.mxu0 0.0
  %3634 = vmatpush2.xpose.msra.mxu0 0.0
  %3635 = vmatprep.subr.mxu0 0.0
  %3636 = vmatpush2.xpose.msra.mxu0 0.0
  %3637 = vmatprep.mubr.f32.mxu0 0.0
  %3638 = vmatmul.mubr.f32.gmra.mxu0 %v3550
  %v3639 = vpop.f32.mrf.mxu0
  %v3640 = vadd.f32 0.0, %v3639
  %v3641 = vpop.f32.mrf.mxu0
  %3642 = vmatprep.mubr.f32.mxu0 0.0
  %3643 = vmatmul.mubr.f32.gmra.mxu0 %v3553
  %v3644 = vpop.f32.mrf.mxu0
  %v3645 = vadd.f32 0.0, %v3644
  %v3646 = vpop.f32.mrf.mxu0
  %3647 = vmatprep.mubr.f32.mxu0 0.0
  %3648 = vmatmul.mubr.f32.gmra.mxu0 %v3556
  %v3649 = vpop.f32.mrf.mxu0
  %v3650 = vadd.f32 0.0, %v3649
  %v3651 = vpop.f32.mrf.mxu0
  %3652 = vmatprep.mubr.f32.mxu0 0.0
  %3653 = vmatmul.mubr.f32.gmra.mxu0 %v3559
  %v3654 = vpop.f32.mrf.mxu0
  %v3655 = vadd.f32 0.0, %v3654
  %v3656 = vpop.f32.mrf.mxu0
  %3657 = vdwg.mxu0
  %v3658 = vmul.f32 %v3640, 0.25
  %v3659 = vmul.f32 %v3645, 0.25
  %v3660 = vmul.f32 %v3650, 0.25
  %v3661 = vmul.f32 %v3655, 0.25
  %v3662 = vadd.f32 %v3658, %v657
  %v3663 = vadd.f32 %v3659, %v658
  %v3664 = vadd.f32 %v3660, %v659
  %v3665 = vadd.f32 %v3661, %v660
  %v3666 = vsel %vm475, %v3662, -inf
  %3667 = vmax.xlane.f32.xlu0 %v3666
  %v3668 = vpop.xlane.xlu0 %3667
  %v3669 = vsel %vm475, %v3663, -inf
  %3670 = vmax.xlane.f32.xlu0 %v3669
  %v3671 = vpop.xlane.xlu0 %3670
  %v3672 = vsel %vm475, %v3664, -inf
  %3673 = vmax.xlane.f32.xlu0 %v3672
  %v3674 = vpop.xlane.xlu0 %3673
  %v3675 = vsel %vm475, %v3665, -inf
  %3676 = vmax.xlane.f32.xlu0 %v3675
  %v3677 = vpop.xlane.xlu0 %3676
  %v3678 = vsub.f32 %v3662, %v3668
  %v3679 = vsub.f32 %v3663, %v3671
  %v3680 = vsub.f32 %v3664, %v3674
  %v3681 = vsub.f32 %v3665, %v3677
  %v3682 = vmul.f32 %v3678, 1.442695
  %v3683 = vpow.pop %v3682
  %v3684 = vmul.f32 %v3679, 1.442695
  %v3685 = vpow.pop %v3684
  %v3686 = vmul.f32 %v3680, 1.442695
  %v3687 = vpow.pop %v3686
  %v3688 = vmul.f32 %v3681, 1.442695
  %v3689 = vpow.pop %v3688
  %v3690 = vsel %vm475, %v3683, 0.0
  %3691 = vadd.xlane.f32.xlu0 %v3690
  %v3692 = vpop.xlane.xlu0 %3691
  %v3693 = vsel %vm475, %v3685, 0.0
  %3694 = vadd.xlane.f32.xlu0 %v3693
  %v3695 = vpop.xlane.xlu0 %3694
  %v3696 = vsel %vm475, %v3687, 0.0
  %3697 = vadd.xlane.f32.xlu0 %v3696
  %v3698 = vpop.xlane.xlu0 %3697
  %v3699 = vsel %vm475, %v3689, 0.0
  %3700 = vadd.xlane.f32.xlu0 %v3699
  %v3701 = vpop.xlane.xlu0 %3700
  %v3702 = vrcp.pop %v3692
  %v3703 = vrcp.pop %v3695
  %v3704 = vrcp.pop %v3698
  %v3705 = vrcp.pop %v3701
  %v3706 = vmul.f32 %v3683, %v3702
  %v3707 = vmul.f32 %v3685, %v3703
  %v3708 = vmul.f32 %v3687, %v3704
  %v3709 = vmul.f32 %v3689, %v3705
  %v3711 = vsel %vm475, %v3706, 0
  %v3714 = vsel %vm475, %v3707, 0
  %v3717 = vsel %vm475, %v3708, 0
  %v3720 = vsel %vm475, %v3709, 0
  %3722 = vmatprep.subr.mxu0 0.0
  %3723 = vmatpush1.msra.mxu0 0.0
  %3724 = vmatprep.subr.mxu0 0.0
  %3725 = vmatpush1.msra.mxu0 0.0
  %3726 = vmatprep.subr.mxu0 0.0
  %3727 = vmatpush1.msra.mxu0 0.0
  %3728 = vmatprep.subr.mxu0 0.0
  %3729 = vmatpush1.msra.mxu0 0.0
  %3730 = vmatprep.subr.mxu0 0.0
  %3731 = vmatpush1.msra.mxu0 0.0
  %3732 = vmatprep.subr.mxu0 0.0
  %3733 = vmatpush1.msra.mxu0 0.0
  %3734 = vmatprep.subr.mxu0 0.0
  %3735 = vmatpush1.msra.mxu0 0.0
  %3736 = vmatprep.subr.mxu0 0.0
  %3737 = vmatpush1.msra.mxu0 0.0
  %3738 = vmatprep.subr.mxu0 0.0
  %3739 = vmatpush1.msra.mxu0 0.0
  %3740 = vmatprep.subr.mxu0 0.0
  %3741 = vmatpush1.msra.mxu0 0.0
  %3742 = vmatprep.subr.mxu0 0.0
  %3743 = vmatpush1.msra.mxu0 0.0
  %3744 = vmatprep.subr.mxu0 0.0
  %3745 = vmatpush1.msra.mxu0 0.0
  %3746 = vmatprep.subr.mxu0 0.0
  %3747 = vmatpush1.msra.mxu0 %v3526
  %3748 = vmatprep.subr.mxu0 0.0
  %3749 = vmatpush1.msra.mxu0 %v3521
  %3750 = vmatprep.subr.mxu0 0.0
  %3751 = vmatpush1.msra.mxu0 %v3516
  %3752 = vmatprep.subr.mxu0 0.0
  %3753 = vmatpush1.msra.mxu0 %v3511
  %3754 = vmatprep.subr.mxu0 0.0
  %3755 = vmatpush2.msra.mxu0 0.0
  %3756 = vmatprep.subr.mxu0 0.0
  %3757 = vmatpush2.msra.mxu0 0.0
  %3758 = vmatprep.subr.mxu0 0.0
  %3759 = vmatpush2.msra.mxu0 0.0
  %3760 = vmatprep.subr.mxu0 0.0
  %3761 = vmatpush2.msra.mxu0 0.0
  %3762 = vmatprep.subr.mxu0 0.0
  %3763 = vmatpush2.msra.mxu0 0.0
  %3764 = vmatprep.subr.mxu0 0.0
  %3765 = vmatpush2.msra.mxu0 0.0
  %3766 = vmatprep.subr.mxu0 0.0
  %3767 = vmatpush2.msra.mxu0 0.0
  %3768 = vmatprep.subr.mxu0 0.0
  %3769 = vmatpush2.msra.mxu0 0.0
  %3770 = vmatprep.subr.mxu0 0.0
  %3771 = vmatpush2.msra.mxu0 0.0
  %3772 = vmatprep.subr.mxu0 0.0
  %3773 = vmatpush2.msra.mxu0 0.0
  %3774 = vmatprep.subr.mxu0 0.0
  %3775 = vmatpush2.msra.mxu0 0.0
  %3776 = vmatprep.subr.mxu0 0.0
  %3777 = vmatpush2.msra.mxu0 0.0
  %3778 = vmatprep.subr.mxu0 0.0
  %3779 = vmatpush2.msra.mxu0 0.0
  %3780 = vmatprep.subr.mxu0 0.0
  %3781 = vmatpush2.msra.mxu0 0.0
  %3782 = vmatprep.subr.mxu0 0.0
  %3783 = vmatpush2.msra.mxu0 0.0
  %3784 = vmatprep.subr.mxu0 0.0
  %3785 = vmatpush2.msra.mxu0 0.0
  %3786 = vmatprep.mubr.f32.mxu0 0.0
  %3787 = vmatmul.mubr.f32.gmra.mxu0 %v3711
  %v3788 = vpop.f32.mrf.mxu0
  %v3789 = vadd.f32 0.0, %v3788
  %v3790 = vpop.f32.mrf.mxu0
  %3791 = vmatprep.mubr.f32.mxu0 0.0
  %3792 = vmatmul.mubr.f32.gmra.mxu0 %v3714
  %v3793 = vpop.f32.mrf.mxu0
  %v3794 = vadd.f32 0.0, %v3793
  %v3795 = vpop.f32.mrf.mxu0
  %3796 = vmatprep.mubr.f32.mxu0 0.0
  %3797 = vmatmul.mubr.f32.gmra.mxu0 %v3717
  %v3798 = vpop.f32.mrf.mxu0
  %v3799 = vadd.f32 0.0, %v3798
  %v3800 = vpop.f32.mrf.mxu0
  %3801 = vmatprep.mubr.f32.mxu0 0.0
  %3802 = vmatmul.mubr.f32.gmra.mxu0 %v3720
  %v3803 = vpop.f32.mrf.mxu0
  %v3804 = vadd.f32 0.0, %v3803
  %v3805 = vpop.f32.mrf.mxu0
  %3806 = vdwg.mxu0
  %3807 = vst.msk [vmem:[#allocation2] sm:$0xff] %vm1203, %v3789
  %3808 = vst.msk [vmem:[#allocation2 + $0x8] sm:$0xff] %vm1203, %v3794
  %3809 = vst.msk [vmem:[#allocation2 + $0x10] sm:$0xff] %vm1203, %v3799
  %3810 = vst.msk [vmem:[#allocation2 + $0x18] sm:$0xff] %vm1203, %v3804
  %3811 = vrot.lane.b32.xlu0 %v3251, 112
  %v3812 = vpop.permute.xlu0 %3811
  %3813 = vrot.lane.b32.xlu0 %v3256, 112
  %v3814 = vpop.permute.xlu0 %3813
  %3815 = vrot.lane.b32.xlu0 %v3261, 112
  %v3816 = vpop.permute.xlu0 %3815
  %3817 = vrot.lane.b32.xlu0 %v3266, 112
  %v3818 = vpop.permute.xlu0 %3817
  %3819 = vrot.lane.b32.xlu0 %v3381, 112
  %v3820 = vpop.permute.xlu0 %3819
  %3821 = vrot.lane.b32.xlu0 %v3386, 112
  %v3822 = vpop.permute.xlu0 %3821
  %3823 = vrot.lane.b32.xlu0 %v3391, 112
  %v3824 = vpop.permute.xlu0 %3823
  %3825 = vrot.lane.b32.xlu0 %v3396, 112
  %v3826 = vpop.permute.xlu0 %3825
  %v3827 = vsel %vm1203, %v3812, 0
  %v3829 = vsel %vm1203, %v3814, 0
  %v3831 = vsel %vm1203, %v3816, 0
  %v3833 = vsel %vm1203, %v3818, 0
  %v3835 = vsel %vm1203, %v3820, 0
  %v3837 = vsel %vm1203, %v3822, 0
  %v3839 = vsel %vm1203, %v3824, 0
  %v3841 = vsel %vm1203, %v3826, 0
  %3843 = vmatprep.subr.mxu0 0.0
  %3844 = vmatpush1.xpose.msra.mxu0 0.0
  %3845 = vmatprep.subr.mxu0 0.0
  %3846 = vmatpush1.xpose.msra.mxu0 0.0
  %3847 = vmatprep.subr.mxu0 0.0
  %3848 = vmatpush1.xpose.msra.mxu0 0.0
  %3849 = vmatprep.subr.mxu0 0.0
  %3850 = vmatpush1.xpose.msra.mxu0 0.0
  %3851 = vmatprep.subr.mxu0 0.0
  %3852 = vmatpush1.xpose.msra.mxu0 0.0
  %3853 = vmatprep.subr.mxu0 0.0
  %3854 = vmatpush1.xpose.msra.mxu0 0.0
  %3855 = vmatprep.subr.mxu0 0.0
  %3856 = vmatpush1.xpose.msra.mxu0 0.0
  %3857 = vmatprep.subr.mxu0 0.0
  %3858 = vmatpush1.xpose.msra.mxu0 0.0
  %3859 = vmatprep.subr.mxu0 0.0
  %3860 = vmatpush1.xpose.msra.mxu0 0.0
  %3861 = vmatprep.subr.mxu0 0.0
  %3862 = vmatpush1.xpose.msra.mxu0 0.0
  %3863 = vmatprep.subr.mxu0 0.0
  %3864 = vmatpush1.xpose.msra.mxu0 0.0
  %3865 = vmatprep.subr.mxu0 0.0
  %3866 = vmatpush1.xpose.msra.mxu0 0.0
  %3867 = vmatprep.subr.mxu0 0.0
  %3868 = vmatpush1.xpose.msra.mxu0 %v3841
  %3869 = vmatprep.subr.mxu0 0.0
  %3870 = vmatpush1.xpose.msra.mxu0 %v3839
  %3871 = vmatprep.subr.mxu0 0.0
  %3872 = vmatpush1.xpose.msra.mxu0 %v3837
  %3873 = vmatprep.subr.mxu0 0.0
  %3874 = vmatpush1.xpose.msra.mxu0 %v3835
  %3875 = vmatprep.subr.mxu0 0.0
  %3876 = vmatpush2.xpose.msra.mxu0 0.0
  %3877 = vmatprep.subr.mxu0 0.0
  %3878 = vmatpush2.xpose.msra.mxu0 0.0
  %3879 = vmatprep.subr.mxu0 0.0
  %3880 = vmatpush2.xpose.msra.mxu0 0.0
  %3881 = vmatprep.subr.mxu0 0.0
  %3882 = vmatpush2.xpose.msra.mxu0 0.0
  %3883 = vmatprep.subr.mxu0 0.0
  %3884 = vmatpush2.xpose.msra.mxu0 0.0
  %3885 = vmatprep.subr.mxu0 0.0
  %3886 = vmatpush2.xpose.msra.mxu0 0.0
  %3887 = vmatprep.subr.mxu0 0.0
  %3888 = vmatpush2.xpose.msra.mxu0 0.0
  %3889 = vmatprep.subr.mxu0 0.0
  %3890 = vmatpush2.xpose.msra.mxu0 0.0
  %3891 = vmatprep.subr.mxu0 0.0
  %3892 = vmatpush2.xpose.msra.mxu0 0.0
  %3893 = vmatprep.subr.mxu0 0.0
  %3894 = vmatpush2.xpose.msra.mxu0 0.0
  %3895 = vmatprep.subr.mxu0 0.0
  %3896 = vmatpush2.xpose.msra.mxu0 0.0
  %3897 = vmatprep.subr.mxu0 0.0
  %3898 = vmatpush2.xpose.msra.mxu0 0.0
  %3899 = vmatprep.subr.mxu0 0.0
  %3900 = vmatpush2.xpose.msra.mxu0 0.0
  %3901 = vmatprep.subr.mxu0 0.0
  %3902 = vmatpush2.xpose.msra.mxu0 0.0
  %3903 = vmatprep.subr.mxu0 0.0
  %3904 = vmatpush2.xpose.msra.mxu0 0.0
  %3905 = vmatprep.subr.mxu0 0.0
  %3906 = vmatpush2.xpose.msra.mxu0 0.0
  %3907 = vmatprep.mubr.f32.mxu0 0.0
  %3908 = vmatmul.mubr.f32.gmra.mxu0 %v3827
  %v3909 = vpop.f32.mrf.mxu0
  %v3910 = vadd.f32 0.0, %v3909
  %v3911 = vpop.f32.mrf.mxu0
  %3912 = vmatprep.mubr.f32.mxu0 0.0
  %3913 = vmatmul.mubr.f32.gmra.mxu0 %v3829
  %v3914 = vpop.f32.mrf.mxu0
  %v3915 = vadd.f32 0.0, %v3914
  %v3916 = vpop.f32.mrf.mxu0
  %3917 = vmatprep.mubr.f32.mxu0 0.0
  %3918 = vmatmul.mubr.f32.gmra.mxu0 %v3831
  %v3919 = vpop.f32.mrf.mxu0
  %v3920 = vadd.f32 0.0, %v3919
  %v3921 = vpop.f32.mrf.mxu0
  %3922 = vmatprep.mubr.f32.mxu0 0.0
  %3923 = vmatmul.mubr.f32.gmra.mxu0 %v3833
  %v3924 = vpop.f32.mrf.mxu0
  %v3925 = vadd.f32 0.0, %v3924
  %v3926 = vpop.f32.mrf.mxu0
  %3927 = vdwg.mxu0
  %v3928 = vmul.f32 %v3910, 0.25
  %v3929 = vmul.f32 %v3915, 0.25
  %v3930 = vmul.f32 %v3920, 0.25
  %v3931 = vmul.f32 %v3925, 0.25
  %v3932 = vadd.f32 %v3928, %v657
  %v3933 = vadd.f32 %v3929, %v658
  %v3934 = vadd.f32 %v3930, %v659
  %v3935 = vadd.f32 %v3931, %v660
  %v3936 = vsel %vm475, %v3932, -inf
  %3937 = vmax.xlane.f32.xlu0 %v3936
  %v3938 = vpop.xlane.xlu0 %3937
  %v3939 = vsel %vm475, %v3933, -inf
  %3940 = vmax.xlane.f32.xlu0 %v3939
  %v3941 = vpop.xlane.xlu0 %3940
  %v3942 = vsel %vm475, %v3934, -inf
  %3943 = vmax.xlane.f32.xlu0 %v3942
  %v3944 = vpop.xlane.xlu0 %3943
  %v3945 = vsel %vm475, %v3935, -inf
  %3946 = vmax.xlane.f32.xlu0 %v3945
  %v3947 = vpop.xlane.xlu0 %3946
  %v3948 = vsub.f32 %v3932, %v3938
  %v3949 = vsub.f32 %v3933, %v3941
  %v3950 = vsub.f32 %v3934, %v3944
  %v3951 = vsub.f32 %v3935, %v3947
  %v3952 = vmul.f32 %v3948, 1.442695
  %v3953 = vpow.pop %v3952
  %v3954 = vmul.f32 %v3949, 1.442695
  %v3955 = vpow.pop %v3954
  %v3956 = vmul.f32 %v3950, 1.442695
  %v3957 = vpow.pop %v3956
  %v3958 = vmul.f32 %v3951, 1.442695
  %v3959 = vpow.pop %v3958
  %v3960 = vsel %vm475, %v3953, 0.0
  %3961 = vadd.xlane.f32.xlu0 %v3960
  %v3962 = vpop.xlane.xlu0 %3961
  %v3963 = vsel %vm475, %v3955, 0.0
  %3964 = vadd.xlane.f32.xlu0 %v3963
  %v3965 = vpop.xlane.xlu0 %3964
  %v3966 = vsel %vm475, %v3957, 0.0
  %3967 = vadd.xlane.f32.xlu0 %v3966
  %v3968 = vpop.xlane.xlu0 %3967
  %v3969 = vsel %vm475, %v3959, 0.0
  %3970 = vadd.xlane.f32.xlu0 %v3969
  %v3971 = vpop.xlane.xlu0 %3970
  %v3972 = vrcp.pop %v3962
  %v3973 = vrcp.pop %v3965
  %v3974 = vrcp.pop %v3968
  %v3975 = vrcp.pop %v3971
  %v3976 = vmul.f32 %v3953, %v3972
  %v3977 = vmul.f32 %v3955, %v3973
  %v3978 = vmul.f32 %v3957, %v3974
  %v3979 = vmul.f32 %v3959, %v3975
  %3984 = vrot.lane.b32.xlu0 %v3511, 112
  %v3985 = vpop.permute.xlu0 %3984
  %3986 = vrot.lane.b32.xlu0 %v3516, 112
  %v3987 = vpop.permute.xlu0 %3986
  %3988 = vrot.lane.b32.xlu0 %v3521, 112
  %v3989 = vpop.permute.xlu0 %3988
  %3990 = vrot.lane.b32.xlu0 %v3526, 112
  %v3991 = vpop.permute.xlu0 %3990
  %v3997 = vsel %vm475, %v3976, 0
  %v4000 = vsel %vm475, %v3977, 0
  %v4003 = vsel %vm475, %v3978, 0
  %v4006 = vsel %vm475, %v3979, 0
  %4008 = vmatprep.subr.mxu0 0.0
  %4009 = vmatpush1.msra.mxu0 0.0
  %4010 = vmatprep.subr.mxu0 0.0
  %4011 = vmatpush1.msra.mxu0 0.0
  %4012 = vmatprep.subr.mxu0 0.0
  %4013 = vmatpush1.msra.mxu0 0.0
  %4014 = vmatprep.subr.mxu0 0.0
  %4015 = vmatpush1.msra.mxu0 0.0
  %4016 = vmatprep.subr.mxu0 0.0
  %4017 = vmatpush1.msra.mxu0 0.0
  %4018 = vmatprep.subr.mxu0 0.0
  %4019 = vmatpush1.msra.mxu0 0.0
  %4020 = vmatprep.subr.mxu0 0.0
  %4021 = vmatpush1.msra.mxu0 0.0
  %4022 = vmatprep.subr.mxu0 0.0
  %4023 = vmatpush1.msra.mxu0 0.0
  %4024 = vmatprep.subr.mxu0 0.0
  %4025 = vmatpush1.msra.mxu0 0.0
  %4026 = vmatprep.subr.mxu0 0.0
  %4027 = vmatpush1.msra.mxu0 0.0
  %4028 = vmatprep.subr.mxu0 0.0
  %4029 = vmatpush1.msra.mxu0 0.0
  %4030 = vmatprep.subr.mxu0 0.0
  %4031 = vmatpush1.msra.mxu0 0.0
  %4032 = vmatprep.subr.mxu0 0.0
  %4033 = vmatpush1.msra.mxu0 %v3991
  %4034 = vmatprep.subr.mxu0 0.0
  %4035 = vmatpush1.msra.mxu0 %v3989
  %4036 = vmatprep.subr.mxu0 0.0
  %4037 = vmatpush1.msra.mxu0 %v3987
  %4038 = vmatprep.subr.mxu0 0.0
  %4039 = vmatpush1.msra.mxu0 %v3985
  %4040 = vmatprep.subr.mxu0 0.0
  %4041 = vmatpush2.msra.mxu0 0.0
  %4042 = vmatprep.subr.mxu0 0.0
  %4043 = vmatpush2.msra.mxu0 0.0
  %4044 = vmatprep.subr.mxu0 0.0
  %4045 = vmatpush2.msra.mxu0 0.0
  %4046 = vmatprep.subr.mxu0 0.0
  %4047 = vmatpush2.msra.mxu0 0.0
  %4048 = vmatprep.subr.mxu0 0.0
  %4049 = vmatpush2.msra.mxu0 0.0
  %4050 = vmatprep.subr.mxu0 0.0
  %4051 = vmatpush2.msra.mxu0 0.0
  %4052 = vmatprep.subr.mxu0 0.0
  %4053 = vmatpush2.msra.mxu0 0.0
  %4054 = vmatprep.subr.mxu0 0.0
  %4055 = vmatpush2.msra.mxu0 0.0
  %4056 = vmatprep.subr.mxu0 0.0
  %4057 = vmatpush2.msra.mxu0 0.0
  %4058 = vmatprep.subr.mxu0 0.0
  %4059 = vmatpush2.msra.mxu0 0.0
  %4060 = vmatprep.subr.mxu0 0.0
  %4061 = vmatpush2.msra.mxu0 0.0
  %4062 = vmatprep.subr.mxu0 0.0
  %4063 = vmatpush2.msra.mxu0 0.0
  %4064 = vmatprep.subr.mxu0 0.0
  %4065 = vmatpush2.msra.mxu0 0.0
  %4066 = vmatprep.subr.mxu0 0.0
  %4067 = vmatpush2.msra.mxu0 0.0
  %4068 = vmatprep.subr.mxu0 0.0
  %4069 = vmatpush2.msra.mxu0 0.0
  %4070 = vmatprep.subr.mxu0 0.0
  %4071 = vmatpush2.msra.mxu0 0.0
  %4072 = vmatprep.mubr.f32.mxu0 0.0
  %4073 = vmatmul.mubr.f32.gmra.mxu0 %v3997
  %v4074 = vpop.f32.mrf.mxu0
  %v4075 = vadd.f32 0.0, %v4074
  %v4076 = vpop.f32.mrf.mxu0
  %4077 = vmatprep.mubr.f32.mxu0 0.0
  %4078 = vmatmul.mubr.f32.gmra.mxu0 %v4000
  %v4079 = vpop.f32.mrf.mxu0
  %v4080 = vadd.f32 0.0, %v4079
  %v4081 = vpop.f32.mrf.mxu0
  %4082 = vmatprep.mubr.f32.mxu0 0.0
  %4083 = vmatmul.mubr.f32.gmra.mxu0 %v4003
  %v4084 = vpop.f32.mrf.mxu0
  %v4085 = vadd.f32 0.0, %v4084
  %v4086 = vpop.f32.mrf.mxu0
  %4087 = vmatprep.mubr.f32.mxu0 0.0
  %4088 = vmatmul.mubr.f32.gmra.mxu0 %v4006
  %v4089 = vpop.f32.mrf.mxu0
  %v4090 = vadd.f32 0.0, %v4089
  %v4091 = vpop.f32.mrf.mxu0
  %4092 = vdwg.mxu0
  %4097 = vrot.lane.b32.xlu0 %v4075, 16
  %v4098 = vpop.permute.xlu0 %4097
  %4099 = vrot.lane.b32.xlu0 %v4080, 16
  %v4100 = vpop.permute.xlu0 %4099
  %4101 = vrot.lane.b32.xlu0 %v4085, 16
  %v4102 = vpop.permute.xlu0 %4101
  %4103 = vrot.lane.b32.xlu0 %v4090, 16
  %v4104 = vpop.permute.xlu0 %4103
  %4109 = vst.msk [vmem:[#allocation2] sm:$0xff] %vm1764, %v4098
  %4110 = vst.msk [vmem:[#allocation2 + $0x8] sm:$0xff] %vm1764, %v4100
  %4111 = vst.msk [vmem:[#allocation2 + $0x10] sm:$0xff] %vm1764, %v4102
  %4112 = vst.msk [vmem:[#allocation2 + $0x18] sm:$0xff] %vm1764, %v4104
  %v4114 = vsel %vm1203, %v3271, 0
  %v4117 = vsel %vm1203, %v3276, 0
  %v4120 = vsel %vm1203, %v3281, 0
  %v4123 = vsel %vm1203, %v3286, 0
  %v4126 = vsel %vm1203, %v3401, 0
  %v4129 = vsel %vm1203, %v3406, 0
  %v4132 = vsel %vm1203, %v3411, 0
  %v4135 = vsel %vm1203, %v3416, 0
  %4137 = vmatprep.subr.mxu0 0.0
  %4138 = vmatpush1.xpose.msra.mxu0 0.0
  %4139 = vmatprep.subr.mxu0 0.0
  %4140 = vmatpush1.xpose.msra.mxu0 0.0
  %4141 = vmatprep.subr.mxu0 0.0
  %4142 = vmatpush1.xpose.msra.mxu0 0.0
  %4143 = vmatprep.subr.mxu0 0.0
  %4144 = vmatpush1.xpose.msra.mxu0 0.0
  %4145 = vmatprep.subr.mxu0 0.0
  %4146 = vmatpush1.xpose.msra.mxu0 0.0
  %4147 = vmatprep.subr.mxu0 0.0
  %4148 = vmatpush1.xpose.msra.mxu0 0.0
  %4149 = vmatprep.subr.mxu0 0.0
  %4150 = vmatpush1.xpose.msra.mxu0 0.0
  %4151 = vmatprep.subr.mxu0 0.0
  %4152 = vmatpush1.xpose.msra.mxu0 0.0
  %4153 = vmatprep.subr.mxu0 0.0
  %4154 = vmatpush1.xpose.msra.mxu0 0.0
  %4155 = vmatprep.subr.mxu0 0.0
  %4156 = vmatpush1.xpose.msra.mxu0 0.0
  %4157 = vmatprep.subr.mxu0 0.0
  %4158 = vmatpush1.xpose.msra.mxu0 0.0
  %4159 = vmatprep.subr.mxu0 0.0
  %4160 = vmatpush1.xpose.msra.mxu0 0.0
  %4161 = vmatprep.subr.mxu0 0.0
  %4162 = vmatpush1.xpose.msra.mxu0 %v4135
  %4163 = vmatprep.subr.mxu0 0.0
  %4164 = vmatpush1.xpose.msra.mxu0 %v4132
  %4165 = vmatprep.subr.mxu0 0.0
  %4166 = vmatpush1.xpose.msra.mxu0 %v4129
  %4167 = vmatprep.subr.mxu0 0.0
  %4168 = vmatpush1.xpose.msra.mxu0 %v4126
  %4169 = vmatprep.subr.mxu0 0.0
  %4170 = vmatpush2.xpose.msra.mxu0 0.0
  %4171 = vmatprep.subr.mxu0 0.0
  %4172 = vmatpush2.xpose.msra.mxu0 0.0
  %4173 = vmatprep.subr.mxu0 0.0
  %4174 = vmatpush2.xpose.msra.mxu0 0.0
  %4175 = vmatprep.subr.mxu0 0.0
  %4176 = vmatpush2.xpose.msra.mxu0 0.0
  %4177 = vmatprep.subr.mxu0 0.0
  %4178 = vmatpush2.xpose.msra.mxu0 0.0
  %4179 = vmatprep.subr.mxu0 0.0
  %4180 = vmatpush2.xpose.msra.mxu0 0.0
  %4181 = vmatprep.subr.mxu0 0.0
  %4182 = vmatpush2.xpose.msra.mxu0 0.0
  %4183 = vmatprep.subr.mxu0 0.0
  %4184 = vmatpush2.xpose.msra.mxu0 0.0
  %4185 = vmatprep.subr.mxu0 0.0
  %4186 = vmatpush2.xpose.msra.mxu0 0.0
  %4187 = vmatprep.subr.mxu0 0.0
  %4188 = vmatpush2.xpose.msra.mxu0 0.0
  %4189 = vmatprep.subr.mxu0 0.0
  %4190 = vmatpush2.xpose.msra.mxu0 0.0
  %4191 = vmatprep.subr.mxu0 0.0
  %4192 = vmatpush2.xpose.msra.mxu0 0.0
  %4193 = vmatprep.subr.mxu0 0.0
  %4194 = vmatpush2.xpose.msra.mxu0 0.0
  %4195 = vmatprep.subr.mxu0 0.0
  %4196 = vmatpush2.xpose.msra.mxu0 0.0
  %4197 = vmatprep.subr.mxu0 0.0
  %4198 = vmatpush2.xpose.msra.mxu0 0.0
  %4199 = vmatprep.subr.mxu0 0.0
  %4200 = vmatpush2.xpose.msra.mxu0 0.0
  %4201 = vmatprep.mubr.f32.mxu0 0.0
  %4202 = vmatmul.mubr.f32.gmra.mxu0 %v4114
  %v4203 = vpop.f32.mrf.mxu0
  %v4204 = vadd.f32 0.0, %v4203
  %v4205 = vpop.f32.mrf.mxu0
  %4206 = vmatprep.mubr.f32.mxu0 0.0
  %4207 = vmatmul.mubr.f32.gmra.mxu0 %v4117
  %v4208 = vpop.f32.mrf.mxu0
  %v4209 = vadd.f32 0.0, %v4208
  %v4210 = vpop.f32.mrf.mxu0
  %4211 = vmatprep.mubr.f32.mxu0 0.0
  %4212 = vmatmul.mubr.f32.gmra.mxu0 %v4120
  %v4213 = vpop.f32.mrf.mxu0
  %v4214 = vadd.f32 0.0, %v4213
  %v4215 = vpop.f32.mrf.mxu0
  %4216 = vmatprep.mubr.f32.mxu0 0.0
  %4217 = vmatmul.mubr.f32.gmra.mxu0 %v4123
  %v4218 = vpop.f32.mrf.mxu0
  %v4219 = vadd.f32 0.0, %v4218
  %v4220 = vpop.f32.mrf.mxu0
  %4221 = vdwg.mxu0
  %v4222 = vmul.f32 %v4204, 0.25
  %v4223 = vmul.f32 %v4209, 0.25
  %v4224 = vmul.f32 %v4214, 0.25
  %v4225 = vmul.f32 %v4219, 0.25
  %v4226 = vadd.f32 %v4222, %v657
  %v4227 = vadd.f32 %v4223, %v658
  %v4228 = vadd.f32 %v4224, %v659
  %v4229 = vadd.f32 %v4225, %v660
  %v4230 = vsel %vm475, %v4226, -inf
  %4231 = vmax.xlane.f32.xlu0 %v4230
  %v4232 = vpop.xlane.xlu0 %4231
  %v4233 = vsel %vm475, %v4227, -inf
  %4234 = vmax.xlane.f32.xlu0 %v4233
  %v4235 = vpop.xlane.xlu0 %4234
  %v4236 = vsel %vm475, %v4228, -inf
  %4237 = vmax.xlane.f32.xlu0 %v4236
  %v4238 = vpop.xlane.xlu0 %4237
  %v4239 = vsel %vm475, %v4229, -inf
  %4240 = vmax.xlane.f32.xlu0 %v4239
  %v4241 = vpop.xlane.xlu0 %4240
  %v4242 = vsub.f32 %v4226, %v4232
  %v4243 = vsub.f32 %v4227, %v4235
  %v4244 = vsub.f32 %v4228, %v4238
  %v4245 = vsub.f32 %v4229, %v4241
  %v4246 = vmul.f32 %v4242, 1.442695
  %v4247 = vpow.pop %v4246
  %v4248 = vmul.f32 %v4243, 1.442695
  %v4249 = vpow.pop %v4248
  %v4250 = vmul.f32 %v4244, 1.442695
  %v4251 = vpow.pop %v4250
  %v4252 = vmul.f32 %v4245, 1.442695
  %v4253 = vpow.pop %v4252
  %v4254 = vsel %vm475, %v4247, 0.0
  %4255 = vadd.xlane.f32.xlu0 %v4254
  %v4256 = vpop.xlane.xlu0 %4255
  %v4257 = vsel %vm475, %v4249, 0.0
  %4258 = vadd.xlane.f32.xlu0 %v4257
  %v4259 = vpop.xlane.xlu0 %4258
  %v4260 = vsel %vm475, %v4251, 0.0
  %4261 = vadd.xlane.f32.xlu0 %v4260
  %v4262 = vpop.xlane.xlu0 %4261
  %v4263 = vsel %vm475, %v4253, 0.0
  %4264 = vadd.xlane.f32.xlu0 %v4263
  %v4265 = vpop.xlane.xlu0 %4264
  %v4266 = vrcp.pop %v4256
  %v4267 = vrcp.pop %v4259
  %v4268 = vrcp.pop %v4262
  %v4269 = vrcp.pop %v4265
  %v4270 = vmul.f32 %v4247, %v4266
  %v4271 = vmul.f32 %v4249, %v4267
  %v4272 = vmul.f32 %v4251, %v4268
  %v4273 = vmul.f32 %v4253, %v4269
  %v4275 = vsel %vm475, %v4270, 0
  %v4278 = vsel %vm475, %v4271, 0
  %v4281 = vsel %vm475, %v4272, 0
  %v4284 = vsel %vm475, %v4273, 0
  %4286 = vmatprep.subr.mxu0 0.0
  %4287 = vmatpush1.msra.mxu0 0.0
  %4288 = vmatprep.subr.mxu0 0.0
  %4289 = vmatpush1.msra.mxu0 0.0
  %4290 = vmatprep.subr.mxu0 0.0
  %4291 = vmatpush1.msra.mxu0 0.0
  %4292 = vmatprep.subr.mxu0 0.0
  %4293 = vmatpush1.msra.mxu0 0.0
  %4294 = vmatprep.subr.mxu0 0.0
  %4295 = vmatpush1.msra.mxu0 0.0
  %4296 = vmatprep.subr.mxu0 0.0
  %4297 = vmatpush1.msra.mxu0 0.0
  %4298 = vmatprep.subr.mxu0 0.0
  %4299 = vmatpush1.msra.mxu0 0.0
  %4300 = vmatprep.subr.mxu0 0.0
  %4301 = vmatpush1.msra.mxu0 0.0
  %4302 = vmatprep.subr.mxu0 0.0
  %4303 = vmatpush1.msra.mxu0 0.0
  %4304 = vmatprep.subr.mxu0 0.0
  %4305 = vmatpush1.msra.mxu0 0.0
  %4306 = vmatprep.subr.mxu0 0.0
  %4307 = vmatpush1.msra.mxu0 0.0
  %4308 = vmatprep.subr.mxu0 0.0
  %4309 = vmatpush1.msra.mxu0 0.0
  %4310 = vmatprep.subr.mxu0 0.0
  %4311 = vmatpush1.msra.mxu0 %v3546
  %4312 = vmatprep.subr.mxu0 0.0
  %4313 = vmatpush1.msra.mxu0 %v3541
  %4314 = vmatprep.subr.mxu0 0.0
  %4315 = vmatpush1.msra.mxu0 %v3536
  %4316 = vmatprep.subr.mxu0 0.0
  %4317 = vmatpush1.msra.mxu0 %v3531
  %4318 = vmatprep.subr.mxu0 0.0
  %4319 = vmatpush2.msra.mxu0 0.0
  %4320 = vmatprep.subr.mxu0 0.0
  %4321 = vmatpush2.msra.mxu0 0.0
  %4322 = vmatprep.subr.mxu0 0.0
  %4323 = vmatpush2.msra.mxu0 0.0
  %4324 = vmatprep.subr.mxu0 0.0
  %4325 = vmatpush2.msra.mxu0 0.0
  %4326 = vmatprep.subr.mxu0 0.0
  %4327 = vmatpush2.msra.mxu0 0.0
  %4328 = vmatprep.subr.mxu0 0.0
  %4329 = vmatpush2.msra.mxu0 0.0
  %4330 = vmatprep.subr.mxu0 0.0
  %4331 = vmatpush2.msra.mxu0 0.0
  %4332 = vmatprep.subr.mxu0 0.0
  %4333 = vmatpush2.msra.mxu0 0.0
  %4334 = vmatprep.subr.mxu0 0.0
  %4335 = vmatpush2.msra.mxu0 0.0
  %4336 = vmatprep.subr.mxu0 0.0
  %4337 = vmatpush2.msra.mxu0 0.0
  %4338 = vmatprep.subr.mxu0 0.0
  %4339 = vmatpush2.msra.mxu0 0.0
  %4340 = vmatprep.subr.mxu0 0.0
  %4341 = vmatpush2.msra.mxu0 0.0
  %4342 = vmatprep.subr.mxu0 0.0
  %4343 = vmatpush2.msra.mxu0 0.0
  %4344 = vmatprep.subr.mxu0 0.0
  %4345 = vmatpush2.msra.mxu0 0.0
  %4346 = vmatprep.subr.mxu0 0.0
  %4347 = vmatpush2.msra.mxu0 0.0
  %4348 = vmatprep.subr.mxu0 0.0
  %4349 = vmatpush2.msra.mxu0 0.0
  %4350 = vmatprep.mubr.f32.mxu0 0.0
  %4351 = vmatmul.mubr.f32.gmra.mxu0 %v4275
  %v4352 = vpop.f32.mrf.mxu0
  %v4353 = vadd.f32 0.0, %v4352
  %v4354 = vpop.f32.mrf.mxu0
  %4355 = vmatprep.mubr.f32.mxu0 0.0
  %4356 = vmatmul.mubr.f32.gmra.mxu0 %v4278
  %v4357 = vpop.f32.mrf.mxu0
  %v4358 = vadd.f32 0.0, %v4357
  %v4359 = vpop.f32.mrf.mxu0
  %4360 = vmatprep.mubr.f32.mxu0 0.0
  %4361 = vmatmul.mubr.f32.gmra.mxu0 %v4281
  %v4362 = vpop.f32.mrf.mxu0
  %v4363 = vadd.f32 0.0, %v4362
  %v4364 = vpop.f32.mrf.mxu0
  %4365 = vmatprep.mubr.f32.mxu0 0.0
  %4366 = vmatmul.mubr.f32.gmra.mxu0 %v4284
  %v4367 = vpop.f32.mrf.mxu0
  %v4368 = vadd.f32 0.0, %v4367
  %v4369 = vpop.f32.mrf.mxu0
  %4370 = vdwg.mxu0
  %4371 = vst.msk [vmem:[#allocation2 + $0x20] sm:$0xff] %vm1203, %v4353
  %4372 = vst.msk [vmem:[#allocation2 + $0x28] sm:$0xff] %vm1203, %v4358
  %4373 = vst.msk [vmem:[#allocation2 + $0x30] sm:$0xff] %vm1203, %v4363
  %4374 = vst.msk [vmem:[#allocation2 + $0x38] sm:$0xff] %vm1203, %v4368
  %4375 = vrot.lane.b32.xlu0 %v3271, 112
  %v4376 = vpop.permute.xlu0 %4375
  %4377 = vrot.lane.b32.xlu0 %v3276, 112
  %v4378 = vpop.permute.xlu0 %4377
  %4379 = vrot.lane.b32.xlu0 %v3281, 112
  %v4380 = vpop.permute.xlu0 %4379
  %4381 = vrot.lane.b32.xlu0 %v3286, 112
  %v4382 = vpop.permute.xlu0 %4381
  %4383 = vrot.lane.b32.xlu0 %v3401, 112
  %v4384 = vpop.permute.xlu0 %4383
  %4385 = vrot.lane.b32.xlu0 %v3406, 112
  %v4386 = vpop.permute.xlu0 %4385
  %4387 = vrot.lane.b32.xlu0 %v3411, 112
  %v4388 = vpop.permute.xlu0 %4387
  %4389 = vrot.lane.b32.xlu0 %v3416, 112
  %v4390 = vpop.permute.xlu0 %4389
  %v4391 = vsel %vm1203, %v4376, 0
  %v4393 = vsel %vm1203, %v4378, 0
  %v4395 = vsel %vm1203, %v4380, 0
  %v4397 = vsel %vm1203, %v4382, 0
  %v4399 = vsel %vm1203, %v4384, 0
  %v4401 = vsel %vm1203, %v4386, 0
  %v4403 = vsel %vm1203, %v4388, 0
  %v4405 = vsel %vm1203, %v4390, 0
  %4407 = vmatprep.subr.mxu0 0.0
  %4408 = vmatpush1.xpose.msra.mxu0 0.0
  %4409 = vmatprep.subr.mxu0 0.0
  %4410 = vmatpush1.xpose.msra.mxu0 0.0
  %4411 = vmatprep.subr.mxu0 0.0
  %4412 = vmatpush1.xpose.msra.mxu0 0.0
  %4413 = vmatprep.subr.mxu0 0.0
  %4414 = vmatpush1.xpose.msra.mxu0 0.0
  %4415 = vmatprep.subr.mxu0 0.0
  %4416 = vmatpush1.xpose.msra.mxu0 0.0
  %4417 = vmatprep.subr.mxu0 0.0
  %4418 = vmatpush1.xpose.msra.mxu0 0.0
  %4419 = vmatprep.subr.mxu0 0.0
  %4420 = vmatpush1.xpose.msra.mxu0 0.0
  %4421 = vmatprep.subr.mxu0 0.0
  %4422 = vmatpush1.xpose.msra.mxu0 0.0
  %4423 = vmatprep.subr.mxu0 0.0
  %4424 = vmatpush1.xpose.msra.mxu0 0.0
  %4425 = vmatprep.subr.mxu0 0.0
  %4426 = vmatpush1.xpose.msra.mxu0 0.0
  %4427 = vmatprep.subr.mxu0 0.0
  %4428 = vmatpush1.xpose.msra.mxu0 0.0
  %4429 = vmatprep.subr.mxu0 0.0
  %4430 = vmatpush1.xpose.msra.mxu0 0.0
  %4431 = vmatprep.subr.mxu0 0.0
  %4432 = vmatpush1.xpose.msra.mxu0 %v4405
  %4433 = vmatprep.subr.mxu0 0.0
  %4434 = vmatpush1.xpose.msra.mxu0 %v4403
  %4435 = vmatprep.subr.mxu0 0.0
  %4436 = vmatpush1.xpose.msra.mxu0 %v4401
  %4437 = vmatprep.subr.mxu0 0.0
  %4438 = vmatpush1.xpose.msra.mxu0 %v4399
  %4439 = vmatprep.subr.mxu0 0.0
  %4440 = vmatpush2.xpose.msra.mxu0 0.0
  %4441 = vmatprep.subr.mxu0 0.0
  %4442 = vmatpush2.xpose.msra.mxu0 0.0
  %4443 = vmatprep.subr.mxu0 0.0
  %4444 = vmatpush2.xpose.msra.mxu0 0.0
  %4445 = vmatprep.subr.mxu0 0.0
  %4446 = vmatpush2.xpose.msra.mxu0 0.0
  %4447 = vmatprep.subr.mxu0 0.0
  %4448 = vmatpush2.xpose.msra.mxu0 0.0
  %4449 = vmatprep.subr.mxu0 0.0
  %4450 = vmatpush2.xpose.msra.mxu0 0.0
  %4451 = vmatprep.subr.mxu0 0.0
  %4452 = vmatpush2.xpose.msra.mxu0 0.0
  %4453 = vmatprep.subr.mxu0 0.0
  %4454 = vmatpush2.xpose.msra.mxu0 0.0
  %4455 = vmatprep.subr.mxu0 0.0
  %4456 = vmatpush2.xpose.msra.mxu0 0.0
  %4457 = vmatprep.subr.mxu0 0.0
  %4458 = vmatpush2.xpose.msra.mxu0 0.0
  %4459 = vmatprep.subr.mxu0 0.0
  %4460 = vmatpush2.xpose.msra.mxu0 0.0
  %4461 = vmatprep.subr.mxu0 0.0
  %4462 = vmatpush2.xpose.msra.mxu0 0.0
  %4463 = vmatprep.subr.mxu0 0.0
  %4464 = vmatpush2.xpose.msra.mxu0 0.0
  %4465 = vmatprep.subr.mxu0 0.0
  %4466 = vmatpush2.xpose.msra.mxu0 0.0
  %4467 = vmatprep.subr.mxu0 0.0
  %4468 = vmatpush2.xpose.msra.mxu0 0.0
  %4469 = vmatprep.subr.mxu0 0.0
  %4470 = vmatpush2.xpose.msra.mxu0 0.0
  %4471 = vmatprep.mubr.f32.mxu0 0.0
  %4472 = vmatmul.mubr.f32.gmra.mxu0 %v4391
  %v4473 = vpop.f32.mrf.mxu0
  %v4474 = vadd.f32 0.0, %v4473
  %v4475 = vpop.f32.mrf.mxu0
  %4476 = vmatprep.mubr.f32.mxu0 0.0
  %4477 = vmatmul.mubr.f32.gmra.mxu0 %v4393
  %v4478 = vpop.f32.mrf.mxu0
  %v4479 = vadd.f32 0.0, %v4478
  %v4480 = vpop.f32.mrf.mxu0
  %4481 = vmatprep.mubr.f32.mxu0 0.0
  %4482 = vmatmul.mubr.f32.gmra.mxu0 %v4395
  %v4483 = vpop.f32.mrf.mxu0
  %v4484 = vadd.f32 0.0, %v4483
  %v4485 = vpop.f32.mrf.mxu0
  %4486 = vmatprep.mubr.f32.mxu0 0.0
  %4487 = vmatmul.mubr.f32.gmra.mxu0 %v4397
  %v4488 = vpop.f32.mrf.mxu0
  %v4489 = vadd.f32 0.0, %v4488
  %v4490 = vpop.f32.mrf.mxu0
  %4491 = vdwg.mxu0
  %v4492 = vmul.f32 %v4474, 0.25
  %v4493 = vmul.f32 %v4479, 0.25
  %v4494 = vmul.f32 %v4484, 0.25
  %v4495 = vmul.f32 %v4489, 0.25
  %v4496 = vadd.f32 %v4492, %v657
  %v4497 = vadd.f32 %v4493, %v658
  %v4498 = vadd.f32 %v4494, %v659
  %v4499 = vadd.f32 %v4495, %v660
  %v4500 = vsel %vm475, %v4496, -inf
  %4501 = vmax.xlane.f32.xlu0 %v4500
  %v4502 = vpop.xlane.xlu0 %4501
  %v4503 = vsel %vm475, %v4497, -inf
  %4504 = vmax.xlane.f32.xlu0 %v4503
  %v4505 = vpop.xlane.xlu0 %4504
  %v4506 = vsel %vm475, %v4498, -inf
  %4507 = vmax.xlane.f32.xlu0 %v4506
  %v4508 = vpop.xlane.xlu0 %4507
  %v4509 = vsel %vm475, %v4499, -inf
  %4510 = vmax.xlane.f32.xlu0 %v4509
  %v4511 = vpop.xlane.xlu0 %4510
  %v4512 = vsub.f32 %v4496, %v4502
  %v4513 = vsub.f32 %v4497, %v4505
  %v4514 = vsub.f32 %v4498, %v4508
  %v4515 = vsub.f32 %v4499, %v4511
  %v4516 = vmul.f32 %v4512, 1.442695
  %v4517 = vpow.pop %v4516
  %v4518 = vmul.f32 %v4513, 1.442695
  %v4519 = vpow.pop %v4518
  %v4520 = vmul.f32 %v4514, 1.442695
  %v4521 = vpow.pop %v4520
  %v4522 = vmul.f32 %v4515, 1.442695
  %v4523 = vpow.pop %v4522
  %v4524 = vsel %vm475, %v4517, 0.0
  %4525 = vadd.xlane.f32.xlu0 %v4524
  %v4526 = vpop.xlane.xlu0 %4525
  %v4527 = vsel %vm475, %v4519, 0.0
  %4528 = vadd.xlane.f32.xlu0 %v4527
  %v4529 = vpop.xlane.xlu0 %4528
  %v4530 = vsel %vm475, %v4521, 0.0
  %4531 = vadd.xlane.f32.xlu0 %v4530
  %v4532 = vpop.xlane.xlu0 %4531
  %v4533 = vsel %vm475, %v4523, 0.0
  %4534 = vadd.xlane.f32.xlu0 %v4533
  %v4535 = vpop.xlane.xlu0 %4534
  %v4536 = vrcp.pop %v4526
  %v4537 = vrcp.pop %v4529
  %v4538 = vrcp.pop %v4532
  %v4539 = vrcp.pop %v4535
  %v4540 = vmul.f32 %v4517, %v4536
  %v4541 = vmul.f32 %v4519, %v4537
  %v4542 = vmul.f32 %v4521, %v4538
  %v4543 = vmul.f32 %v4523, %v4539
  %4548 = vrot.lane.b32.xlu0 %v3531, 112
  %v4549 = vpop.permute.xlu0 %4548
  %4550 = vrot.lane.b32.xlu0 %v3536, 112
  %v4551 = vpop.permute.xlu0 %4550
  %4552 = vrot.lane.b32.xlu0 %v3541, 112
  %v4553 = vpop.permute.xlu0 %4552
  %4554 = vrot.lane.b32.xlu0 %v3546, 112
  %v4555 = vpop.permute.xlu0 %4554
  %v4561 = vsel %vm475, %v4540, 0
  %v4564 = vsel %vm475, %v4541, 0
  %v4567 = vsel %vm475, %v4542, 0
  %v4570 = vsel %vm475, %v4543, 0
  %4572 = vmatprep.subr.mxu0 0.0
  %4573 = vmatpush1.msra.mxu0 0.0
  %4574 = vmatprep.subr.mxu0 0.0
  %4575 = vmatpush1.msra.mxu0 0.0
  %4576 = vmatprep.subr.mxu0 0.0
  %4577 = vmatpush1.msra.mxu0 0.0
  %4578 = vmatprep.subr.mxu0 0.0
  %4579 = vmatpush1.msra.mxu0 0.0
  %4580 = vmatprep.subr.mxu0 0.0
  %4581 = vmatpush1.msra.mxu0 0.0
  %4582 = vmatprep.subr.mxu0 0.0
  %4583 = vmatpush1.msra.mxu0 0.0
  %4584 = vmatprep.subr.mxu0 0.0
  %4585 = vmatpush1.msra.mxu0 0.0
  %4586 = vmatprep.subr.mxu0 0.0
  %4587 = vmatpush1.msra.mxu0 0.0
  %4588 = vmatprep.subr.mxu0 0.0
  %4589 = vmatpush1.msra.mxu0 0.0
  %4590 = vmatprep.subr.mxu0 0.0
  %4591 = vmatpush1.msra.mxu0 0.0
  %4592 = vmatprep.subr.mxu0 0.0
  %4593 = vmatpush1.msra.mxu0 0.0
  %4594 = vmatprep.subr.mxu0 0.0
  %4595 = vmatpush1.msra.mxu0 0.0
  %4596 = vmatprep.subr.mxu0 0.0
  %4597 = vmatpush1.msra.mxu0 %v4555
  %4598 = vmatprep.subr.mxu0 0.0
  %4599 = vmatpush1.msra.mxu0 %v4553
  %4600 = vmatprep.subr.mxu0 0.0
  %4601 = vmatpush1.msra.mxu0 %v4551
  %4602 = vmatprep.subr.mxu0 0.0
  %4603 = vmatpush1.msra.mxu0 %v4549
  %4604 = vmatprep.subr.mxu0 0.0
  %4605 = vmatpush2.msra.mxu0 0.0
  %4606 = vmatprep.subr.mxu0 0.0
  %4607 = vmatpush2.msra.mxu0 0.0
  %4608 = vmatprep.subr.mxu0 0.0
  %4609 = vmatpush2.msra.mxu0 0.0
  %4610 = vmatprep.subr.mxu0 0.0
  %4611 = vmatpush2.msra.mxu0 0.0
  %4612 = vmatprep.subr.mxu0 0.0
  %4613 = vmatpush2.msra.mxu0 0.0
  %4614 = vmatprep.subr.mxu0 0.0
  %4615 = vmatpush2.msra.mxu0 0.0
  %4616 = vmatprep.subr.mxu0 0.0
  %4617 = vmatpush2.msra.mxu0 0.0
  %4618 = vmatprep.subr.mxu0 0.0
  %4619 = vmatpush2.msra.mxu0 0.0
  %4620 = vmatprep.subr.mxu0 0.0
  %4621 = vmatpush2.msra.mxu0 0.0
  %4622 = vmatprep.subr.mxu0 0.0
  %4623 = vmatpush2.msra.mxu0 0.0
  %4624 = vmatprep.subr.mxu0 0.0
  %4625 = vmatpush2.msra.mxu0 0.0
  %4626 = vmatprep.subr.mxu0 0.0
  %4627 = vmatpush2.msra.mxu0 0.0
  %4628 = vmatprep.subr.mxu0 0.0
  %4629 = vmatpush2.msra.mxu0 0.0
  %4630 = vmatprep.subr.mxu0 0.0
  %4631 = vmatpush2.msra.mxu0 0.0
  %4632 = vmatprep.subr.mxu0 0.0
  %4633 = vmatpush2.msra.mxu0 0.0
  %4634 = vmatprep.subr.mxu0 0.0
  %4635 = vmatpush2.msra.mxu0 0.0
  %4636 = vmatprep.mubr.f32.mxu0 0.0
  %4637 = vmatmul.mubr.f32.gmra.mxu0 %v4561
  %v4638 = vpop.f32.mrf.mxu0
  %v4639 = vadd.f32 0.0, %v4638
  %v4640 = vpop.f32.mrf.mxu0
  %4641 = vmatprep.mubr.f32.mxu0 0.0
  %4642 = vmatmul.mubr.f32.gmra.mxu0 %v4564
  %v4643 = vpop.f32.mrf.mxu0
  %v4644 = vadd.f32 0.0, %v4643
  %v4645 = vpop.f32.mrf.mxu0
  %4646 = vmatprep.mubr.f32.mxu0 0.0
  %4647 = vmatmul.mubr.f32.gmra.mxu0 %v4567
  %v4648 = vpop.f32.mrf.mxu0
  %v4649 = vadd.f32 0.0, %v4648
  %v4650 = vpop.f32.mrf.mxu0
  %4651 = vmatprep.mubr.f32.mxu0 0.0
  %4652 = vmatmul.mubr.f32.gmra.mxu0 %v4570
  %v4653 = vpop.f32.mrf.mxu0
  %v4654 = vadd.f32 0.0, %v4653
  %v4655 = vpop.f32.mrf.mxu0
  %4656 = vdwg.mxu0
  %4661 = vrot.lane.b32.xlu0 %v4639, 16
  %v4662 = vpop.permute.xlu0 %4661
  %4663 = vrot.lane.b32.xlu0 %v4644, 16
  %v4664 = vpop.permute.xlu0 %4663
  %4665 = vrot.lane.b32.xlu0 %v4649, 16
  %v4666 = vpop.permute.xlu0 %4665
  %4667 = vrot.lane.b32.xlu0 %v4654, 16
  %v4668 = vpop.permute.xlu0 %4667
  %4673 = vst.msk [vmem:[#allocation2 + $0x20] sm:$0xff] %vm1764, %v4662
  %4674 = vst.msk [vmem:[#allocation2 + $0x28] sm:$0xff] %vm1764, %v4664
  %4675 = vst.msk [vmem:[#allocation2 + $0x30] sm:$0xff] %vm1764, %v4666
  %4676 = vst.msk [vmem:[#allocation2 + $0x38] sm:$0xff] %vm1764, %v4668
  %v4677 = vld [vmem:[#allocation2] sm:$0xff]
  %v4678 = vld [vmem:[#allocation2 + $0x8] sm:$0xff]
  %v4679 = vld [vmem:[#allocation2 + $0x10] sm:$0xff]
  %v4680 = vld [vmem:[#allocation2 + $0x18] sm:$0xff]
  %v4681 = vld [vmem:[#allocation2 + $0x20] sm:$0xff]
  %v4682 = vld [vmem:[#allocation2 + $0x28] sm:$0xff]
  %v4683 = vld [vmem:[#allocation2 + $0x30] sm:$0xff]
  %v4684 = vld [vmem:[#allocation2 + $0x38] sm:$0xff]
  %s4685 = scalar_lea.vmem %s17, 32
  %v4686 = vld [vmem:[%s4685] sm:$0xff]
  %v4687 = vld [vmem:[%s4685 + $0x8] sm:$0xff]
  %v4688 = vld [vmem:[%s4685 + $0x10] sm:$0xff]
  %v4689 = vld [vmem:[%s4685 + $0x18] sm:$0xff]
  %s4690 = scalar_lea.vmem %s18, 1
  %v4691 = vld [vmem:[%s4690] sm:$0x1]
  %v4693 = vlaneseq
  %v4694 = vshrl.u32 %v4693, 7
  %v4695 = vsub.s32 0, %v4694
  %v4696 = vrot.slane %v4691, %v4695
  %v4699 = vsel %vm475, %v4677, 0
  %v4702 = vsel %vm475, %v4678, 0
  %v4705 = vsel %vm475, %v4679, 0
  %v4708 = vsel %vm475, %v4680, 0
  %v4711 = vsel %vm475, %v4681, 0
  %v4714 = vsel %vm475, %v4682, 0
  %v4717 = vsel %vm475, %v4683, 0
  %v4720 = vsel %vm475, %v4684, 0
  %v4723 = vsel %vm475, %v4686, 0
  %v4726 = vsel %vm475, %v4687, 0
  %v4729 = vsel %vm475, %v4688, 0
  %v4732 = vsel %vm475, %v4689, 0
  %4734 = vmatprep.subr.mxu0 0.0
  %4735 = vmatpush1.xpose.msra.mxu0 0.0
  %4736 = vmatprep.subr.mxu0 0.0
  %4737 = vmatpush1.xpose.msra.mxu0 0.0
  %4738 = vmatprep.subr.mxu0 0.0
  %4739 = vmatpush1.xpose.msra.mxu0 0.0
  %4740 = vmatprep.subr.mxu0 0.0
  %4741 = vmatpush1.xpose.msra.mxu0 0.0
  %4742 = vmatprep.subr.mxu0 0.0
  %4743 = vmatpush1.xpose.msra.mxu0 0.0
  %4744 = vmatprep.subr.mxu0 0.0
  %4745 = vmatpush1.xpose.msra.mxu0 0.0
  %4746 = vmatprep.subr.mxu0 0.0
  %4747 = vmatpush1.xpose.msra.mxu0 0.0
  %4748 = vmatprep.subr.mxu0 0.0
  %4749 = vmatpush1.xpose.msra.mxu0 0.0
  %4750 = vmatprep.subr.mxu0 0.0
  %4751 = vmatpush1.xpose.msra.mxu0 0.0
  %4752 = vmatprep.subr.mxu0 0.0
  %4753 = vmatpush1.xpose.msra.mxu0 0.0
  %4754 = vmatprep.subr.mxu0 0.0
  %4755 = vmatpush1.xpose.msra.mxu0 0.0
  %4756 = vmatprep.subr.mxu0 0.0
  %4757 = vmatpush1.xpose.msra.mxu0 0.0
  %4758 = vmatprep.subr.mxu0 0.0
  %4759 = vmatpush1.xpose.msra.mxu0 %v4732
  %4760 = vmatprep.subr.mxu0 0.0
  %4761 = vmatpush1.xpose.msra.mxu0 %v4729
  %4762 = vmatprep.subr.mxu0 0.0
  %4763 = vmatpush1.xpose.msra.mxu0 %v4726
  %4764 = vmatprep.subr.mxu0 0.0
  %4765 = vmatpush1.xpose.msra.mxu0 %v4723
  %4766 = vmatprep.subr.mxu0 0.0
  %4767 = vmatpush2.xpose.msra.mxu0 0.0
  %4768 = vmatprep.subr.mxu0 0.0
  %4769 = vmatpush2.xpose.msra.mxu0 0.0
  %4770 = vmatprep.subr.mxu0 0.0
  %4771 = vmatpush2.xpose.msra.mxu0 0.0
  %4772 = vmatprep.subr.mxu0 0.0
  %4773 = vmatpush2.xpose.msra.mxu0 0.0
  %4774 = vmatprep.subr.mxu0 0.0
  %4775 = vmatpush2.xpose.msra.mxu0 0.0
  %4776 = vmatprep.subr.mxu0 0.0
  %4777 = vmatpush2.xpose.msra.mxu0 0.0
  %4778 = vmatprep.subr.mxu0 0.0
  %4779 = vmatpush2.xpose.msra.mxu0 0.0
  %4780 = vmatprep.subr.mxu0 0.0
  %4781 = vmatpush2.xpose.msra.mxu0 0.0
  %4782 = vmatprep.subr.mxu0 0.0
  %4783 = vmatpush2.xpose.msra.mxu0 0.0
  %4784 = vmatprep.subr.mxu0 0.0
  %4785 = vmatpush2.xpose.msra.mxu0 0.0
  %4786 = vmatprep.subr.mxu0 0.0
  %4787 = vmatpush2.xpose.msra.mxu0 0.0
  %4788 = vmatprep.subr.mxu0 0.0
  %4789 = vmatpush2.xpose.msra.mxu0 0.0
  %4790 = vmatprep.subr.mxu0 0.0
  %4791 = vmatpush2.xpose.msra.mxu0 0.0
  %4792 = vmatprep.subr.mxu0 0.0
  %4793 = vmatpush2.xpose.msra.mxu0 0.0
  %4794 = vmatprep.subr.mxu0 0.0
  %4795 = vmatpush2.xpose.msra.mxu0 0.0
  %4796 = vmatprep.subr.mxu0 0.0
  %4797 = vmatpush2.xpose.msra.mxu0 0.0
  %4798 = vmatprep.mubr.f32.mxu0 0.0
  %4799 = vmatmul.mubr.f32.gmra.mxu0 %v4699
  %v4800 = vpop.f32.mrf.mxu0
  %v4801 = vadd.f32 %v4696, %v4800
  %v4802 = vpop.f32.mrf.mxu0
  %4803 = vmatprep.mubr.f32.mxu0 0.0
  %4804 = vmatmul.mubr.f32.gmra.mxu0 %v4702
  %v4805 = vpop.f32.mrf.mxu0
  %v4806 = vadd.f32 %v4696, %v4805
  %v4807 = vpop.f32.mrf.mxu0
  %4808 = vmatprep.mubr.f32.mxu0 0.0
  %4809 = vmatmul.mubr.f32.gmra.mxu0 %v4705
  %v4810 = vpop.f32.mrf.mxu0
  %v4811 = vadd.f32 %v4696, %v4810
  %v4812 = vpop.f32.mrf.mxu0
  %4813 = vmatprep.mubr.f32.mxu0 0.0
  %4814 = vmatmul.mubr.f32.gmra.mxu0 %v4708
  %v4815 = vpop.f32.mrf.mxu0
  %v4816 = vadd.f32 %v4696, %v4815
  %v4817 = vpop.f32.mrf.mxu0
  %4818 = vmatprep.mubr.f32.mxu0 0.0
  %4819 = vmatmul.mubr.f32.gmra.mxu0 %v4711
  %v4820 = vpop.f32.mrf.mxu0
  %v4821 = vadd.f32 %v4696, %v4820
  %v4822 = vpop.f32.mrf.mxu0
  %4823 = vmatprep.mubr.f32.mxu0 0.0
  %4824 = vmatmul.mubr.f32.gmra.mxu0 %v4714
  %v4825 = vpop.f32.mrf.mxu0
  %v4826 = vadd.f32 %v4696, %v4825
  %v4827 = vpop.f32.mrf.mxu0
  %4828 = vmatprep.mubr.f32.mxu0 0.0
  %4829 = vmatmul.mubr.f32.gmra.mxu0 %v4717
  %v4830 = vpop.f32.mrf.mxu0
  %v4831 = vadd.f32 %v4696, %v4830
  %v4832 = vpop.f32.mrf.mxu0
  %4833 = vmatprep.mubr.f32.mxu0 0.0
  %4834 = vmatmul.mubr.f32.gmra.mxu0 %v4720
  %v4835 = vpop.f32.mrf.mxu0
  %v4836 = vadd.f32 %v4696, %v4835
  %v4837 = vpop.f32.mrf.mxu0
  %4838 = vdwg.mxu0
  %v4839 = vadd.f32 %v2991, %v4801
  %v4840 = vadd.f32 %v2992, %v4806
  %v4841 = vadd.f32 %v2993, %v4811
  %v4842 = vadd.f32 %v2994, %v4816
  %v4843 = vadd.f32 %v2995, %v4821
  %v4844 = vadd.f32 %v2996, %v4826
  %v4845 = vadd.f32 %v2997, %v4831
  %v4846 = vadd.f32 %v2998, %v4836
  %s4847 = scalar_lea.vmem %s19, 1
  %v4848 = vld [vmem:[%s4847] sm:$0x1]
  %s4849 = scalar_lea.vmem %s20, 1
  %v4850 = vld [vmem:[%s4849] sm:$0x1]
  %v4851 = vsel %vm475, %v4839, 0.0
  %4852 = vadd.xlane.f32.xlu0 %v4851
  %v4853 = vpop.xlane.xlu0 %4852
  %v4854 = vsel %vm475, %v4840, 0.0
  %4855 = vadd.xlane.f32.xlu0 %v4854
  %v4856 = vpop.xlane.xlu0 %4855
  %v4857 = vsel %vm475, %v4841, 0.0
  %4858 = vadd.xlane.f32.xlu0 %v4857
  %v4859 = vpop.xlane.xlu0 %4858
  %v4860 = vsel %vm475, %v4842, 0.0
  %4861 = vadd.xlane.f32.xlu0 %v4860
  %v4862 = vpop.xlane.xlu0 %4861
  %v4863 = vsel %vm475, %v4843, 0.0
  %4864 = vadd.xlane.f32.xlu0 %v4863
  %v4865 = vpop.xlane.xlu0 %4864
  %v4866 = vsel %vm475, %v4844, 0.0
  %4867 = vadd.xlane.f32.xlu0 %v4866
  %v4868 = vpop.xlane.xlu0 %4867
  %v4869 = vsel %vm475, %v4845, 0.0
  %4870 = vadd.xlane.f32.xlu0 %v4869
  %v4871 = vpop.xlane.xlu0 %4870
  %v4872 = vsel %vm475, %v4846, 0.0
  %4873 = vadd.xlane.f32.xlu0 %v4872
  %v4874 = vpop.xlane.xlu0 %4873
  %v4875 = vmul.f32 %v4853, %v519
  %v4876 = vmul.f32 %v4856, %v519
  %v4877 = vmul.f32 %v4859, %v519
  %v4878 = vmul.f32 %v4862, %v519
  %v4879 = vmul.f32 %v4865, %v519
  %v4880 = vmul.f32 %v4868, %v519
  %v4881 = vmul.f32 %v4871, %v519
  %v4882 = vmul.f32 %v4874, %v519
  %v4883 = vsub.f32 %v4839, %v4875
  %v4884 = vsub.f32 %v4840, %v4876
  %v4885 = vsub.f32 %v4841, %v4877
  %v4886 = vsub.f32 %v4842, %v4878
  %v4887 = vsub.f32 %v4843, %v4879
  %v4888 = vsub.f32 %v4844, %v4880
  %v4889 = vsub.f32 %v4845, %v4881
  %v4890 = vsub.f32 %v4846, %v4882
  %v4891 = vmul.f32 %v4883, %v4883
  %v4892 = vmul.f32 %v4884, %v4884
  %v4893 = vmul.f32 %v4885, %v4885
  %v4894 = vmul.f32 %v4886, %v4886
  %v4895 = vmul.f32 %v4887, %v4887
  %v4896 = vmul.f32 %v4888, %v4888
  %v4897 = vmul.f32 %v4889, %v4889
  %v4898 = vmul.f32 %v4890, %v4890
  %v4899 = vsel %vm475, %v4891, 0.0
  %4900 = vadd.xlane.f32.xlu0 %v4899
  %v4901 = vpop.xlane.xlu0 %4900
  %v4902 = vsel %vm475, %v4892, 0.0
  %4903 = vadd.xlane.f32.xlu0 %v4902
  %v4904 = vpop.xlane.xlu0 %4903
  %v4905 = vsel %vm475, %v4893, 0.0
  %4906 = vadd.xlane.f32.xlu0 %v4905
  %v4907 = vpop.xlane.xlu0 %4906
  %v4908 = vsel %vm475, %v4894, 0.0
  %4909 = vadd.xlane.f32.xlu0 %v4908
  %v4910 = vpop.xlane.xlu0 %4909
  %v4911 = vsel %vm475, %v4895, 0.0
  %4912 = vadd.xlane.f32.xlu0 %v4911
  %v4913 = vpop.xlane.xlu0 %4912
  %v4914 = vsel %vm475, %v4896, 0.0
  %4915 = vadd.xlane.f32.xlu0 %v4914
  %v4916 = vpop.xlane.xlu0 %4915
  %v4917 = vsel %vm475, %v4897, 0.0
  %4918 = vadd.xlane.f32.xlu0 %v4917
  %v4919 = vpop.xlane.xlu0 %4918
  %v4920 = vsel %vm475, %v4898, 0.0
  %4921 = vadd.xlane.f32.xlu0 %v4920
  %v4922 = vpop.xlane.xlu0 %4921
  %v4923 = vmul.f32 %v4901, %v519
  %v4924 = vmul.f32 %v4904, %v519
  %v4925 = vmul.f32 %v4907, %v519
  %v4926 = vmul.f32 %v4910, %v519
  %v4927 = vmul.f32 %v4913, %v519
  %v4928 = vmul.f32 %v4916, %v519
  %v4929 = vmul.f32 %v4919, %v519
  %v4930 = vmul.f32 %v4922, %v519
  %v4931 = vadd.f32 %v4923, 1e-05
  %v4932 = vadd.f32 %v4924, 1e-05
  %v4933 = vadd.f32 %v4925, 1e-05
  %v4934 = vadd.f32 %v4926, 1e-05
  %v4935 = vadd.f32 %v4927, 1e-05
  %v4936 = vadd.f32 %v4928, 1e-05
  %v4937 = vadd.f32 %v4929, 1e-05
  %v4938 = vadd.f32 %v4930, 1e-05
  %v4939 = vrsqrt.pop %v4931
  %v4940 = vrsqrt.pop %v4932
  %v4941 = vrsqrt.pop %v4933
  %v4942 = vrsqrt.pop %v4934
  %v4943 = vrsqrt.pop %v4935
  %v4944 = vrsqrt.pop %v4936
  %v4945 = vrsqrt.pop %v4937
  %v4946 = vrsqrt.pop %v4938
  %v4947 = vmul.f32 %v4883, %v4939
  %v4948 = vmul.f32 %v4884, %v4940
  %v4949 = vmul.f32 %v4885, %v4941
  %v4950 = vmul.f32 %v4886, %v4942
  %v4951 = vmul.f32 %v4887, %v4943
  %v4952 = vmul.f32 %v4888, %v4944
  %v4953 = vmul.f32 %v4889, %v4945
  %v4954 = vmul.f32 %v4890, %v4946
  %v4956 = vlaneseq
  %v4957 = vshrl.u32 %v4956, 7
  %v4958 = vsub.s32 0, %v4957
  %v4959 = vrot.slane %v4848, %v4958
  %v4961 = vmul.f32 %v4947, %v4959
  %v4962 = vmul.f32 %v4948, %v4959
  %v4963 = vmul.f32 %v4949, %v4959
  %v4964 = vmul.f32 %v4950, %v4959
  %v4965 = vmul.f32 %v4951, %v4959
  %v4966 = vmul.f32 %v4952, %v4959
  %v4967 = vmul.f32 %v4953, %v4959
  %v4968 = vmul.f32 %v4954, %v4959
  %v4970 = vlaneseq
  %v4971 = vshrl.u32 %v4970, 7
  %v4972 = vsub.s32 0, %v4971
  %v4973 = vrot.slane %v4850, %v4972
  %v4975 = vadd.f32 %v4961, %v4973
  %v4976 = vadd.f32 %v4962, %v4973
  %v4977 = vadd.f32 %v4963, %v4973
  %v4978 = vadd.f32 %v4964, %v4973
  %v4979 = vadd.f32 %v4965, %v4973
  %v4980 = vadd.f32 %v4966, %v4973
  %v4981 = vadd.f32 %v4967, %v4973
  %v4982 = vadd.f32 %v4968, %v4973
  %s4983 = scalar_lea.vmem %s21, 128
  %v4984 = vld [vmem:[%s4983] sm:$0xff]
  %v4985 = vld [vmem:[%s4983 + $0x8] sm:$0xff]
  %v4986 = vld [vmem:[%s4983 + $0x10] sm:$0xff]
  %v4987 = vld [vmem:[%s4983 + $0x18] sm:$0xff]
  %v4988 = vld [vmem:[%s4983 + $0x20] sm:$0xff]
  %v4989 = vld [vmem:[%s4983 + $0x28] sm:$0xff]
  %v4990 = vld [vmem:[%s4983 + $0x30] sm:$0xff]
  %v4991 = vld [vmem:[%s4983 + $0x38] sm:$0xff]
  %v4992 = vld [vmem:[%s4983 + $0x40] sm:$0xff]
  %v4993 = vld [vmem:[%s4983 + $0x48] sm:$0xff]
  %v4994 = vld [vmem:[%s4983 + $0x50] sm:$0xff]
  %v4995 = vld [vmem:[%s4983 + $0x58] sm:$0xff]
  %v4996 = vld [vmem:[%s4983 + $0x60] sm:$0xff]
  %v4997 = vld [vmem:[%s4983 + $0x68] sm:$0xff]
  %v4998 = vld [vmem:[%s4983 + $0x70] sm:$0xff]
  %v4999 = vld [vmem:[%s4983 + $0x78] sm:$0xff]
  %s5000 = scalar_lea.vmem %s22, 1
  %v5001 = vld [vmem:[%s5000] sm:$0x1]
  %v5003 = vlaneseq
  %v5004 = vshrl.u32 %v5003, 7
  %v5005 = vsub.s32 0, %v5004
  %v5006 = vrot.slane %v5001, %v5005
  %v5009 = vsel %vm475, %v4975, 0
  %v5012 = vsel %vm475, %v4976, 0
  %v5015 = vsel %vm475, %v4977, 0
  %v5018 = vsel %vm475, %v4978, 0
  %v5021 = vsel %vm475, %v4979, 0
  %v5024 = vsel %vm475, %v4980, 0
  %v5027 = vsel %vm475, %v4981, 0
  %v5030 = vsel %vm475, %v4982, 0
  %v5033 = vsel %vm475, %v4984, 0
  %v5036 = vsel %vm475, %v4985, 0
  %v5039 = vsel %vm475, %v4986, 0
  %v5042 = vsel %vm475, %v4987, 0
  %v5045 = vsel %vm475, %v4988, 0
  %v5048 = vsel %vm475, %v4989, 0
  %v5051 = vsel %vm475, %v4990, 0
  %v5054 = vsel %vm475, %v4991, 0
  %v5057 = vsel %vm475, %v4992, 0
  %v5060 = vsel %vm475, %v4993, 0
  %v5063 = vsel %vm475, %v4994, 0
  %v5066 = vsel %vm475, %v4995, 0
  %v5069 = vsel %vm475, %v4996, 0
  %v5072 = vsel %vm475, %v4997, 0
  %v5075 = vsel %vm475, %v4998, 0
  %v5078 = vsel %vm475, %v4999, 0
  %5080 = vmatprep.subr.mxu0 0.0
  %5081 = vmatpush1.xpose.msra.mxu0 %v5078
  %5082 = vmatprep.subr.mxu0 0.0
  %5083 = vmatpush1.xpose.msra.mxu0 %v5075
  %5084 = vmatprep.subr.mxu0 0.0
  %5085 = vmatpush1.xpose.msra.mxu0 %v5072
  %5086 = vmatprep.subr.mxu0 0.0
  %5087 = vmatpush1.xpose.msra.mxu0 %v5069
  %5088 = vmatprep.subr.mxu0 0.0
  %5089 = vmatpush1.xpose.msra.mxu0 %v5066
  %5090 = vmatprep.subr.mxu0 0.0
  %5091 = vmatpush1.xpose.msra.mxu0 %v5063
  %5092 = vmatprep.subr.mxu0 0.0
  %5093 = vmatpush1.xpose.msra.mxu0 %v5060
  %5094 = vmatprep.subr.mxu0 0.0
  %5095 = vmatpush1.xpose.msra.mxu0 %v5057
  %5096 = vmatprep.subr.mxu0 0.0
  %5097 = vmatpush1.xpose.msra.mxu0 %v5054
  %5098 = vmatprep.subr.mxu0 0.0
  %5099 = vmatpush1.xpose.msra.mxu0 %v5051
  %5100 = vmatprep.subr.mxu0 0.0
  %5101 = vmatpush1.xpose.msra.mxu0 %v5048
  %5102 = vmatprep.subr.mxu0 0.0
  %5103 = vmatpush1.xpose.msra.mxu0 %v5045
  %5104 = vmatprep.subr.mxu0 0.0
  %5105 = vmatpush1.xpose.msra.mxu0 %v5042
  %5106 = vmatprep.subr.mxu0 0.0
  %5107 = vmatpush1.xpose.msra.mxu0 %v5039
  %5108 = vmatprep.subr.mxu0 0.0
  %5109 = vmatpush1.xpose.msra.mxu0 %v5036
  %5110 = vmatprep.subr.mxu0 0.0
  %5111 = vmatpush1.xpose.msra.mxu0 %v5033
  %5112 = vmatprep.subr.mxu0 0.0
  %5113 = vmatpush2.xpose.msra.mxu0 0.0
  %5114 = vmatprep.subr.mxu0 0.0
  %5115 = vmatpush2.xpose.msra.mxu0 0.0
  %5116 = vmatprep.subr.mxu0 0.0
  %5117 = vmatpush2.xpose.msra.mxu0 0.0
  %5118 = vmatprep.subr.mxu0 0.0
  %5119 = vmatpush2.xpose.msra.mxu0 0.0
  %5120 = vmatprep.subr.mxu0 0.0
  %5121 = vmatpush2.xpose.msra.mxu0 0.0
  %5122 = vmatprep.subr.mxu0 0.0
  %5123 = vmatpush2.xpose.msra.mxu0 0.0
  %5124 = vmatprep.subr.mxu0 0.0
  %5125 = vmatpush2.xpose.msra.mxu0 0.0
  %5126 = vmatprep.subr.mxu0 0.0
  %5127 = vmatpush2.xpose.msra.mxu0 0.0
  %5128 = vmatprep.subr.mxu0 0.0
  %5129 = vmatpush2.xpose.msra.mxu0 0.0
  %5130 = vmatprep.subr.mxu0 0.0
  %5131 = vmatpush2.xpose.msra.mxu0 0.0
  %5132 = vmatprep.subr.mxu0 0.0
  %5133 = vmatpush2.xpose.msra.mxu0 0.0
  %5134 = vmatprep.subr.mxu0 0.0
  %5135 = vmatpush2.xpose.msra.mxu0 0.0
  %5136 = vmatprep.subr.mxu0 0.0
  %5137 = vmatpush2.xpose.msra.mxu0 0.0
  %5138 = vmatprep.subr.mxu0 0.0
  %5139 = vmatpush2.xpose.msra.mxu0 0.0
  %5140 = vmatprep.subr.mxu0 0.0
  %5141 = vmatpush2.xpose.msra.mxu0 0.0
  %5142 = vmatprep.subr.mxu0 0.0
  %5143 = vmatpush2.xpose.msra.mxu0 0.0
  %5144 = vmatprep.mubr.f32.mxu0 0.0
  %5145 = vmatmul.mubr.f32.gmra.mxu0 %v5009
  %v5146 = vpop.f32.mrf.mxu0
  %v5147 = vadd.f32 %v5006, %v5146
  %v5148 = vpop.f32.mrf.mxu0
  %5149 = vmatprep.mubr.f32.mxu0 0.0
  %5150 = vmatmul.mubr.f32.gmra.mxu0 %v5012
  %v5151 = vpop.f32.mrf.mxu0
  %v5152 = vadd.f32 %v5006, %v5151
  %v5153 = vpop.f32.mrf.mxu0
  %5154 = vmatprep.mubr.f32.mxu0 0.0
  %5155 = vmatmul.mubr.f32.gmra.mxu0 %v5015
  %v5156 = vpop.f32.mrf.mxu0
  %v5157 = vadd.f32 %v5006, %v5156
  %v5158 = vpop.f32.mrf.mxu0
  %5159 = vmatprep.mubr.f32.mxu0 0.0
  %5160 = vmatmul.mubr.f32.gmra.mxu0 %v5018
  %v5161 = vpop.f32.mrf.mxu0
  %v5162 = vadd.f32 %v5006, %v5161
  %v5163 = vpop.f32.mrf.mxu0
  %5164 = vmatprep.mubr.f32.mxu0 0.0
  %5165 = vmatmul.mubr.f32.gmra.mxu0 %v5021
  %v5166 = vpop.f32.mrf.mxu0
  %v5167 = vadd.f32 %v5006, %v5166
  %v5168 = vpop.f32.mrf.mxu0
  %5169 = vmatprep.mubr.f32.mxu0 0.0
  %5170 = vmatmul.mubr.f32.gmra.mxu0 %v5024
  %v5171 = vpop.f32.mrf.mxu0
  %v5172 = vadd.f32 %v5006, %v5171
  %v5173 = vpop.f32.mrf.mxu0
  %5174 = vmatprep.mubr.f32.mxu0 0.0
  %5175 = vmatmul.mubr.f32.gmra.mxu0 %v5027
  %v5176 = vpop.f32.mrf.mxu0
  %v5177 = vadd.f32 %v5006, %v5176
  %v5178 = vpop.f32.mrf.mxu0
  %5179 = vmatprep.mubr.f32.mxu0 0.0
  %5180 = vmatmul.mubr.f32.gmra.mxu0 %v5030
  %v5181 = vpop.f32.mrf.mxu0
  %v5182 = vadd.f32 %v5006, %v5181
  %v5183 = vpop.f32.mrf.mxu0
  %5184 = vdwg.mxu0
  %v5185 = vmul.f32 %v5147, 0.5
  %v5186 = vmul.f32 %v5152, 0.5
  %v5187 = vmul.f32 %v5157, 0.5
  %v5188 = vmul.f32 %v5162, 0.5
  %v5189 = vmul.f32 %v5167, 0.5
  %v5190 = vmul.f32 %v5172, 0.5
  %v5191 = vmul.f32 %v5177, 0.5
  %v5192 = vmul.f32 %v5182, 0.5
  %v5193 = vmul.f32 %v5147, 0.70710677
  %v5194 = vmul.f32 %v5152, 0.70710677
  %v5195 = vmul.f32 %v5157, 0.70710677
  %v5196 = vmul.f32 %v5162, 0.70710677
  %v5197 = vmul.f32 %v5167, 0.70710677
  %v5198 = vmul.f32 %v5172, 0.70710677
  %v5199 = vmul.f32 %v5177, 0.70710677
  %v5200 = vmul.f32 %v5182, 0.70710677
  %v5201 = verf.f32.pop %v5193
  %v5202 = verf.f32.pop %v5194
  %v5203 = verf.f32.pop %v5195
  %v5204 = verf.f32.pop %v5196
  %v5205 = verf.f32.pop %v5197
  %v5206 = verf.f32.pop %v5198
  %v5207 = verf.f32.pop %v5199
  %v5208 = verf.f32.pop %v5200
  %v5209 = vadd.f32 %v5201, 1.0
  %v5210 = vadd.f32 %v5202, 1.0
  %v5211 = vadd.f32 %v5203, 1.0
  %v5212 = vadd.f32 %v5204, 1.0
  %v5213 = vadd.f32 %v5205, 1.0
  %v5214 = vadd.f32 %v5206, 1.0
  %v5215 = vadd.f32 %v5207, 1.0
  %v5216 = vadd.f32 %v5208, 1.0
  %v5217 = vmul.f32 %v5185, %v5209
  %v5218 = vmul.f32 %v5186, %v5210
  %v5219 = vmul.f32 %v5187, %v5211
  %v5220 = vmul.f32 %v5188, %v5212
  %v5221 = vmul.f32 %v5189, %v5213
  %v5222 = vmul.f32 %v5190, %v5214
  %v5223 = vmul.f32 %v5191, %v5215
  %v5224 = vmul.f32 %v5192, %v5216
  %s5225 = scalar_lea.vmem %s23, 32
  %v5226 = vld [vmem:[%s5225] sm:$0xff]
  %v5227 = vld [vmem:[%s5225 + $0x8] sm:$0xff]
  %v5228 = vld [vmem:[%s5225 + $0x10] sm:$0xff]
  %v5229 = vld [vmem:[%s5225 + $0x18] sm:$0xff]
  %s5230 = scalar_lea.vmem %s24, 1
  %v5231 = vld [vmem:[%s5230] sm:$0x1]
  %v5233 = vlaneseq
  %v5234 = vshrl.u32 %v5233, 7
  %v5235 = vsub.s32 0, %v5234
  %v5236 = vrot.slane %v5231, %v5235
  %5238 = vmatprep.subr.mxu0 0.0
  %5239 = vmatpush1.xpose.msra.mxu0 0.0
  %5240 = vmatprep.subr.mxu0 0.0
  %5241 = vmatpush1.xpose.msra.mxu0 0.0
  %5242 = vmatprep.subr.mxu0 0.0
  %5243 = vmatpush1.xpose.msra.mxu0 0.0
  %5244 = vmatprep.subr.mxu0 0.0
  %5245 = vmatpush1.xpose.msra.mxu0 0.0
  %5246 = vmatprep.subr.mxu0 0.0
  %5247 = vmatpush1.xpose.msra.mxu0 0.0
  %5248 = vmatprep.subr.mxu0 0.0
  %5249 = vmatpush1.xpose.msra.mxu0 0.0
  %5250 = vmatprep.subr.mxu0 0.0
  %5251 = vmatpush1.xpose.msra.mxu0 0.0
  %5252 = vmatprep.subr.mxu0 0.0
  %5253 = vmatpush1.xpose.msra.mxu0 0.0
  %5254 = vmatprep.subr.mxu0 0.0
  %5255 = vmatpush1.xpose.msra.mxu0 0.0
  %5256 = vmatprep.subr.mxu0 0.0
  %5257 = vmatpush1.xpose.msra.mxu0 0.0
  %5258 = vmatprep.subr.mxu0 0.0
  %5259 = vmatpush1.xpose.msra.mxu0 0.0
  %5260 = vmatprep.subr.mxu0 0.0
  %5261 = vmatpush1.xpose.msra.mxu0 0.0
  %5262 = vmatprep.subr.mxu0 0.0
  %5263 = vmatpush1.xpose.msra.mxu0 %v5229
  %5264 = vmatprep.subr.mxu0 0.0
  %5265 = vmatpush1.xpose.msra.mxu0 %v5228
  %5266 = vmatprep.subr.mxu0 0.0
  %5267 = vmatpush1.xpose.msra.mxu0 %v5227
  %5268 = vmatprep.subr.mxu0 0.0
  %5269 = vmatpush1.xpose.msra.mxu0 %v5226
  %5270 = vmatprep.subr.mxu0 0.0
  %5271 = vmatpush2.xpose.msra.mxu0 0.0
  %5272 = vmatprep.subr.mxu0 0.0
  %5273 = vmatpush2.xpose.msra.mxu0 0.0
  %5274 = vmatprep.subr.mxu0 0.0
  %5275 = vmatpush2.xpose.msra.mxu0 0.0
  %5276 = vmatprep.subr.mxu0 0.0
  %5277 = vmatpush2.xpose.msra.mxu0 0.0
  %5278 = vmatprep.subr.mxu0 0.0
  %5279 = vmatpush2.xpose.msra.mxu0 0.0
  %5280 = vmatprep.subr.mxu0 0.0
  %5281 = vmatpush2.xpose.msra.mxu0 0.0
  %5282 = vmatprep.subr.mxu0 0.0
  %5283 = vmatpush2.xpose.msra.mxu0 0.0
  %5284 = vmatprep.subr.mxu0 0.0
  %5285 = vmatpush2.xpose.msra.mxu0 0.0
  %5286 = vmatprep.subr.mxu0 0.0
  %5287 = vmatpush2.xpose.msra.mxu0 0.0
  %5288 = vmatprep.subr.mxu0 0.0
  %5289 = vmatpush2.xpose.msra.mxu0 0.0
  %5290 = vmatprep.subr.mxu0 0.0
  %5291 = vmatpush2.xpose.msra.mxu0 0.0
  %5292 = vmatprep.subr.mxu0 0.0
  %5293 = vmatpush2.xpose.msra.mxu0 0.0
  %5294 = vmatprep.subr.mxu0 0.0
  %5295 = vmatpush2.xpose.msra.mxu0 0.0
  %5296 = vmatprep.subr.mxu0 0.0
  %5297 = vmatpush2.xpose.msra.mxu0 0.0
  %5298 = vmatprep.subr.mxu0 0.0
  %5299 = vmatpush2.xpose.msra.mxu0 0.0
  %5300 = vmatprep.subr.mxu0 0.0
  %5301 = vmatpush2.xpose.msra.mxu0 0.0
  %5302 = vmatprep.mubr.f32.mxu0 0.0
  %5303 = vmatmul.mubr.f32.gmra.mxu0 %v5217
  %v5304 = vpop.f32.mrf.mxu0
  %v5305 = vpop.f32.mrf.mxu0
  %5306 = vmatprep.mubr.f32.mxu0 0.0
  %5307 = vmatmul.mubr.f32.gmra.mxu0 %v5218
  %v5308 = vpop.f32.mrf.mxu0
  %v5309 = vadd.f32 %v5236, %v5308
  %v5310 = vpop.f32.mrf.mxu0
  %5311 = vmatprep.mubr.f32.mxu0 0.0
  %5312 = vmatmul.mubr.f32.gmra.mxu0 %v5219
  %v5313 = vpop.f32.mrf.mxu0
  %v5314 = vpop.f32.mrf.mxu0
  %5315 = vmatprep.mubr.f32.mxu0 0.0
  %5316 = vmatmul.mubr.f32.gmra.mxu0 %v5220
  %v5317 = vpop.f32.mrf.mxu0
  %v5318 = vpop.f32.mrf.mxu0
  %5319 = vmatprep.mubr.f32.mxu0 0.0
  %5320 = vmatmul.mubr.f32.gmra.mxu0 %v5221
  %v5321 = vpop.f32.mrf.mxu0
  %v5322 = vpop.f32.mrf.mxu0
  %5323 = vmatprep.mubr.f32.mxu0 0.0
  %5324 = vmatmul.mubr.f32.gmra.mxu0 %v5222
  %v5325 = vpop.f32.mrf.mxu0
  %v5326 = vadd.f32 %v5236, %v5325
  %v5327 = vpop.f32.mrf.mxu0
  %5328 = vmatprep.mubr.f32.mxu0 0.0
  %5329 = vmatmul.mubr.f32.gmra.mxu0 %v5223
  %v5330 = vpop.f32.mrf.mxu0
  %v5331 = vpop.f32.mrf.mxu0
  %5332 = vmatprep.mubr.f32.mxu0 0.0
  %5333 = vmatmul.mubr.f32.gmra.mxu0 %v5224
  %v5334 = vpop.f32.mrf.mxu0
  %v5335 = vpop.f32.mrf.mxu0
  %5336 = vdwg.mxu0
  %v5337 = vadd.f32 %v4840, %v5309
  %v5338 = vadd.f32 %v4844, %v5326
  %s5339 = scalar_lea.vmem %s8, 2
  %v5340 = vld [vmem:[%s5339] sm:$0x1]
  %s5341 = scalar_lea.vmem %s8, 3
  %v5342 = vld [vmem:[%s5341] sm:$0x1]
  %v5343 = vsel %vm475, %v5337, 0.0
  %5344 = vadd.xlane.f32.xlu0 %v5343
  %v5345 = vpop.xlane.xlu0 %5344
  %v5346 = vsel %vm475, %v5338, 0.0
  %5347 = vadd.xlane.f32.xlu0 %v5346
  %v5348 = vpop.xlane.xlu0 %5347
  %v5349 = vmul.f32 %v5345, %v519
  %v5350 = vmul.f32 %v5348, %v519
  %v5351 = vsub.f32 %v5337, %v5349
  %v5352 = vsub.f32 %v5338, %v5350
  %v5353 = vmul.f32 %v5351, %v5351
  %v5354 = vmul.f32 %v5352, %v5352
  %v5355 = vsel %vm475, %v5353, 0.0
  %5356 = vadd.xlane.f32.xlu0 %v5355
  %v5357 = vpop.xlane.xlu0 %5356
  %v5358 = vsel %vm475, %v5354, 0.0
  %5359 = vadd.xlane.f32.xlu0 %v5358
  %v5360 = vpop.xlane.xlu0 %5359
  %v5361 = vmul.f32 %v5357, %v519
  %v5362 = vmul.f32 %v5360, %v519
  %v5363 = vadd.f32 %v5361, 1e-05
  %v5364 = vadd.f32 %v5362, 1e-05
  %v5365 = vrsqrt.pop %v5363
  %v5366 = vrsqrt.pop %v5364
  %v5367 = vmul.f32 %v5351, %v5365
  %v5368 = vmul.f32 %v5352, %v5366
  %v5370 = vlaneseq
  %v5371 = vshrl.u32 %v5370, 7
  %v5372 = vsub.s32 0, %v5371
  %v5373 = vrot.slane %v5340, %v5372
  %v5375 = vmul.f32 %v5367, %v5373
  %v5376 = vmul.f32 %v5368, %v5373
  %v5378 = vlaneseq
  %v5379 = vshrl.u32 %v5378, 7
  %v5380 = vsub.s32 0, %v5379
  %v5381 = vrot.slane %v5342, %v5380
  %v5383 = vadd.f32 %v5375, %v5381
  %v5384 = vadd.f32 %v5376, %v5381
  %v5385 = vld [vmem:[%s25] sm:$0xf]
  %v5386 = vld [vmem:[%s26] sm:$0x1]
  %v5388 = vlaneseq
  %v5389 = vshrl.u32 %v5388, 7
  %v5390 = vsub.s32 0, %v5389
  %v5391 = vrot.slane %v5386, %v5390
  %v5394 = vsel %vm475, %v5383, 0
  %v5397 = vsel %vm475, %v5384, 0
  %v5400 = vsel %vm475, %v5385, 0
  %5402 = vmatprep.subr.mxu0 0.0
  %5403 = vmatpush1.xpose.msra.mxu0 0.0
  %5404 = vmatprep.subr.mxu0 0.0
  %5405 = vmatpush1.xpose.msra.mxu0 0.0
  %5406 = vmatprep.subr.mxu0 0.0
  %5407 = vmatpush1.xpose.msra.mxu0 0.0
  %5408 = vmatprep.subr.mxu0 0.0
  %5409 = vmatpush1.xpose.msra.mxu0 0.0
  %5410 = vmatprep.subr.mxu0 0.0
  %5411 = vmatpush1.xpose.msra.mxu0 0.0
  %5412 = vmatprep.subr.mxu0 0.0
  %5413 = vmatpush1.xpose.msra.mxu0 0.0
  %5414 = vmatprep.subr.mxu0 0.0
  %5415 = vmatpush1.xpose.msra.mxu0 0.0
  %5416 = vmatprep.subr.mxu0 0.0
  %5417 = vmatpush1.xpose.msra.mxu0 0.0
  %5418 = vmatprep.subr.mxu0 0.0
  %5419 = vmatpush1.xpose.msra.mxu0 0.0
  %5420 = vmatprep.subr.mxu0 0.0
  %5421 = vmatpush1.xpose.msra.mxu0 0.0
  %5422 = vmatprep.subr.mxu0 0.0
  %5423 = vmatpush1.xpose.msra.mxu0 0.0
  %5424 = vmatprep.subr.mxu0 0.0
  %5425 = vmatpush1.xpose.msra.mxu0 0.0
  %5426 = vmatprep.subr.mxu0 0.0
  %5427 = vmatpush1.xpose.msra.mxu0 0.0
  %5428 = vmatprep.subr.mxu0 0.0
  %5429 = vmatpush1.xpose.msra.mxu0 0.0
  %5430 = vmatprep.subr.mxu0 0.0
  %5431 = vmatpush1.xpose.msra.mxu0 0.0
  %5432 = vmatprep.subr.mxu0 0.0
  %5433 = vmatpush1.xpose.msra.mxu0 %v5400
  %5434 = vmatprep.subr.mxu0 0.0
  %5435 = vmatpush2.xpose.msra.mxu0 0.0
  %5436 = vmatprep.subr.mxu0 0.0
  %5437 = vmatpush2.xpose.msra.mxu0 0.0
  %5438 = vmatprep.subr.mxu0 0.0
  %5439 = vmatpush2.xpose.msra.mxu0 0.0
  %5440 = vmatprep.subr.mxu0 0.0
  %5441 = vmatpush2.xpose.msra.mxu0 0.0
  %5442 = vmatprep.subr.mxu0 0.0
  %5443 = vmatpush2.xpose.msra.mxu0 0.0
  %5444 = vmatprep.subr.mxu0 0.0
  %5445 = vmatpush2.xpose.msra.mxu0 0.0
  %5446 = vmatprep.subr.mxu0 0.0
  %5447 = vmatpush2.xpose.msra.mxu0 0.0
  %5448 = vmatprep.subr.mxu0 0.0
  %5449 = vmatpush2.xpose.msra.mxu0 0.0
  %5450 = vmatprep.subr.mxu0 0.0
  %5451 = vmatpush2.xpose.msra.mxu0 0.0
  %5452 = vmatprep.subr.mxu0 0.0
  %5453 = vmatpush2.xpose.msra.mxu0 0.0
  %5454 = vmatprep.subr.mxu0 0.0
  %5455 = vmatpush2.xpose.msra.mxu0 0.0
  %5456 = vmatprep.subr.mxu0 0.0
  %5457 = vmatpush2.xpose.msra.mxu0 0.0
  %5458 = vmatprep.subr.mxu0 0.0
  %5459 = vmatpush2.xpose.msra.mxu0 0.0
  %5460 = vmatprep.subr.mxu0 0.0
  %5461 = vmatpush2.xpose.msra.mxu0 0.0
  %5462 = vmatprep.subr.mxu0 0.0
  %5463 = vmatpush2.xpose.msra.mxu0 0.0
  %5464 = vmatprep.subr.mxu0 0.0
  %5465 = vmatpush2.xpose.msra.mxu0 0.0
  %5466 = vmatprep.mubr.f32.mxu0 0.0
  %5467 = vmatmul.mubr.f32.gmra.mxu0 %v5394
  %v5468 = vpop.f32.mrf.mxu0
  %v5469 = vadd.f32 %v5391, %v5468
  %v5470 = vpop.f32.mrf.mxu0
  %5471 = vmatprep.mubr.f32.mxu0 0.0
  %5472 = vmatmul.mubr.f32.gmra.mxu0 %v5397
  %v5473 = vpop.f32.mrf.mxu0
  %v5474 = vadd.f32 %v5391, %v5473
  %v5475 = vpop.f32.mrf.mxu0
  %5476 = vdwg.mxu0
  %v5477 = vtanh.pop %v5469
  %v5478 = vtanh.pop %v5474
  %5479 = vst.msk [vmem:[%s27] sm:$0xff] %vm238, %v5477
  %5480 = vst.msk [vmem:[%s27 + $0x8] sm:$0xff] %vm238, %v5478
  // Predicated region
  $region110: #{forward.1} parent=0 // pred_check
    _
  $region111: #{forward.1} parent=0 // pred_check_branch
    %5482 = sbr.rel (0) target = $region113
  $region112: #{forward.1} parent=0 // pred_region
    _
  $region113: #{forward.1} parent=0 // pred_fallthru
    _
  // Predicated region
  $region114: #{forward.1} parent=0 // pred_check
    _
  $region115: #{forward.1} parent=0 // pred_check_branch
    %5484 = sbr.rel (0) target = $region117
  $region116: #{forward.1} parent=0 // pred_region
    _
  $region117: #{forward.1} parent=0 // pred_fallthru
    _

</llo_original>
